<compile_context>
chip_gen: v7x
topology: tpu7x:2x2x1
jax: 0.10.0
libtpu: 0.0.40
codegen_flags: <defaults>
</compile_context>

<pallas_src>
import jax
import jax.numpy as jnp
from jax.experimental import pallas as pl
from jax.experimental.pallas import tpu as pltpu

_LANE = 128          # lane width: batch padding / output-row granularity
_MAX_TILE_B = 256    # fills the 256-row MXU (v6e/v7x); two passes of v5e's 128-row MXU


def _adv_net_kernel(x_ref, w1_ref, b1_ref, w2_ref, b2_ref, w3_ref, b3_ref, o_ref):
    # ad_layer1 + relu1   (dropout1 == identity in eval mode)
    x = x_ref[...].astype(jnp.bfloat16)                       # no-op if x is bf16
    h = jnp.dot(x, w1_ref[...], preferred_element_type=jnp.float32)
    h = jnp.maximum(h + b1_ref[...], 0.0)

    # ad_layer2 + relu2   (dropout2 == identity in eval mode)
    h = jnp.dot(h.astype(jnp.bfloat16), w2_ref[...],
                preferred_element_type=jnp.float32)
    h = jnp.maximum(h + b2_ref[...], 0.0)

    # ad_layer3 + sigmoid.  N=1 output -> VPU multiply + XLU lane-reduce instead of
    # a degenerate 1-column MXU matmul; XLU transpose makes the store a lane-dense
    # (1, tile_b) row instead of a masked (tile_b, 1) column.
    w3_row = w3_ref[...].astype(jnp.float32)                  # (1, H)
    logits = jnp.sum(h * w3_row, axis=-1, keepdims=True) + b3_ref[...]   # (tile_b, 1)
    row = jnp.transpose(logits, (1, 0))                       # (1, tile_b)
    o_ref[...] = jax.nn.sigmoid(row).astype(o_ref.dtype)


def _resident_spec(shape):
    """Constant-index (VMEM-resident) block; single-buffered to halve its VMEM."""
    index_map = lambda i: (0,) * len(shape)
    try:
        return pl.BlockSpec(shape, index_map, pipeline_mode=pl.Buffered(1))
    except TypeError:  # older jax without pipeline_mode on BlockSpec
        return pl.BlockSpec(shape, index_map)


def _round_up(n, m):
    return ((n + m - 1) // m) * m


@jax.jit
def adversarial_network_forward(x, w1, b1, w2, b2, w3, b3):
    """AdversarialNetwork.forward (eval mode).

    x : (B, F) float32 or bfloat16
    w1: (F, H), w2: (H, H), w3: (H, 1)   (pre-transposed torch weights)
    b1, b2: (1, H), b3: (1, 1)
    returns (B, 1) float32 in [0, 1].
    """
    B, F = x.shape
    H = w1.shape[1]  # 1024
    assert w1.shape == (F, H) and w2.shape == (H, H) and w3.shape == (H, 1)

    # Weights travel as bf16 (halves the dominant HBM->VMEM bytes); f32 accumulation.
    wdt = jnp.bfloat16
    w1 = w1.astype(wdt)
    w2 = w2.astype(wdt)
    w3_row = jnp.transpose(w3.astype(wdt), (1, 0))            # explicit (1, H) row
    b1 = b1.astype(jnp.float32)
    b2 = b2.astype(jnp.float32)
    b3 = b3.astype(jnp.float32)

    # Pad-and-slice batch tiling.
    B_pad = _round_up(max(B, _LANE), _LANE)
    tile_b = min(B_pad, _MAX_TILE_B)
    if B_pad != B:
        x = jnp.pad(x, ((0, B_pad - B), (0, 0)))
    grid = (B_pad // tile_b,)

    # VMEM budget: single-buffered weights (+slack for a possible second buffer),
    # double-buffered x tile, f32 activation headroom.
    weight_bytes = ((w1.size + w2.size + w3_row.size) * 2
                    + (b1.size + b2.size + b3.size) * 4)
    x_tile_bytes = 2 * tile_b * F * x.dtype.itemsize
    act_bytes = 4 * tile_b * H * 4
    vmem_limit = int(min(32 << 20,
                         max(16 << 20,
                             2 * weight_bytes + x_tile_bytes + act_bytes + (4 << 20))))

    cost = pl.CostEstimate(
        flops=2 * B_pad * (F * H + H * H + H),
        transcendentals=B_pad,  # one sigmoid per (padded) row
        bytes_accessed=int(x.size * x.dtype.itemsize + B_pad * 4 + weight_bytes),
    )

    out = pl.pallas_call(
        _adv_net_kernel,
        out_shape=jax.ShapeDtypeStruct((1, B_pad), jnp.float32),
        grid_spec=pltpu.PrefetchScalarGridSpec(
            num_scalar_prefetch=0,
            grid=grid,
            in_specs=[
                pl.BlockSpec((tile_b, F), lambda i: (i, 0)),   # x: batch-tiled
                _resident_spec((F, H)),                        # w1 (bf16, resident)
                _resident_spec((1, H)),                        # b1
                _resident_spec((H, H)),                        # w2 (bf16, resident)
                _resident_spec((1, H)),                        # b2
                _resident_spec((1, H)),                        # w3 as a row
                _resident_spec((1, 1)),                        # b3
            ],
            out_specs=pl.BlockSpec((1, tile_b), lambda i: (0, i)),  # lane-dense row
        ),
        compiler_params=pltpu.CompilerParams(
            dimension_semantics=("parallel",),
            vmem_limit_bytes=vmem_limit,
        ),
        cost_estimate=cost,
    )(x, w1, b1, w2, b2, w3_row, b3)

    return out[0, :B].reshape(B, 1)


if __name__ == "__main__":
    # Small deterministic example consistent with the module (H=1024 fixed by it).
    B = 8      # batch
    F = 256    # in_feature
    H = 1024   # hidden width fixed by the module

    key = jax.random.PRNGKey(0)
    kx, k1, k2, k3 = jax.random.split(key, 4)

    x = jax.random.normal(kx, (B, F), dtype=jnp.float32)

    # Parameter init mirrors the PyTorch module:
    #   layer1/2 weights ~ N(0, 0.01), layer3 weight ~ N(0, 0.3), biases = 0.
    # Stored as (in, out) = W.T of the torch (out, in) weight, in bf16 (the
    # kernel's weight storage/DMA dtype).
    w1 = (0.01 * jax.random.normal(k1, (F, H), jnp.float32)).astype(jnp.bfloat16)
    w2 = (0.01 * jax.random.normal(k2, (H, H), jnp.float32)).astype(jnp.bfloat16)
    w3 = (0.30 * jax.random.normal(k3, (H, 1), jnp.float32)).astype(jnp.bfloat16)
    b1 = jnp.zeros((1, H), jnp.float32)
    b2 = jnp.zeros((1, H), jnp.float32)
    b3 = jnp.zeros((1, 1), jnp.float32)

    out = adversarial_network_forward(x, w1, b1, w2, b2, w3, b3)
    out = jax.block_until_ready(out)
    assert out.shape == (B, 1)

    # Reference in plain JAX using the same bf16-rounded weights/activations with
    # f32 accumulation (eval-mode dropout == identity).
    w1f = w1.astype(jnp.float32)
    w2f = w2.astype(jnp.float32)
    w3f = w3.astype(jnp.float32)
    xb = x.astype(jnp.bfloat16).astype(jnp.float32)
    h = jnp.maximum(xb @ w1f + b1, 0.0)
    h = jnp.maximum(h.astype(jnp.bfloat16).astype(jnp.float32) @ w2f + b2, 0.0)
    ref = jax.nn.sigmoid(h @ w3f + b3)
    assert jnp.allclose(out, ref, atol=2e-3, rtol=2e-3), (
        float(jnp.max(jnp.abs(out - ref))))

    print("KERNEL_OK")
</pallas_src>

<mosaic_0001>
module attributes {stable_mosaic.version = 11 : i64} {
  func.func @_adv_net_kernel(%arg0: i32, %arg1: memref<128x256xf32, #tpu.memory_space<vmem>>, %arg2: memref<256x1024xbf16, #tpu.memory_space<vmem>>, %arg3: memref<1x1024xf32, #tpu.memory_space<vmem>>, %arg4: memref<1024x1024xbf16, #tpu.memory_space<vmem>>, %arg5: memref<1x1024xf32, #tpu.memory_space<vmem>>, %arg6: memref<1x1024xbf16, #tpu.memory_space<vmem>>, %arg7: memref<1x1xf32, #tpu.memory_space<vmem>>, %arg8: memref<1x128xf32, #tpu.memory_space<vmem>>) attributes {dimension_semantics = [#tpu.dimension_semantics<parallel>], iteration_bounds = array<i64: 1>, scalar_prefetch = 0 : i64, scratch_operands = 0 : i64, tpu.core_type = #tpu.core_type<tc>, window_params = [{transform_indices = @transform_0, window_bounds = array<i64: 128, 256>}, {pipeline_mode = #tpu.pipeline_mode<synchronous>, transform_indices = @transform_1, window_bounds = array<i64: 256, 1024>}, {pipeline_mode = #tpu.pipeline_mode<synchronous>, transform_indices = @transform_2, window_bounds = array<i64: 1, 1024>}, {pipeline_mode = #tpu.pipeline_mode<synchronous>, transform_indices = @transform_3, window_bounds = array<i64: 1024, 1024>}, {pipeline_mode = #tpu.pipeline_mode<synchronous>, transform_indices = @transform_4, window_bounds = array<i64: 1, 1024>}, {pipeline_mode = #tpu.pipeline_mode<synchronous>, transform_indices = @transform_5, window_bounds = array<i64: 1, 1024>}, {pipeline_mode = #tpu.pipeline_mode<synchronous>, transform_indices = @transform_6, window_bounds = array<i64: 1, 1>}, {transform_indices = @transform_7, window_bounds = array<i64: 1, 128>}]} {
    %c0 = arith.constant 0 : index
    %c0_0 = arith.constant 0 : index
    %0 = vector.load %arg1[%c0, %c0_0] : memref<128x256xf32, #tpu.memory_space<vmem>>, vector<128x256xf32>
    %1 = arith.truncf %0 : vector<128x256xf32> to vector<128x256xbf16>
    %c0_1 = arith.constant 0 : index
    %c0_2 = arith.constant 0 : index
    %2 = vector.load %arg2[%c0_1, %c0_2] : memref<256x1024xbf16, #tpu.memory_space<vmem>>, vector<256x1024xbf16>
    %cst = arith.constant dense<0.000000e+00> : vector<128x1024xf32>
    %3 = tpu.matmul %1, %2, %cst {dimension_numbers = #tpu.dot_dimension_numbers<[1], [0], [0], [1], [0, 0, 1, 1], [], []>} : vector<128x256xbf16>, vector<256x1024xbf16>, vector<128x1024xf32> -> vector<128x1024xf32>
    %c0_3 = arith.constant 0 : index
    %c0_4 = arith.constant 0 : index
    %4 = vector.load %arg3[%c0_3, %c0_4] : memref<1x1024xf32, #tpu.memory_space<vmem>>, vector<1x1024xf32>
    %5 = vector.broadcast %4 : vector<1x1024xf32> to vector<128x1024xf32>
    %6 = arith.addf %3, %5 : vector<128x1024xf32>
    %cst_5 = arith.constant 0.000000e+00 : f32
    %7 = vector.broadcast %cst_5 : f32 to vector<128x1024xf32>
    %8 = arith.maximumf %6, %7 : vector<128x1024xf32>
    %9 = arith.truncf %8 : vector<128x1024xf32> to vector<128x1024xbf16>
    %c0_6 = arith.constant 0 : index
    %c0_7 = arith.constant 0 : index
    %10 = vector.load %arg4[%c0_6, %c0_7] : memref<1024x1024xbf16, #tpu.memory_space<vmem>>, vector<1024x1024xbf16>
    %cst_8 = arith.constant dense<0.000000e+00> : vector<128x1024xf32>
    %11 = tpu.matmul %9, %10, %cst_8 {dimension_numbers = #tpu.dot_dimension_numbers<[1], [0], [0], [1], [0, 0, 1, 1], [], []>} : vector<128x1024xbf16>, vector<1024x1024xbf16>, vector<128x1024xf32> -> vector<128x1024xf32>
    %c0_9 = arith.constant 0 : index
    %c0_10 = arith.constant 0 : index
    %12 = vector.load %arg5[%c0_9, %c0_10] : memref<1x1024xf32, #tpu.memory_space<vmem>>, vector<1x1024xf32>
    %13 = vector.broadcast %12 : vector<1x1024xf32> to vector<128x1024xf32>
    %14 = arith.addf %11, %13 : vector<128x1024xf32>
    %cst_11 = arith.constant 0.000000e+00 : f32
    %15 = vector.broadcast %cst_11 : f32 to vector<128x1024xf32>
    %16 = arith.maximumf %14, %15 : vector<128x1024xf32>
    %c0_12 = arith.constant 0 : index
    %c0_13 = arith.constant 0 : index
    %17 = vector.load %arg6[%c0_12, %c0_13] : memref<1x1024xbf16, #tpu.memory_space<vmem>>, vector<1x1024xbf16>
    %18 = arith.extf %17 : vector<1x1024xbf16> to vector<1x1024xf32>
    %19 = vector.broadcast %18 : vector<1x1024xf32> to vector<128x1024xf32>
    %20 = arith.mulf %16, %19 : vector<128x1024xf32>
    %cst_14 = arith.constant dense<0.000000e+00> : vector<128xf32>
    %21 = vector.multi_reduction <add>, %20, %cst_14 [1] : vector<128x1024xf32> to vector<128xf32>
    %22 = vector.shape_cast %21 : vector<128xf32> to vector<128x1xf32>
    %c0_15 = arith.constant 0 : index
    %c0_16 = arith.constant 0 : index
    %23 = vector.load %arg7[%c0_15, %c0_16] : memref<1x1xf32, #tpu.memory_space<vmem>>, vector<1x1xf32>
    %24 = vector.broadcast %23 : vector<1x1xf32> to vector<128x1xf32>
    %25 = arith.addf %22, %24 : vector<128x1xf32>
    %26 = tpu.transpose %25, [1, 0] : vector<128x1xf32> -> vector<1x128xf32>
    %27 = arith.negf %26 : vector<1x128xf32>
    %28 = math.exp %27 : vector<1x128xf32>
    %cst_17 = arith.constant 1.000000e+00 : f32
    %29 = vector.broadcast %cst_17 : f32 to vector<1x128xf32>
    %30 = arith.addf %29, %28 : vector<1x128xf32>
    %31 = arith.divf %29, %30 : vector<1x128xf32>
    %c0_18 = arith.constant 0 : index
    %c0_19 = arith.constant 0 : index
    %32 = vector.load %arg8[%c0_18, %c0_19] : memref<1x128xf32, #tpu.memory_space<vmem>>, vector<1x128xf32>
    tpu.vector_store %arg8[%c0_18, %c0_19], %31 {strides = array<i32>} : memref<1x128xf32, #tpu.memory_space<vmem>>, vector<1x128xf32>,
    return
  }
  func.func @transform_0(%arg0: i32) -> (i32, i32) {
    %c0_i32 = arith.constant 0 : i32
    %c0_i32_0 = arith.constant 0 : i32
    return %arg0, %c0_i32 : i32, i32
  }
  func.func @transform_1(%arg0: i32) -> (i32, i32) {
    %c0_i32 = arith.constant 0 : i32
    %c0_i32_0 = arith.constant 0 : i32
    %c0_i32_1 = arith.constant 0 : i32
    return %c0_i32, %c0_i32_0 : i32, i32
  }
  func.func @transform_2(%arg0: i32) -> (i32, i32) {
    %c0_i32 = arith.constant 0 : i32
    %c0_i32_0 = arith.constant 0 : i32
    %c0_i32_1 = arith.constant 0 : i32
    return %c0_i32, %c0_i32_0 : i32, i32
  }
  func.func @transform_3(%arg0: i32) -> (i32, i32) {
    %c0_i32 = arith.constant 0 : i32
    %c0_i32_0 = arith.constant 0 : i32
    %c0_i32_1 = arith.constant 0 : i32
    return %c0_i32, %c0_i32_0 : i32, i32
  }
  func.func @transform_4(%arg0: i32) -> (i32, i32) {
    %c0_i32 = arith.constant 0 : i32
    %c0_i32_0 = arith.constant 0 : i32
    %c0_i32_1 = arith.constant 0 : i32
    return %c0_i32, %c0_i32_0 : i32, i32
  }
  func.func @transform_5(%arg0: i32) -> (i32, i32) {
    %c0_i32 = arith.constant 0 : i32
    %c0_i32_0 = arith.constant 0 : i32
    %c0_i32_1 = arith.constant 0 : i32
    return %c0_i32, %c0_i32_0 : i32, i32
  }
  func.func @transform_6(%arg0: i32) -> (i32, i32) {
    %c0_i32 = arith.constant 0 : i32
    %c0_i32_0 = arith.constant 0 : i32
    %c0_i32_1 = arith.constant 0 : i32
    return %c0_i32, %c0_i32_0 : i32, i32
  }
  func.func @transform_7(%arg0: i32) -> (i32, i32) {
    %c0_i32 = arith.constant 0 : i32
    %c0_i32_0 = arith.constant 0 : i32
    return %c0_i32, %arg0 : i32, i32
  }
}

</mosaic_0001>

<llo_original>
// kernel: adversarial_network_forward.1
$region0: #{adversarial_network_forward.1}
  #allocation0 [shape = 'u32[]', space=smem, size = 0x4, offset = 0x4, fixed_abs, tag = 'smem constant byte address 0x4 - core index']
  #allocation1 [shape = 'u32[144,128]{1,0:T(1,128)}', space=vmem, size = 0x12000, scoped, tag = 'internal scratch']
  #allocation2 [shape = 'f32[1,1]{1,0:T(1,128)S(1)}', space=vmem, size = 0x200, scoped, tag = 'scoped memory for adversarial_network_forward.1']
  %s0 = inlined_call_operand.vmem [shape: f32[128,256], index: 0, kind: input, shape index: {}]
  %s1 = inlined_call_operand.hbm [shape: bf16[256,1024], index: 1, kind: input, shape index: {}]
  %s2 = inlined_call_operand.hbm [shape: f32[1,1024], index: 2, kind: input, shape index: {}]
  %s3 = inlined_call_operand.hbm [shape: bf16[1024,1024], index: 3, kind: input, shape index: {}]
  %s4 = inlined_call_operand.hbm [shape: f32[1,1024], index: 4, kind: input, shape index: {}]
  %s5 = inlined_call_operand.hbm [shape: bf16[1,1024], index: 5, kind: input, shape index: {}]
  %s6 = inlined_call_operand.<no memory space> [shape: f32[1,1], index: 6, kind: input, shape index: {}]
  %s7 = inlined_call_operand.vmem [shape: f32[1,128], index: 7, kind: output, shape index: {}]
  %s8 = sld [smem:[#allocation0]]
  $region58: #{adversarial_network_forward.1} parent=0
    _
  %s10 = ssub.s32 1, %s8
  %s11 = scalar_select 0, %s10, %s8
  %v12 = vstv %s6
  %13 = vst [vmem:[#allocation2] sm:$0x1] %v12
  $region1: #{adversarial_network_forward.1} parent=0
    #allocation3 [shape = 'u8[524288]{0}', space=vmem, size = 0x80000, scoped, tag = 'input window, operand 1, single buffered']
    #allocation4 [shape = 's32[1]{0}', space=sflag, size = 0x4, scoped, tag = 'scoped memory for adversarial_network_forward.1']
    #allocation5 [shape = 'u8[4096]{0}', space=vmem, size = 0x1000, scoped, tag = 'input window, operand 2, single buffered']
    #allocation6 [shape = 's32[1]{0}', space=sflag, size = 0x4, scoped, tag = 'scoped memory for adversarial_network_forward.1']
    #allocation7 [shape = 'u8[2097152]{0}', space=vmem, size = 0x200000, scoped, tag = 'input window, operand 3, single buffered']
    #allocation8 [shape = 'u8[4096]{0}', space=vmem, size = 0x1000, scoped, tag = 'input window, operand 4, single buffered']
    #allocation9 [shape = 's32[1]{0}', space=sflag, size = 0x4, scoped, tag = 'scoped memory for adversarial_network_forward.1']
    #allocation10 [shape = 'u8[4096]{0}', space=vmem, size = 0x1000, scoped, tag = 'input window, operand 5, single buffered']
    %14 = vsyncpa [#allocation4], 0
    %15 = vsyncpa [#allocation6], 0
    %16 = vsyncpa [#allocation9], 0
    // Predicated region
    $region2: #{adversarial_network_forward.1} parent=1 // pred_check
      _
    $region3: #{adversarial_network_forward.1} parent=1 // pred_check_branch
      %18 = sbr.rel (0) target = $region5
    $region4: #{adversarial_network_forward.1} parent=1 // pred_region
      _
    $region5: #{adversarial_network_forward.1} parent=1 // pred_fallthru
      _
    // Predicated region
    $region6: #{adversarial_network_forward.1} parent=1 // pred_check
      _
    $region7: #{adversarial_network_forward.1} parent=1 // pred_check_branch
      %20 = sbr.rel (0) target = $region9
    $region8: #{adversarial_network_forward.1} parent=1 // pred_region
      %s22 = ssub.s32 16384, 16384
      %23 = vsyncadd [#allocation4], %s22
      %s24 = sshll.u32 [#allocation3], 4
      %s25 = int_to_ptr.vmem [resolvable:$true] %s24
      %30 = dma.hbm_to_vmem [thread:$0]  %s1, 16384, %s25, [#allocation4], 512, 512, 32
    $region9: #{adversarial_network_forward.1} parent=1 // pred_fallthru
      _
    // Predicated region
    $region10: #{adversarial_network_forward.1} parent=1 // pred_check
      _
    $region11: #{adversarial_network_forward.1} parent=1 // pred_check_branch
      %32 = sbr.rel (0) target = $region13
    $region12: #{adversarial_network_forward.1} parent=1 // pred_region
      %s34 = ssub.s32 128, 128
      %35 = vsyncadd [#allocation6], %s34
      %s37 = sshll.u32 [#allocation5], 4
      %s38 = int_to_ptr.vmem [resolvable:$true] %s37
      %40 = dma.hbm_to_vmem [thread:$0]  %s2, 128, %s38, [#allocation6]
    $region13: #{adversarial_network_forward.1} parent=1 // pred_fallthru
      _
    // Predicated region
    $region14: #{adversarial_network_forward.1} parent=1 // pred_check
      _
    $region15: #{adversarial_network_forward.1} parent=1 // pred_check_branch
      %42 = sbr.rel (0) target = $region17
    $region16: #{adversarial_network_forward.1} parent=1 // pred_region
      %s44 = ssub.s32 65536, 65536
      %45 = vsyncadd [#allocation6], %s44
      %s46 = sshll.u32 [#allocation7], 4
      %s47 = int_to_ptr.vmem [resolvable:$true] %s46
      %52 = dma.hbm_to_vmem [thread:$0]  %s3, 65536, %s47, [#allocation6], 512, 512, 32
    $region17: #{adversarial_network_forward.1} parent=1 // pred_fallthru
      _
    // Predicated region
    $region18: #{adversarial_network_forward.1} parent=1 // pred_check
      _
    $region19: #{adversarial_network_forward.1} parent=1 // pred_check_branch
      %54 = sbr.rel (0) target = $region21
    $region20: #{adversarial_network_forward.1} parent=1 // pred_region
      %s56 = ssub.s32 128, 128
      %57 = vsyncadd [#allocation9], %s56
      %s59 = sshll.u32 [#allocation8], 4
      %s60 = int_to_ptr.vmem [resolvable:$true] %s59
      %62 = dma.hbm_to_vmem [thread:$0]  %s4, 128, %s60, [#allocation9]
    $region21: #{adversarial_network_forward.1} parent=1 // pred_fallthru
      _
    // Predicated region
    $region22: #{adversarial_network_forward.1} parent=1 // pred_check
      _
    $region23: #{adversarial_network_forward.1} parent=1 // pred_check_branch
      %64 = sbr.rel (0) target = $region25
    $region24: #{adversarial_network_forward.1} parent=1 // pred_region
      %s66 = ssub.s32 128, 128
      %67 = vsyncadd [#allocation9], %s66
      %s69 = sshll.u32 [#allocation10], 4
      %s70 = int_to_ptr.vmem [resolvable:$true] %s69
      %72 = dma.hbm_to_vmem [thread:$0]  %s5, 128, %s70, [#allocation9]
    $region25: #{adversarial_network_forward.1} parent=1 // pred_fallthru
      _
    // Predicated region
    $region26: #{adversarial_network_forward.1} parent=1 // pred_check
      _
    $region27: #{adversarial_network_forward.1} parent=1 // pred_check_branch
      %74 = sbr.rel (0) target = $region29
    $region28: #{adversarial_network_forward.1} parent=1 // pred_region
      _
    $region29: #{adversarial_network_forward.1} parent=1 // pred_fallthru
      _
    // Predicated region
    $region30: #{adversarial_network_forward.1} parent=1 // pred_check
      _
    $region31: #{adversarial_network_forward.1} parent=1 // pred_check_branch
      %76 = sbr.rel (0) target = $region33
    $region32: #{adversarial_network_forward.1} parent=1 // pred_region
      %77 = dma.done [#allocation4], 16384
    $region33: #{adversarial_network_forward.1} parent=1 // pred_fallthru
      _
    // Predicated region
    $region34: #{adversarial_network_forward.1} parent=1 // pred_check
      _
    $region35: #{adversarial_network_forward.1} parent=1 // pred_check_branch
      %79 = sbr.rel (0) target = $region37
    $region36: #{adversarial_network_forward.1} parent=1 // pred_region
      %80 = dma.done [#allocation6], 128
    $region37: #{adversarial_network_forward.1} parent=1 // pred_fallthru
      _
    // Predicated region
    $region38: #{adversarial_network_forward.1} parent=1 // pred_check
      _
    $region39: #{adversarial_network_forward.1} parent=1 // pred_check_branch
      %82 = sbr.rel (0) target = $region41
    $region40: #{adversarial_network_forward.1} parent=1 // pred_region
      %83 = dma.done [#allocation6], 65536
    $region41: #{adversarial_network_forward.1} parent=1 // pred_fallthru
      _
    // Predicated region
    $region42: #{adversarial_network_forward.1} parent=1 // pred_check
      _
    $region43: #{adversarial_network_forward.1} parent=1 // pred_check_branch
      %85 = sbr.rel (0) target = $region45
    $region44: #{adversarial_network_forward.1} parent=1 // pred_region
      %86 = dma.done [#allocation9], 128
    $region45: #{adversarial_network_forward.1} parent=1 // pred_fallthru
      _
    // Predicated region
    $region46: #{adversarial_network_forward.1} parent=1 // pred_check
      _
    $region47: #{adversarial_network_forward.1} parent=1 // pred_check_branch
      %88 = sbr.rel (0) target = $region49
    $region48: #{adversarial_network_forward.1} parent=1 // pred_region
      %89 = dma.done [#allocation9], 128
    $region49: #{adversarial_network_forward.1} parent=1 // pred_fallthru
      _
    %v90 = vld [vmem:[%s0] sm:$0xff]
    %v91 = vld [vmem:[%s0 + $0x8] sm:$0xff]
    %v92 = vld [vmem:[%s0 + $0x10] sm:$0xff]
    %v93 = vld [vmem:[%s0 + $0x18] sm:$0xff]
    %v94 = vld [vmem:[%s0 + $0x20] sm:$0xff]
    %v95 = vld [vmem:[%s0 + $0x28] sm:$0xff]
    %v96 = vld [vmem:[%s0 + $0x30] sm:$0xff]
    %v97 = vld [vmem:[%s0 + $0x38] sm:$0xff]
    %v98 = vld [vmem:[%s0 + $0x40] sm:$0xff]
    %v99 = vld [vmem:[%s0 + $0x48] sm:$0xff]
    %v100 = vld [vmem:[%s0 + $0x50] sm:$0xff]
    %v101 = vld [vmem:[%s0 + $0x58] sm:$0xff]
    %v102 = vld [vmem:[%s0 + $0x60] sm:$0xff]
    %v103 = vld [vmem:[%s0 + $0x68] sm:$0xff]
    %v104 = vld [vmem:[%s0 + $0x70] sm:$0xff]
    %v105 = vld [vmem:[%s0 + $0x78] sm:$0xff]
    %v106 = vld [vmem:[%s0 + $0x80] sm:$0xff]
    %v107 = vld [vmem:[%s0 + $0x88] sm:$0xff]
    %v108 = vld [vmem:[%s0 + $0x90] sm:$0xff]
    %v109 = vld [vmem:[%s0 + $0x98] sm:$0xff]
    %v110 = vld [vmem:[%s0 + $0xa0] sm:$0xff]
    %v111 = vld [vmem:[%s0 + $0xa8] sm:$0xff]
    %v112 = vld [vmem:[%s0 + $0xb0] sm:$0xff]
    %v113 = vld [vmem:[%s0 + $0xb8] sm:$0xff]
    %v114 = vld [vmem:[%s0 + $0xc0] sm:$0xff]
    %v115 = vld [vmem:[%s0 + $0xc8] sm:$0xff]
    %v116 = vld [vmem:[%s0 + $0xd0] sm:$0xff]
    %v117 = vld [vmem:[%s0 + $0xd8] sm:$0xff]
    %v118 = vld [vmem:[%s0 + $0xe0] sm:$0xff]
    %v119 = vld [vmem:[%s0 + $0xe8] sm:$0xff]
    %v120 = vld [vmem:[%s0 + $0xf0] sm:$0xff]
    %v121 = vld [vmem:[%s0 + $0xf8] sm:$0xff]
    %v122 = vpack.c.bf16 %v92, %v90
    %v123 = vpack.c.bf16 %v93, %v91
    %v124 = vpack.c.bf16 %v96, %v94
    %v125 = vpack.c.bf16 %v97, %v95
    %v126 = vpack.c.bf16 %v100, %v98
    %v127 = vpack.c.bf16 %v101, %v99
    %v128 = vpack.c.bf16 %v104, %v102
    %v129 = vpack.c.bf16 %v105, %v103
    %v130 = vpack.c.bf16 %v108, %v106
    %v131 = vpack.c.bf16 %v109, %v107
    %v132 = vpack.c.bf16 %v112, %v110
    %v133 = vpack.c.bf16 %v113, %v111
    %v134 = vpack.c.bf16 %v116, %v114
    %v135 = vpack.c.bf16 %v117, %v115
    %v136 = vpack.c.bf16 %v120, %v118
    %v137 = vpack.c.bf16 %v121, %v119
    %v138 = vld [vmem:[#allocation3] sm:$0xff]
    %v139 = vld [vmem:[#allocation3 + $0x8] sm:$0xff]
    %v140 = vld [vmem:[#allocation3 + $0x10] sm:$0xff]
    %v141 = vld [vmem:[#allocation3 + $0x18] sm:$0xff]
    %v142 = vld [vmem:[#allocation3 + $0x20] sm:$0xff]
    %v143 = vld [vmem:[#allocation3 + $0x28] sm:$0xff]
    %v144 = vld [vmem:[#allocation3 + $0x30] sm:$0xff]
    %v145 = vld [vmem:[#allocation3 + $0x38] sm:$0xff]
    %v146 = vld [vmem:[#allocation3 + $0x40] sm:$0xff]
    %v147 = vld [vmem:[#allocation3 + $0x48] sm:$0xff]
    %v148 = vld [vmem:[#allocation3 + $0x50] sm:$0xff]
    %v149 = vld [vmem:[#allocation3 + $0x58] sm:$0xff]
    %v150 = vld [vmem:[#allocation3 + $0x60] sm:$0xff]
    %v151 = vld [vmem:[#allocation3 + $0x68] sm:$0xff]
    %v152 = vld [vmem:[#allocation3 + $0x70] sm:$0xff]
    %v153 = vld [vmem:[#allocation3 + $0x78] sm:$0xff]
    %v154 = vld [vmem:[#allocation3 + $0x80] sm:$0xff]
    %v155 = vld [vmem:[#allocation3 + $0x88] sm:$0xff]
    %v156 = vld [vmem:[#allocation3 + $0x90] sm:$0xff]
    %v157 = vld [vmem:[#allocation3 + $0x98] sm:$0xff]
    %v158 = vld [vmem:[#allocation3 + $0xa0] sm:$0xff]
    %v159 = vld [vmem:[#allocation3 + $0xa8] sm:$0xff]
    %v160 = vld [vmem:[#allocation3 + $0xb0] sm:$0xff]
    %v161 = vld [vmem:[#allocation3 + $0xb8] sm:$0xff]
    %v162 = vld [vmem:[#allocation3 + $0xc0] sm:$0xff]
    %v163 = vld [vmem:[#allocation3 + $0xc8] sm:$0xff]
    %v164 = vld [vmem:[#allocation3 + $0xd0] sm:$0xff]
    %v165 = vld [vmem:[#allocation3 + $0xd8] sm:$0xff]
    %v166 = vld [vmem:[#allocation3 + $0xe0] sm:$0xff]
    %v167 = vld [vmem:[#allocation3 + $0xe8] sm:$0xff]
    %v168 = vld [vmem:[#allocation3 + $0xf0] sm:$0xff]
    %v169 = vld [vmem:[#allocation3 + $0xf8] sm:$0xff]
    %v170 = vld [vmem:[#allocation3 + $0x100] sm:$0xff]
    %v171 = vld [vmem:[#allocation3 + $0x108] sm:$0xff]
    %v172 = vld [vmem:[#allocation3 + $0x110] sm:$0xff]
    %v173 = vld [vmem:[#allocation3 + $0x118] sm:$0xff]
    %v174 = vld [vmem:[#allocation3 + $0x120] sm:$0xff]
    %v175 = vld [vmem:[#allocation3 + $0x128] sm:$0xff]
    %v176 = vld [vmem:[#allocation3 + $0x130] sm:$0xff]
    %v177 = vld [vmem:[#allocation3 + $0x138] sm:$0xff]
    %v178 = vld [vmem:[#allocation3 + $0x140] sm:$0xff]
    %v179 = vld [vmem:[#allocation3 + $0x148] sm:$0xff]
    %v180 = vld [vmem:[#allocation3 + $0x150] sm:$0xff]
    %v181 = vld [vmem:[#allocation3 + $0x158] sm:$0xff]
    %v182 = vld [vmem:[#allocation3 + $0x160] sm:$0xff]
    %v183 = vld [vmem:[#allocation3 + $0x168] sm:$0xff]
    %v184 = vld [vmem:[#allocation3 + $0x170] sm:$0xff]
    %v185 = vld [vmem:[#allocation3 + $0x178] sm:$0xff]
    %v186 = vld [vmem:[#allocation3 + $0x180] sm:$0xff]
    %v187 = vld [vmem:[#allocation3 + $0x188] sm:$0xff]
    %v188 = vld [vmem:[#allocation3 + $0x190] sm:$0xff]
    %v189 = vld [vmem:[#allocation3 + $0x198] sm:$0xff]
    %v190 = vld [vmem:[#allocation3 + $0x1a0] sm:$0xff]
    %v191 = vld [vmem:[#allocation3 + $0x1a8] sm:$0xff]
    %v192 = vld [vmem:[#allocation3 + $0x1b0] sm:$0xff]
    %v193 = vld [vmem:[#allocation3 + $0x1b8] sm:$0xff]
    %v194 = vld [vmem:[#allocation3 + $0x1c0] sm:$0xff]
    %v195 = vld [vmem:[#allocation3 + $0x1c8] sm:$0xff]
    %v196 = vld [vmem:[#allocation3 + $0x1d0] sm:$0xff]
    %v197 = vld [vmem:[#allocation3 + $0x1d8] sm:$0xff]
    %v198 = vld [vmem:[#allocation3 + $0x1e0] sm:$0xff]
    %v199 = vld [vmem:[#allocation3 + $0x1e8] sm:$0xff]
    %v200 = vld [vmem:[#allocation3 + $0x1f0] sm:$0xff]
    %v201 = vld [vmem:[#allocation3 + $0x1f8] sm:$0xff]
    %v202 = vld [vmem:[#allocation3 + $0x200] sm:$0xff]
    %v203 = vld [vmem:[#allocation3 + $0x208] sm:$0xff]
    %v204 = vld [vmem:[#allocation3 + $0x210] sm:$0xff]
    %v205 = vld [vmem:[#allocation3 + $0x218] sm:$0xff]
    %v206 = vld [vmem:[#allocation3 + $0x220] sm:$0xff]
    %v207 = vld [vmem:[#allocation3 + $0x228] sm:$0xff]
    %v208 = vld [vmem:[#allocation3 + $0x230] sm:$0xff]
    %v209 = vld [vmem:[#allocation3 + $0x238] sm:$0xff]
    %v210 = vld [vmem:[#allocation3 + $0x240] sm:$0xff]
    %v211 = vld [vmem:[#allocation3 + $0x248] sm:$0xff]
    %v212 = vld [vmem:[#allocation3 + $0x250] sm:$0xff]
    %v213 = vld [vmem:[#allocation3 + $0x258] sm:$0xff]
    %v214 = vld [vmem:[#allocation3 + $0x260] sm:$0xff]
    %v215 = vld [vmem:[#allocation3 + $0x268] sm:$0xff]
    %v216 = vld [vmem:[#allocation3 + $0x270] sm:$0xff]
    %v217 = vld [vmem:[#allocation3 + $0x278] sm:$0xff]
    %v218 = vld [vmem:[#allocation3 + $0x280] sm:$0xff]
    %v219 = vld [vmem:[#allocation3 + $0x288] sm:$0xff]
    %v220 = vld [vmem:[#allocation3 + $0x290] sm:$0xff]
    %v221 = vld [vmem:[#allocation3 + $0x298] sm:$0xff]
    %v222 = vld [vmem:[#allocation3 + $0x2a0] sm:$0xff]
    %v223 = vld [vmem:[#allocation3 + $0x2a8] sm:$0xff]
    %v224 = vld [vmem:[#allocation3 + $0x2b0] sm:$0xff]
    %v225 = vld [vmem:[#allocation3 + $0x2b8] sm:$0xff]
    %v226 = vld [vmem:[#allocation3 + $0x2c0] sm:$0xff]
    %v227 = vld [vmem:[#allocation3 + $0x2c8] sm:$0xff]
    %v228 = vld [vmem:[#allocation3 + $0x2d0] sm:$0xff]
    %v229 = vld [vmem:[#allocation3 + $0x2d8] sm:$0xff]
    %v230 = vld [vmem:[#allocation3 + $0x2e0] sm:$0xff]
    %v231 = vld [vmem:[#allocation3 + $0x2e8] sm:$0xff]
    %v232 = vld [vmem:[#allocation3 + $0x2f0] sm:$0xff]
    %v233 = vld [vmem:[#allocation3 + $0x2f8] sm:$0xff]
    %v234 = vld [vmem:[#allocation3 + $0x300] sm:$0xff]
    %v235 = vld [vmem:[#allocation3 + $0x308] sm:$0xff]
    %v236 = vld [vmem:[#allocation3 + $0x310] sm:$0xff]
    %v237 = vld [vmem:[#allocation3 + $0x318] sm:$0xff]
    %v238 = vld [vmem:[#allocation3 + $0x320] sm:$0xff]
    %v239 = vld [vmem:[#allocation3 + $0x328] sm:$0xff]
    %v240 = vld [vmem:[#allocation3 + $0x330] sm:$0xff]
    %v241 = vld [vmem:[#allocation3 + $0x338] sm:$0xff]
    %v242 = vld [vmem:[#allocation3 + $0x340] sm:$0xff]
    %v243 = vld [vmem:[#allocation3 + $0x348] sm:$0xff]
    %v244 = vld [vmem:[#allocation3 + $0x350] sm:$0xff]
    %v245 = vld [vmem:[#allocation3 + $0x358] sm:$0xff]
    %v246 = vld [vmem:[#allocation3 + $0x360] sm:$0xff]
    %v247 = vld [vmem:[#allocation3 + $0x368] sm:$0xff]
    %v248 = vld [vmem:[#allocation3 + $0x370] sm:$0xff]
    %v249 = vld [vmem:[#allocation3 + $0x378] sm:$0xff]
    %v250 = vld [vmem:[#allocation3 + $0x380] sm:$0xff]
    %v251 = vld [vmem:[#allocation3 + $0x388] sm:$0xff]
    %v252 = vld [vmem:[#allocation3 + $0x390] sm:$0xff]
    %v253 = vld [vmem:[#allocation3 + $0x398] sm:$0xff]
    %v254 = vld [vmem:[#allocation3 + $0x3a0] sm:$0xff]
    %v255 = vld [vmem:[#allocation3 + $0x3a8] sm:$0xff]
    %v256 = vld [vmem:[#allocation3 + $0x3b0] sm:$0xff]
    %v257 = vld [vmem:[#allocation3 + $0x3b8] sm:$0xff]
    %v258 = vld [vmem:[#allocation3 + $0x3c0] sm:$0xff]
    %v259 = vld [vmem:[#allocation3 + $0x3c8] sm:$0xff]
    %v260 = vld [vmem:[#allocation3 + $0x3d0] sm:$0xff]
    %v261 = vld [vmem:[#allocation3 + $0x3d8] sm:$0xff]
    %v262 = vld [vmem:[#allocation3 + $0x3e0] sm:$0xff]
    %v263 = vld [vmem:[#allocation3 + $0x3e8] sm:$0xff]
    %v264 = vld [vmem:[#allocation3 + $0x3f0] sm:$0xff]
    %v265 = vld [vmem:[#allocation3 + $0x3f8] sm:$0xff]
    %v266 = vld [vmem:[#allocation5] sm:$0xff]
    %v268 = vlaneseq
    %v269 = vshrl.u32 %v268, 7
    %v270 = vsub.s32 0, %v269
    %v271 = vrot.slane %v266, %v270
    %v272 = vlaneseq
    %v273 = vshrl.u32 %v272, 7
    %v274 = vsub.s32 1, %v273
    %v275 = vrot.slane %v266, %v274
    %v276 = vlaneseq
    %v277 = vshrl.u32 %v276, 7
    %v278 = vsub.s32 2, %v277
    %v279 = vrot.slane %v266, %v278
    %v280 = vlaneseq
    %v281 = vshrl.u32 %v280, 7
    %v282 = vsub.s32 3, %v281
    %v283 = vrot.slane %v266, %v282
    %v284 = vlaneseq
    %v285 = vshrl.u32 %v284, 7
    %v286 = vsub.s32 4, %v285
    %v287 = vrot.slane %v266, %v286
    %v288 = vlaneseq
    %v289 = vshrl.u32 %v288, 7
    %v290 = vsub.s32 5, %v289
    %v291 = vrot.slane %v266, %v290
    %v292 = vlaneseq
    %v293 = vshrl.u32 %v292, 7
    %v294 = vsub.s32 6, %v293
    %v295 = vrot.slane %v266, %v294
    %v296 = vlaneseq
    %v297 = vshrl.u32 %v296, 7
    %v298 = vsub.s32 7, %v297
    %v299 = vrot.slane %v266, %v298
    %v436 = vunpack.c.l.b16 %v138
    %v437 = vunpack.c.h.b16 %v138
    %v438 = vunpack.c.l.b16 %v139
    %v439 = vunpack.c.h.b16 %v139
    %v440 = vunpack.c.l.b16 %v140
    %v441 = vunpack.c.h.b16 %v140
    %v442 = vunpack.c.l.b16 %v141
    %v443 = vunpack.c.h.b16 %v141
    %v444 = vunpack.c.l.b16 %v142
    %v445 = vunpack.c.h.b16 %v142
    %v446 = vunpack.c.l.b16 %v143
    %v447 = vunpack.c.h.b16 %v143
    %v448 = vunpack.c.l.b16 %v144
    %v449 = vunpack.c.h.b16 %v144
    %v450 = vunpack.c.l.b16 %v145
    %v451 = vunpack.c.h.b16 %v145
    %v452 = vunpack.c.l.b16 %v146
    %v453 = vunpack.c.h.b16 %v146
    %v454 = vunpack.c.l.b16 %v147
    %v455 = vunpack.c.h.b16 %v147
    %v456 = vunpack.c.l.b16 %v148
    %v457 = vunpack.c.h.b16 %v148
    %v458 = vunpack.c.l.b16 %v149
    %v459 = vunpack.c.h.b16 %v149
    %v460 = vunpack.c.l.b16 %v150
    %v461 = vunpack.c.h.b16 %v150
    %v462 = vunpack.c.l.b16 %v151
    %v463 = vunpack.c.h.b16 %v151
    %v464 = vunpack.c.l.b16 %v152
    %v465 = vunpack.c.h.b16 %v152
    %v466 = vunpack.c.l.b16 %v153
    %v467 = vunpack.c.h.b16 %v153
    %v468 = vunpack.c.l.b16 %v154
    %v469 = vunpack.c.h.b16 %v154
    %v470 = vunpack.c.l.b16 %v155
    %v471 = vunpack.c.h.b16 %v155
    %v472 = vunpack.c.l.b16 %v156
    %v473 = vunpack.c.h.b16 %v156
    %v474 = vunpack.c.l.b16 %v157
    %v475 = vunpack.c.h.b16 %v157
    %v476 = vunpack.c.l.b16 %v158
    %v477 = vunpack.c.h.b16 %v158
    %v478 = vunpack.c.l.b16 %v159
    %v479 = vunpack.c.h.b16 %v159
    %v480 = vunpack.c.l.b16 %v160
    %v481 = vunpack.c.h.b16 %v160
    %v482 = vunpack.c.l.b16 %v161
    %v483 = vunpack.c.h.b16 %v161
    %v484 = vunpack.c.l.b16 %v162
    %v485 = vunpack.c.h.b16 %v162
    %v486 = vunpack.c.l.b16 %v163
    %v487 = vunpack.c.h.b16 %v163
    %v488 = vunpack.c.l.b16 %v164
    %v489 = vunpack.c.h.b16 %v164
    %v490 = vunpack.c.l.b16 %v165
    %v491 = vunpack.c.h.b16 %v165
    %v492 = vunpack.c.l.b16 %v166
    %v493 = vunpack.c.h.b16 %v166
    %v494 = vunpack.c.l.b16 %v167
    %v495 = vunpack.c.h.b16 %v167
    %v496 = vunpack.c.l.b16 %v168
    %v497 = vunpack.c.h.b16 %v168
    %v498 = vunpack.c.l.b16 %v169
    %v499 = vunpack.c.h.b16 %v169
    %v500 = vunpack.c.l.b16 %v170
    %v501 = vunpack.c.h.b16 %v170
    %v502 = vunpack.c.l.b16 %v171
    %v503 = vunpack.c.h.b16 %v171
    %v504 = vunpack.c.l.b16 %v172
    %v505 = vunpack.c.h.b16 %v172
    %v506 = vunpack.c.l.b16 %v173
    %v507 = vunpack.c.h.b16 %v173
    %v508 = vunpack.c.l.b16 %v174
    %v509 = vunpack.c.h.b16 %v174
    %v510 = vunpack.c.l.b16 %v175
    %v511 = vunpack.c.h.b16 %v175
    %v512 = vunpack.c.l.b16 %v176
    %v513 = vunpack.c.h.b16 %v176
    %v514 = vunpack.c.l.b16 %v177
    %v515 = vunpack.c.h.b16 %v177
    %v516 = vunpack.c.l.b16 %v178
    %v517 = vunpack.c.h.b16 %v178
    %v518 = vunpack.c.l.b16 %v179
    %v519 = vunpack.c.h.b16 %v179
    %v520 = vunpack.c.l.b16 %v180
    %v521 = vunpack.c.h.b16 %v180
    %v522 = vunpack.c.l.b16 %v181
    %v523 = vunpack.c.h.b16 %v181
    %v524 = vunpack.c.l.b16 %v182
    %v525 = vunpack.c.h.b16 %v182
    %v526 = vunpack.c.l.b16 %v183
    %v527 = vunpack.c.h.b16 %v183
    %v528 = vunpack.c.l.b16 %v184
    %v529 = vunpack.c.h.b16 %v184
    %v530 = vunpack.c.l.b16 %v185
    %v531 = vunpack.c.h.b16 %v185
    %v532 = vunpack.c.l.b16 %v186
    %v533 = vunpack.c.h.b16 %v186
    %v534 = vunpack.c.l.b16 %v187
    %v535 = vunpack.c.h.b16 %v187
    %v536 = vunpack.c.l.b16 %v188
    %v537 = vunpack.c.h.b16 %v188
    %v538 = vunpack.c.l.b16 %v189
    %v539 = vunpack.c.h.b16 %v189
    %v540 = vunpack.c.l.b16 %v190
    %v541 = vunpack.c.h.b16 %v190
    %v542 = vunpack.c.l.b16 %v191
    %v543 = vunpack.c.h.b16 %v191
    %v544 = vunpack.c.l.b16 %v192
    %v545 = vunpack.c.h.b16 %v192
    %v546 = vunpack.c.l.b16 %v193
    %v547 = vunpack.c.h.b16 %v193
    %v548 = vunpack.c.l.b16 %v194
    %v549 = vunpack.c.h.b16 %v194
    %v550 = vunpack.c.l.b16 %v195
    %v551 = vunpack.c.h.b16 %v195
    %v552 = vunpack.c.l.b16 %v196
    %v553 = vunpack.c.h.b16 %v196
    %v554 = vunpack.c.l.b16 %v197
    %v555 = vunpack.c.h.b16 %v197
    %v556 = vunpack.c.l.b16 %v198
    %v557 = vunpack.c.h.b16 %v198
    %v558 = vunpack.c.l.b16 %v199
    %v559 = vunpack.c.h.b16 %v199
    %v560 = vunpack.c.l.b16 %v200
    %v561 = vunpack.c.h.b16 %v200
    %v562 = vunpack.c.l.b16 %v201
    %v563 = vunpack.c.h.b16 %v201
    %v564 = vunpack.c.l.b16 %v202
    %v565 = vunpack.c.h.b16 %v202
    %v566 = vunpack.c.l.b16 %v203
    %v567 = vunpack.c.h.b16 %v203
    %v568 = vunpack.c.l.b16 %v204
    %v569 = vunpack.c.h.b16 %v204
    %v570 = vunpack.c.l.b16 %v205
    %v571 = vunpack.c.h.b16 %v205
    %v572 = vunpack.c.l.b16 %v206
    %v573 = vunpack.c.h.b16 %v206
    %v574 = vunpack.c.l.b16 %v207
    %v575 = vunpack.c.h.b16 %v207
    %v576 = vunpack.c.l.b16 %v208
    %v577 = vunpack.c.h.b16 %v208
    %v578 = vunpack.c.l.b16 %v209
    %v579 = vunpack.c.h.b16 %v209
    %v580 = vunpack.c.l.b16 %v210
    %v581 = vunpack.c.h.b16 %v210
    %v582 = vunpack.c.l.b16 %v211
    %v583 = vunpack.c.h.b16 %v211
    %v584 = vunpack.c.l.b16 %v212
    %v585 = vunpack.c.h.b16 %v212
    %v586 = vunpack.c.l.b16 %v213
    %v587 = vunpack.c.h.b16 %v213
    %v588 = vunpack.c.l.b16 %v214
    %v589 = vunpack.c.h.b16 %v214
    %v590 = vunpack.c.l.b16 %v215
    %v591 = vunpack.c.h.b16 %v215
    %v592 = vunpack.c.l.b16 %v216
    %v593 = vunpack.c.h.b16 %v216
    %v594 = vunpack.c.l.b16 %v217
    %v595 = vunpack.c.h.b16 %v217
    %v596 = vunpack.c.l.b16 %v218
    %v597 = vunpack.c.h.b16 %v218
    %v598 = vunpack.c.l.b16 %v219
    %v599 = vunpack.c.h.b16 %v219
    %v600 = vunpack.c.l.b16 %v220
    %v601 = vunpack.c.h.b16 %v220
    %v602 = vunpack.c.l.b16 %v221
    %v603 = vunpack.c.h.b16 %v221
    %v604 = vunpack.c.l.b16 %v222
    %v605 = vunpack.c.h.b16 %v222
    %v606 = vunpack.c.l.b16 %v223
    %v607 = vunpack.c.h.b16 %v223
    %v608 = vunpack.c.l.b16 %v224
    %v609 = vunpack.c.h.b16 %v224
    %v610 = vunpack.c.l.b16 %v225
    %v611 = vunpack.c.h.b16 %v225
    %v612 = vunpack.c.l.b16 %v226
    %v613 = vunpack.c.h.b16 %v226
    %v614 = vunpack.c.l.b16 %v227
    %v615 = vunpack.c.h.b16 %v227
    %v616 = vunpack.c.l.b16 %v228
    %v617 = vunpack.c.h.b16 %v228
    %v618 = vunpack.c.l.b16 %v229
    %v619 = vunpack.c.h.b16 %v229
    %v620 = vunpack.c.l.b16 %v230
    %v621 = vunpack.c.h.b16 %v230
    %v622 = vunpack.c.l.b16 %v231
    %v623 = vunpack.c.h.b16 %v231
    %v624 = vunpack.c.l.b16 %v232
    %v625 = vunpack.c.h.b16 %v232
    %v626 = vunpack.c.l.b16 %v233
    %v627 = vunpack.c.h.b16 %v233
    %v628 = vunpack.c.l.b16 %v234
    %v629 = vunpack.c.h.b16 %v234
    %v630 = vunpack.c.l.b16 %v235
    %v631 = vunpack.c.h.b16 %v235
    %v632 = vunpack.c.l.b16 %v236
    %v633 = vunpack.c.h.b16 %v236
    %v634 = vunpack.c.l.b16 %v237
    %v635 = vunpack.c.h.b16 %v237
    %v636 = vunpack.c.l.b16 %v238
    %v637 = vunpack.c.h.b16 %v238
    %v638 = vunpack.c.l.b16 %v239
    %v639 = vunpack.c.h.b16 %v239
    %v640 = vunpack.c.l.b16 %v240
    %v641 = vunpack.c.h.b16 %v240
    %v642 = vunpack.c.l.b16 %v241
    %v643 = vunpack.c.h.b16 %v241
    %v644 = vunpack.c.l.b16 %v242
    %v645 = vunpack.c.h.b16 %v242
    %v646 = vunpack.c.l.b16 %v243
    %v647 = vunpack.c.h.b16 %v243
    %v648 = vunpack.c.l.b16 %v244
    %v649 = vunpack.c.h.b16 %v244
    %v650 = vunpack.c.l.b16 %v245
    %v651 = vunpack.c.h.b16 %v245
    %v652 = vunpack.c.l.b16 %v246
    %v653 = vunpack.c.h.b16 %v246
    %v654 = vunpack.c.l.b16 %v247
    %v655 = vunpack.c.h.b16 %v247
    %v656 = vunpack.c.l.b16 %v248
    %v657 = vunpack.c.h.b16 %v248
    %v658 = vunpack.c.l.b16 %v249
    %v659 = vunpack.c.h.b16 %v249
    %v660 = vunpack.c.l.b16 %v250
    %v661 = vunpack.c.h.b16 %v250
    %v662 = vunpack.c.l.b16 %v251
    %v663 = vunpack.c.h.b16 %v251
    %v664 = vunpack.c.l.b16 %v252
    %v665 = vunpack.c.h.b16 %v252
    %v666 = vunpack.c.l.b16 %v253
    %v667 = vunpack.c.h.b16 %v253
    %v668 = vunpack.c.l.b16 %v254
    %v669 = vunpack.c.h.b16 %v254
    %v670 = vunpack.c.l.b16 %v255
    %v671 = vunpack.c.h.b16 %v255
    %v672 = vunpack.c.l.b16 %v256
    %v673 = vunpack.c.h.b16 %v256
    %v674 = vunpack.c.l.b16 %v257
    %v675 = vunpack.c.h.b16 %v257
    %v676 = vunpack.c.l.b16 %v258
    %v677 = vunpack.c.h.b16 %v258
    %v678 = vunpack.c.l.b16 %v259
    %v679 = vunpack.c.h.b16 %v259
    %v680 = vunpack.c.l.b16 %v260
    %v681 = vunpack.c.h.b16 %v260
    %v682 = vunpack.c.l.b16 %v261
    %v683 = vunpack.c.h.b16 %v261
    %v684 = vunpack.c.l.b16 %v262
    %v685 = vunpack.c.h.b16 %v262
    %v686 = vunpack.c.l.b16 %v263
    %v687 = vunpack.c.h.b16 %v263
    %v688 = vunpack.c.l.b16 %v264
    %v689 = vunpack.c.h.b16 %v264
    %v690 = vunpack.c.l.b16 %v265
    %v691 = vunpack.c.h.b16 %v265
    %v692 = vpack.c.b16 %v444, %v436
    %v693 = vpack.c.b16 %v445, %v437
    %v694 = vpack.c.b16 %v446, %v438
    %v695 = vpack.c.b16 %v447, %v439
    %v696 = vpack.c.b16 %v448, %v440
    %v697 = vpack.c.b16 %v449, %v441
    %v698 = vpack.c.b16 %v450, %v442
    %v699 = vpack.c.b16 %v451, %v443
    %v700 = vpack.c.b16 %v460, %v452
    %v701 = vpack.c.b16 %v461, %v453
    %v702 = vpack.c.b16 %v462, %v454
    %v703 = vpack.c.b16 %v463, %v455
    %v704 = vpack.c.b16 %v464, %v456
    %v705 = vpack.c.b16 %v465, %v457
    %v706 = vpack.c.b16 %v466, %v458
    %v707 = vpack.c.b16 %v467, %v459
    %v708 = vpack.c.b16 %v476, %v468
    %v709 = vpack.c.b16 %v477, %v469
    %v710 = vpack.c.b16 %v478, %v470
    %v711 = vpack.c.b16 %v479, %v471
    %v712 = vpack.c.b16 %v480, %v472
    %v713 = vpack.c.b16 %v481, %v473
    %v714 = vpack.c.b16 %v482, %v474
    %v715 = vpack.c.b16 %v483, %v475
    %v716 = vpack.c.b16 %v492, %v484
    %v717 = vpack.c.b16 %v493, %v485
    %v718 = vpack.c.b16 %v494, %v486
    %v719 = vpack.c.b16 %v495, %v487
    %v720 = vpack.c.b16 %v496, %v488
    %v721 = vpack.c.b16 %v497, %v489
    %v722 = vpack.c.b16 %v498, %v490
    %v723 = vpack.c.b16 %v499, %v491
    %v724 = vpack.c.b16 %v508, %v500
    %v725 = vpack.c.b16 %v509, %v501
    %v726 = vpack.c.b16 %v510, %v502
    %v727 = vpack.c.b16 %v511, %v503
    %v728 = vpack.c.b16 %v512, %v504
    %v729 = vpack.c.b16 %v513, %v505
    %v730 = vpack.c.b16 %v514, %v506
    %v731 = vpack.c.b16 %v515, %v507
    %v732 = vpack.c.b16 %v524, %v516
    %v733 = vpack.c.b16 %v525, %v517
    %v734 = vpack.c.b16 %v526, %v518
    %v735 = vpack.c.b16 %v527, %v519
    %v736 = vpack.c.b16 %v528, %v520
    %v737 = vpack.c.b16 %v529, %v521
    %v738 = vpack.c.b16 %v530, %v522
    %v739 = vpack.c.b16 %v531, %v523
    %v740 = vpack.c.b16 %v540, %v532
    %v741 = vpack.c.b16 %v541, %v533
    %v742 = vpack.c.b16 %v542, %v534
    %v743 = vpack.c.b16 %v543, %v535
    %v744 = vpack.c.b16 %v544, %v536
    %v745 = vpack.c.b16 %v545, %v537
    %v746 = vpack.c.b16 %v546, %v538
    %v747 = vpack.c.b16 %v547, %v539
    %v748 = vpack.c.b16 %v556, %v548
    %v749 = vpack.c.b16 %v557, %v549
    %v750 = vpack.c.b16 %v558, %v550
    %v751 = vpack.c.b16 %v559, %v551
    %v752 = vpack.c.b16 %v560, %v552
    %v753 = vpack.c.b16 %v561, %v553
    %v754 = vpack.c.b16 %v562, %v554
    %v755 = vpack.c.b16 %v563, %v555
    %v756 = vpack.c.b16 %v572, %v564
    %v757 = vpack.c.b16 %v573, %v565
    %v758 = vpack.c.b16 %v574, %v566
    %v759 = vpack.c.b16 %v575, %v567
    %v760 = vpack.c.b16 %v576, %v568
    %v761 = vpack.c.b16 %v577, %v569
    %v762 = vpack.c.b16 %v578, %v570
    %v763 = vpack.c.b16 %v579, %v571
    %v764 = vpack.c.b16 %v588, %v580
    %v765 = vpack.c.b16 %v589, %v581
    %v766 = vpack.c.b16 %v590, %v582
    %v767 = vpack.c.b16 %v591, %v583
    %v768 = vpack.c.b16 %v592, %v584
    %v769 = vpack.c.b16 %v593, %v585
    %v770 = vpack.c.b16 %v594, %v586
    %v771 = vpack.c.b16 %v595, %v587
    %v772 = vpack.c.b16 %v604, %v596
    %v773 = vpack.c.b16 %v605, %v597
    %v774 = vpack.c.b16 %v606, %v598
    %v775 = vpack.c.b16 %v607, %v599
    %v776 = vpack.c.b16 %v608, %v600
    %v777 = vpack.c.b16 %v609, %v601
    %v778 = vpack.c.b16 %v610, %v602
    %v779 = vpack.c.b16 %v611, %v603
    %v780 = vpack.c.b16 %v620, %v612
    %v781 = vpack.c.b16 %v621, %v613
    %v782 = vpack.c.b16 %v622, %v614
    %v783 = vpack.c.b16 %v623, %v615
    %v784 = vpack.c.b16 %v624, %v616
    %v785 = vpack.c.b16 %v625, %v617
    %v786 = vpack.c.b16 %v626, %v618
    %v787 = vpack.c.b16 %v627, %v619
    %v788 = vpack.c.b16 %v636, %v628
    %v789 = vpack.c.b16 %v637, %v629
    %v790 = vpack.c.b16 %v638, %v630
    %v791 = vpack.c.b16 %v639, %v631
    %v792 = vpack.c.b16 %v640, %v632
    %v793 = vpack.c.b16 %v641, %v633
    %v794 = vpack.c.b16 %v642, %v634
    %v795 = vpack.c.b16 %v643, %v635
    %v796 = vpack.c.b16 %v652, %v644
    %v797 = vpack.c.b16 %v653, %v645
    %v798 = vpack.c.b16 %v654, %v646
    %v799 = vpack.c.b16 %v655, %v647
    %v800 = vpack.c.b16 %v656, %v648
    %v801 = vpack.c.b16 %v657, %v649
    %v802 = vpack.c.b16 %v658, %v650
    %v803 = vpack.c.b16 %v659, %v651
    %v804 = vpack.c.b16 %v668, %v660
    %v805 = vpack.c.b16 %v669, %v661
    %v806 = vpack.c.b16 %v670, %v662
    %v807 = vpack.c.b16 %v671, %v663
    %v808 = vpack.c.b16 %v672, %v664
    %v809 = vpack.c.b16 %v673, %v665
    %v810 = vpack.c.b16 %v674, %v666
    %v811 = vpack.c.b16 %v675, %v667
    %v812 = vpack.c.b16 %v684, %v676
    %v813 = vpack.c.b16 %v685, %v677
    %v814 = vpack.c.b16 %v686, %v678
    %v815 = vpack.c.b16 %v687, %v679
    %v816 = vpack.c.b16 %v688, %v680
    %v817 = vpack.c.b16 %v689, %v681
    %v818 = vpack.c.b16 %v690, %v682
    %v819 = vpack.c.b16 %v691, %v683
    %948 = vmatprep.subr.bf16.mxu0 %v693
    %949 = vmatpush1.bf16.msra.mxu0 %v692
    %950 = vmatprep.subr.bf16.mxu0 %v701
    %951 = vmatpush1.bf16.msra.mxu0 %v700
    %952 = vmatprep.subr.bf16.mxu0 %v709
    %953 = vmatpush1.bf16.msra.mxu0 %v708
    %954 = vmatprep.subr.bf16.mxu0 %v717
    %955 = vmatpush1.bf16.msra.mxu0 %v716
    %956 = vmatprep.subr.bf16.mxu0 %v725
    %957 = vmatpush1.bf16.msra.mxu0 %v724
    %958 = vmatprep.subr.bf16.mxu0 %v733
    %959 = vmatpush1.bf16.msra.mxu0 %v732
    %960 = vmatprep.subr.bf16.mxu0 %v741
    %961 = vmatpush1.bf16.msra.mxu0 %v740
    %962 = vmatprep.subr.bf16.mxu0 %v749
    %963 = vmatpush1.bf16.msra.mxu0 %v748
    %964 = vmatprep.subr.bf16.mxu0 %v757
    %965 = vmatpush1.bf16.msra.mxu0 %v756
    %966 = vmatprep.subr.bf16.mxu0 %v765
    %967 = vmatpush1.bf16.msra.mxu0 %v764
    %968 = vmatprep.subr.bf16.mxu0 %v773
    %969 = vmatpush1.bf16.msra.mxu0 %v772
    %970 = vmatprep.subr.bf16.mxu0 %v781
    %971 = vmatpush1.bf16.msra.mxu0 %v780
    %972 = vmatprep.subr.bf16.mxu0 %v789
    %973 = vmatpush1.bf16.msra.mxu0 %v788
    %974 = vmatprep.subr.bf16.mxu0 %v797
    %975 = vmatpush1.bf16.msra.mxu0 %v796
    %976 = vmatprep.subr.bf16.mxu0 %v805
    %977 = vmatpush1.bf16.msra.mxu0 %v804
    %978 = vmatprep.subr.bf16.mxu0 %v813
    %979 = vmatpush1.bf16.msra.mxu0 %v812
    %980 = vmatprep.mubr.bf16.mxu0 %v123
    %981 = vmatmul.mubr.bf16.gmra.mrb[0].mxu0 %v122
    %v982 = vpop.f32.mrb[0].mxu0
    %v983 = vadd.f32 %v271, %v982
    %v984 = vpop.f32.mrb[0].mxu0
    %v985 = vadd.f32 %v275, %v984
    %v986 = vpop.f32.mrb[0].mxu0
    %v987 = vadd.f32 %v271, %v986
    %v988 = vpop.f32.mrb[0].mxu0
    %v989 = vadd.f32 %v275, %v988
    %990 = vmatprep.mubr.bf16.mxu0 %v125
    %991 = vmatmul.mubr.bf16.gmra.mrb[0].mxu0 %v124
    %v992 = vpop.f32.mrb[0].mxu0
    %v993 = vadd.f32 %v271, %v992
    %v994 = vpop.f32.mrb[0].mxu0
    %v995 = vadd.f32 %v275, %v994
    %v996 = vpop.f32.mrb[0].mxu0
    %v997 = vadd.f32 %v271, %v996
    %v998 = vpop.f32.mrb[0].mxu0
    %v999 = vadd.f32 %v275, %v998
    %1000 = vmatprep.mubr.bf16.mxu0 %v127
    %1001 = vmatmul.mubr.bf16.gmra.mrb[0].mxu0 %v126
    %v1002 = vpop.f32.mrb[0].mxu0
    %v1003 = vadd.f32 %v271, %v1002
    %v1004 = vpop.f32.mrb[0].mxu0
    %v1005 = vadd.f32 %v275, %v1004
    %v1006 = vpop.f32.mrb[0].mxu0
    %v1007 = vadd.f32 %v271, %v1006
    %v1008 = vpop.f32.mrb[0].mxu0
    %v1009 = vadd.f32 %v275, %v1008
    %1010 = vmatprep.mubr.bf16.mxu0 %v129
    %1011 = vmatmul.mubr.bf16.gmra.mrb[0].mxu0 %v128
    %v1012 = vpop.f32.mrb[0].mxu0
    %v1013 = vadd.f32 %v271, %v1012
    %v1014 = vpop.f32.mrb[0].mxu0
    %v1015 = vadd.f32 %v275, %v1014
    %v1016 = vpop.f32.mrb[0].mxu0
    %v1017 = vadd.f32 %v271, %v1016
    %v1018 = vpop.f32.mrb[0].mxu0
    %v1019 = vadd.f32 %v275, %v1018
    %1020 = vmatprep.mubr.bf16.mxu0 %v131
    %1021 = vmatmul.mubr.bf16.gmra.mrb[0].mxu0 %v130
    %v1022 = vpop.f32.mrb[0].mxu0
    %v1023 = vadd.f32 %v271, %v1022
    %v1024 = vpop.f32.mrb[0].mxu0
    %v1025 = vadd.f32 %v275, %v1024
    %v1026 = vpop.f32.mrb[0].mxu0
    %v1027 = vadd.f32 %v271, %v1026
    %v1028 = vpop.f32.mrb[0].mxu0
    %v1029 = vadd.f32 %v275, %v1028
    %1030 = vmatprep.mubr.bf16.mxu0 %v133
    %1031 = vmatmul.mubr.bf16.gmra.mrb[0].mxu0 %v132
    %v1032 = vpop.f32.mrb[0].mxu0
    %v1033 = vadd.f32 %v271, %v1032
    %v1034 = vpop.f32.mrb[0].mxu0
    %v1035 = vadd.f32 %v275, %v1034
    %v1036 = vpop.f32.mrb[0].mxu0
    %v1037 = vadd.f32 %v271, %v1036
    %v1038 = vpop.f32.mrb[0].mxu0
    %v1039 = vadd.f32 %v275, %v1038
    %1040 = vmatprep.mubr.bf16.mxu0 %v135
    %1041 = vmatmul.mubr.bf16.gmra.mrb[0].mxu0 %v134
    %v1042 = vpop.f32.mrb[0].mxu0
    %v1043 = vadd.f32 %v271, %v1042
    %v1044 = vpop.f32.mrb[0].mxu0
    %v1045 = vadd.f32 %v275, %v1044
    %v1046 = vpop.f32.mrb[0].mxu0
    %v1047 = vadd.f32 %v271, %v1046
    %v1048 = vpop.f32.mrb[0].mxu0
    %v1049 = vadd.f32 %v275, %v1048
    %1050 = vmatprep.mubr.bf16.mxu0 %v137
    %1051 = vmatmul.mubr.bf16.gmra.mrb[0].mxu0 %v136
    %v1052 = vpop.f32.mrb[0].mxu0
    %v1053 = vadd.f32 %v271, %v1052
    %v1054 = vpop.f32.mrb[0].mxu0
    %v1055 = vadd.f32 %v275, %v1054
    %v1056 = vpop.f32.mrb[0].mxu0
    %v1057 = vadd.f32 %v271, %v1056
    %v1058 = vpop.f32.mrb[0].mxu0
    %v1059 = vadd.f32 %v275, %v1058
    %1060 = vdwg.mxu0
    %1061 = vmatprep.subr.bf16.mxu0 %v695
    %1062 = vmatpush1.bf16.msra.mxu0 %v694
    %1063 = vmatprep.subr.bf16.mxu0 %v703
    %1064 = vmatpush1.bf16.msra.mxu0 %v702
    %1065 = vmatprep.subr.bf16.mxu0 %v711
    %1066 = vmatpush1.bf16.msra.mxu0 %v710
    %1067 = vmatprep.subr.bf16.mxu0 %v719
    %1068 = vmatpush1.bf16.msra.mxu0 %v718
    %1069 = vmatprep.subr.bf16.mxu0 %v727
    %1070 = vmatpush1.bf16.msra.mxu0 %v726
    %1071 = vmatprep.subr.bf16.mxu0 %v735
    %1072 = vmatpush1.bf16.msra.mxu0 %v734
    %1073 = vmatprep.subr.bf16.mxu0 %v743
    %1074 = vmatpush1.bf16.msra.mxu0 %v742
    %1075 = vmatprep.subr.bf16.mxu0 %v751
    %1076 = vmatpush1.bf16.msra.mxu0 %v750
    %1077 = vmatprep.subr.bf16.mxu0 %v759
    %1078 = vmatpush1.bf16.msra.mxu0 %v758
    %1079 = vmatprep.subr.bf16.mxu0 %v767
    %1080 = vmatpush1.bf16.msra.mxu0 %v766
    %1081 = vmatprep.subr.bf16.mxu0 %v775
    %1082 = vmatpush1.bf16.msra.mxu0 %v774
    %1083 = vmatprep.subr.bf16.mxu0 %v783
    %1084 = vmatpush1.bf16.msra.mxu0 %v782
    %1085 = vmatprep.subr.bf16.mxu0 %v791
    %1086 = vmatpush1.bf16.msra.mxu0 %v790
    %1087 = vmatprep.subr.bf16.mxu0 %v799
    %1088 = vmatpush1.bf16.msra.mxu0 %v798
    %1089 = vmatprep.subr.bf16.mxu0 %v807
    %1090 = vmatpush1.bf16.msra.mxu0 %v806
    %1091 = vmatprep.subr.bf16.mxu0 %v815
    %1092 = vmatpush1.bf16.msra.mxu0 %v814
    %1093 = vmatprep.mubr.bf16.mxu0 %v123
    %1094 = vmatmul.mubr.bf16.gmra.mrb[0].mxu0 %v122
    %v1095 = vpop.f32.mrb[0].mxu0
    %v1096 = vadd.f32 %v279, %v1095
    %v1097 = vpop.f32.mrb[0].mxu0
    %v1098 = vadd.f32 %v283, %v1097
    %v1099 = vpop.f32.mrb[0].mxu0
    %v1100 = vadd.f32 %v279, %v1099
    %v1101 = vpop.f32.mrb[0].mxu0
    %v1102 = vadd.f32 %v283, %v1101
    %1103 = vmatprep.mubr.bf16.mxu0 %v125
    %1104 = vmatmul.mubr.bf16.gmra.mrb[0].mxu0 %v124
    %v1105 = vpop.f32.mrb[0].mxu0
    %v1106 = vadd.f32 %v279, %v1105
    %v1107 = vpop.f32.mrb[0].mxu0
    %v1108 = vadd.f32 %v283, %v1107
    %v1109 = vpop.f32.mrb[0].mxu0
    %v1110 = vadd.f32 %v279, %v1109
    %v1111 = vpop.f32.mrb[0].mxu0
    %v1112 = vadd.f32 %v283, %v1111
    %1113 = vmatprep.mubr.bf16.mxu0 %v127
    %1114 = vmatmul.mubr.bf16.gmra.mrb[0].mxu0 %v126
    %v1115 = vpop.f32.mrb[0].mxu0
    %v1116 = vadd.f32 %v279, %v1115
    %v1117 = vpop.f32.mrb[0].mxu0
    %v1118 = vadd.f32 %v283, %v1117
    %v1119 = vpop.f32.mrb[0].mxu0
    %v1120 = vadd.f32 %v279, %v1119
    %v1121 = vpop.f32.mrb[0].mxu0
    %v1122 = vadd.f32 %v283, %v1121
    %1123 = vmatprep.mubr.bf16.mxu0 %v129
    %1124 = vmatmul.mubr.bf16.gmra.mrb[0].mxu0 %v128
    %v1125 = vpop.f32.mrb[0].mxu0
    %v1126 = vadd.f32 %v279, %v1125
    %v1127 = vpop.f32.mrb[0].mxu0
    %v1128 = vadd.f32 %v283, %v1127
    %v1129 = vpop.f32.mrb[0].mxu0
    %v1130 = vadd.f32 %v279, %v1129
    %v1131 = vpop.f32.mrb[0].mxu0
    %v1132 = vadd.f32 %v283, %v1131
    %1133 = vmatprep.mubr.bf16.mxu0 %v131
    %1134 = vmatmul.mubr.bf16.gmra.mrb[0].mxu0 %v130
    %v1135 = vpop.f32.mrb[0].mxu0
    %v1136 = vadd.f32 %v279, %v1135
    %v1137 = vpop.f32.mrb[0].mxu0
    %v1138 = vadd.f32 %v283, %v1137
    %v1139 = vpop.f32.mrb[0].mxu0
    %v1140 = vadd.f32 %v279, %v1139
    %v1141 = vpop.f32.mrb[0].mxu0
    %v1142 = vadd.f32 %v283, %v1141
    %1143 = vmatprep.mubr.bf16.mxu0 %v133
    %1144 = vmatmul.mubr.bf16.gmra.mrb[0].mxu0 %v132
    %v1145 = vpop.f32.mrb[0].mxu0
    %v1146 = vadd.f32 %v279, %v1145
    %v1147 = vpop.f32.mrb[0].mxu0
    %v1148 = vadd.f32 %v283, %v1147
    %v1149 = vpop.f32.mrb[0].mxu0
    %v1150 = vadd.f32 %v279, %v1149
    %v1151 = vpop.f32.mrb[0].mxu0
    %v1152 = vadd.f32 %v283, %v1151
    %1153 = vmatprep.mubr.bf16.mxu0 %v135
    %1154 = vmatmul.mubr.bf16.gmra.mrb[0].mxu0 %v134
    %v1155 = vpop.f32.mrb[0].mxu0
    %v1156 = vadd.f32 %v279, %v1155
    %v1157 = vpop.f32.mrb[0].mxu0
    %v1158 = vadd.f32 %v283, %v1157
    %v1159 = vpop.f32.mrb[0].mxu0
    %v1160 = vadd.f32 %v279, %v1159
    %v1161 = vpop.f32.mrb[0].mxu0
    %v1162 = vadd.f32 %v283, %v1161
    %1163 = vmatprep.mubr.bf16.mxu0 %v137
    %1164 = vmatmul.mubr.bf16.gmra.mrb[0].mxu0 %v136
    %v1165 = vpop.f32.mrb[0].mxu0
    %v1166 = vadd.f32 %v279, %v1165
    %v1167 = vpop.f32.mrb[0].mxu0
    %v1168 = vadd.f32 %v283, %v1167
    %v1169 = vpop.f32.mrb[0].mxu0
    %v1170 = vadd.f32 %v279, %v1169
    %v1171 = vpop.f32.mrb[0].mxu0
    %v1172 = vadd.f32 %v283, %v1171
    %1173 = vdwg.mxu0
    %1174 = vmatprep.subr.bf16.mxu0 %v697
    %1175 = vmatpush1.bf16.msra.mxu0 %v696
    %1176 = vmatprep.subr.bf16.mxu0 %v705
    %1177 = vmatpush1.bf16.msra.mxu0 %v704
    %1178 = vmatprep.subr.bf16.mxu0 %v713
    %1179 = vmatpush1.bf16.msra.mxu0 %v712
    %1180 = vmatprep.subr.bf16.mxu0 %v721
    %1181 = vmatpush1.bf16.msra.mxu0 %v720
    %1182 = vmatprep.subr.bf16.mxu0 %v729
    %1183 = vmatpush1.bf16.msra.mxu0 %v728
    %1184 = vmatprep.subr.bf16.mxu0 %v737
    %1185 = vmatpush1.bf16.msra.mxu0 %v736
    %1186 = vmatprep.subr.bf16.mxu0 %v745
    %1187 = vmatpush1.bf16.msra.mxu0 %v744
    %1188 = vmatprep.subr.bf16.mxu0 %v753
    %1189 = vmatpush1.bf16.msra.mxu0 %v752
    %1190 = vmatprep.subr.bf16.mxu0 %v761
    %1191 = vmatpush1.bf16.msra.mxu0 %v760
    %1192 = vmatprep.subr.bf16.mxu0 %v769
    %1193 = vmatpush1.bf16.msra.mxu0 %v768
    %1194 = vmatprep.subr.bf16.mxu0 %v777
    %1195 = vmatpush1.bf16.msra.mxu0 %v776
    %1196 = vmatprep.subr.bf16.mxu0 %v785
    %1197 = vmatpush1.bf16.msra.mxu0 %v784
    %1198 = vmatprep.subr.bf16.mxu0 %v793
    %1199 = vmatpush1.bf16.msra.mxu0 %v792
    %1200 = vmatprep.subr.bf16.mxu0 %v801
    %1201 = vmatpush1.bf16.msra.mxu0 %v800
    %1202 = vmatprep.subr.bf16.mxu0 %v809
    %1203 = vmatpush1.bf16.msra.mxu0 %v808
    %1204 = vmatprep.subr.bf16.mxu0 %v817
    %1205 = vmatpush1.bf16.msra.mxu0 %v816
    %1206 = vmatprep.mubr.bf16.mxu0 %v123
    %1207 = vmatmul.mubr.bf16.gmra.mrb[0].mxu0 %v122
    %v1208 = vpop.f32.mrb[0].mxu0
    %v1209 = vadd.f32 %v287, %v1208
    %v1210 = vpop.f32.mrb[0].mxu0
    %v1211 = vadd.f32 %v291, %v1210
    %v1212 = vpop.f32.mrb[0].mxu0
    %v1213 = vadd.f32 %v287, %v1212
    %v1214 = vpop.f32.mrb[0].mxu0
    %v1215 = vadd.f32 %v291, %v1214
    %1216 = vmatprep.mubr.bf16.mxu0 %v125
    %1217 = vmatmul.mubr.bf16.gmra.mrb[0].mxu0 %v124
    %v1218 = vpop.f32.mrb[0].mxu0
    %v1219 = vadd.f32 %v287, %v1218
    %v1220 = vpop.f32.mrb[0].mxu0
    %v1221 = vadd.f32 %v291, %v1220
    %v1222 = vpop.f32.mrb[0].mxu0
    %v1223 = vadd.f32 %v287, %v1222
    %v1224 = vpop.f32.mrb[0].mxu0
    %v1225 = vadd.f32 %v291, %v1224
    %1226 = vmatprep.mubr.bf16.mxu0 %v127
    %1227 = vmatmul.mubr.bf16.gmra.mrb[0].mxu0 %v126
    %v1228 = vpop.f32.mrb[0].mxu0
    %v1229 = vadd.f32 %v287, %v1228
    %v1230 = vpop.f32.mrb[0].mxu0
    %v1231 = vadd.f32 %v291, %v1230
    %v1232 = vpop.f32.mrb[0].mxu0
    %v1233 = vadd.f32 %v287, %v1232
    %v1234 = vpop.f32.mrb[0].mxu0
    %v1235 = vadd.f32 %v291, %v1234
    %1236 = vmatprep.mubr.bf16.mxu0 %v129
    %1237 = vmatmul.mubr.bf16.gmra.mrb[0].mxu0 %v128
    %v1238 = vpop.f32.mrb[0].mxu0
    %v1239 = vadd.f32 %v287, %v1238
    %v1240 = vpop.f32.mrb[0].mxu0
    %v1241 = vadd.f32 %v291, %v1240
    %v1242 = vpop.f32.mrb[0].mxu0
    %v1243 = vadd.f32 %v287, %v1242
    %v1244 = vpop.f32.mrb[0].mxu0
    %v1245 = vadd.f32 %v291, %v1244
    %1246 = vmatprep.mubr.bf16.mxu0 %v131
    %1247 = vmatmul.mubr.bf16.gmra.mrb[0].mxu0 %v130
    %v1248 = vpop.f32.mrb[0].mxu0
    %v1249 = vadd.f32 %v287, %v1248
    %v1250 = vpop.f32.mrb[0].mxu0
    %v1251 = vadd.f32 %v291, %v1250
    %v1252 = vpop.f32.mrb[0].mxu0
    %v1253 = vadd.f32 %v287, %v1252
    %v1254 = vpop.f32.mrb[0].mxu0
    %v1255 = vadd.f32 %v291, %v1254
    %1256 = vmatprep.mubr.bf16.mxu0 %v133
    %1257 = vmatmul.mubr.bf16.gmra.mrb[0].mxu0 %v132
    %v1258 = vpop.f32.mrb[0].mxu0
    %v1259 = vadd.f32 %v287, %v1258
    %v1260 = vpop.f32.mrb[0].mxu0
    %v1261 = vadd.f32 %v291, %v1260
    %v1262 = vpop.f32.mrb[0].mxu0
    %v1263 = vadd.f32 %v287, %v1262
    %v1264 = vpop.f32.mrb[0].mxu0
    %v1265 = vadd.f32 %v291, %v1264
    %1266 = vmatprep.mubr.bf16.mxu0 %v135
    %1267 = vmatmul.mubr.bf16.gmra.mrb[0].mxu0 %v134
    %v1268 = vpop.f32.mrb[0].mxu0
    %v1269 = vadd.f32 %v287, %v1268
    %v1270 = vpop.f32.mrb[0].mxu0
    %v1271 = vadd.f32 %v291, %v1270
    %v1272 = vpop.f32.mrb[0].mxu0
    %v1273 = vadd.f32 %v287, %v1272
    %v1274 = vpop.f32.mrb[0].mxu0
    %v1275 = vadd.f32 %v291, %v1274
    %1276 = vmatprep.mubr.bf16.mxu0 %v137
    %1277 = vmatmul.mubr.bf16.gmra.mrb[0].mxu0 %v136
    %v1278 = vpop.f32.mrb[0].mxu0
    %v1279 = vadd.f32 %v287, %v1278
    %v1280 = vpop.f32.mrb[0].mxu0
    %v1281 = vadd.f32 %v291, %v1280
    %v1282 = vpop.f32.mrb[0].mxu0
    %v1283 = vadd.f32 %v287, %v1282
    %v1284 = vpop.f32.mrb[0].mxu0
    %v1285 = vadd.f32 %v291, %v1284
    %1286 = vdwg.mxu0
    %1287 = vmatprep.subr.bf16.mxu0 %v699
    %1288 = vmatpush1.bf16.msra.mxu0 %v698
    %1289 = vmatprep.subr.bf16.mxu0 %v707
    %1290 = vmatpush1.bf16.msra.mxu0 %v706
    %1291 = vmatprep.subr.bf16.mxu0 %v715
    %1292 = vmatpush1.bf16.msra.mxu0 %v714
    %1293 = vmatprep.subr.bf16.mxu0 %v723
    %1294 = vmatpush1.bf16.msra.mxu0 %v722
    %1295 = vmatprep.subr.bf16.mxu0 %v731
    %1296 = vmatpush1.bf16.msra.mxu0 %v730
    %1297 = vmatprep.subr.bf16.mxu0 %v739
    %1298 = vmatpush1.bf16.msra.mxu0 %v738
    %1299 = vmatprep.subr.bf16.mxu0 %v747
    %1300 = vmatpush1.bf16.msra.mxu0 %v746
    %1301 = vmatprep.subr.bf16.mxu0 %v755
    %1302 = vmatpush1.bf16.msra.mxu0 %v754
    %1303 = vmatprep.subr.bf16.mxu0 %v763
    %1304 = vmatpush1.bf16.msra.mxu0 %v762
    %1305 = vmatprep.subr.bf16.mxu0 %v771
    %1306 = vmatpush1.bf16.msra.mxu0 %v770
    %1307 = vmatprep.subr.bf16.mxu0 %v779
    %1308 = vmatpush1.bf16.msra.mxu0 %v778
    %1309 = vmatprep.subr.bf16.mxu0 %v787
    %1310 = vmatpush1.bf16.msra.mxu0 %v786
    %1311 = vmatprep.subr.bf16.mxu0 %v795
    %1312 = vmatpush1.bf16.msra.mxu0 %v794
    %1313 = vmatprep.subr.bf16.mxu0 %v803
    %1314 = vmatpush1.bf16.msra.mxu0 %v802
    %1315 = vmatprep.subr.bf16.mxu0 %v811
    %1316 = vmatpush1.bf16.msra.mxu0 %v810
    %1317 = vmatprep.subr.bf16.mxu0 %v819
    %1318 = vmatpush1.bf16.msra.mxu0 %v818
    %1319 = vmatprep.mubr.bf16.mxu0 %v123
    %1320 = vmatmul.mubr.bf16.gmra.mrb[0].mxu0 %v122
    %v1321 = vpop.f32.mrb[0].mxu0
    %v1322 = vadd.f32 %v295, %v1321
    %v1323 = vpop.f32.mrb[0].mxu0
    %v1324 = vadd.f32 %v299, %v1323
    %v1325 = vpop.f32.mrb[0].mxu0
    %v1326 = vadd.f32 %v295, %v1325
    %v1327 = vpop.f32.mrb[0].mxu0
    %v1328 = vadd.f32 %v299, %v1327
    %1329 = vmatprep.mubr.bf16.mxu0 %v125
    %1330 = vmatmul.mubr.bf16.gmra.mrb[0].mxu0 %v124
    %v1331 = vpop.f32.mrb[0].mxu0
    %v1332 = vadd.f32 %v295, %v1331
    %v1333 = vpop.f32.mrb[0].mxu0
    %v1334 = vadd.f32 %v299, %v1333
    %v1335 = vpop.f32.mrb[0].mxu0
    %v1336 = vadd.f32 %v295, %v1335
    %v1337 = vpop.f32.mrb[0].mxu0
    %v1338 = vadd.f32 %v299, %v1337
    %1339 = vmatprep.mubr.bf16.mxu0 %v127
    %1340 = vmatmul.mubr.bf16.gmra.mrb[0].mxu0 %v126
    %v1341 = vpop.f32.mrb[0].mxu0
    %v1342 = vadd.f32 %v295, %v1341
    %v1343 = vpop.f32.mrb[0].mxu0
    %v1344 = vadd.f32 %v299, %v1343
    %v1345 = vpop.f32.mrb[0].mxu0
    %v1346 = vadd.f32 %v295, %v1345
    %v1347 = vpop.f32.mrb[0].mxu0
    %v1348 = vadd.f32 %v299, %v1347
    %1349 = vmatprep.mubr.bf16.mxu0 %v129
    %1350 = vmatmul.mubr.bf16.gmra.mrb[0].mxu0 %v128
    %v1351 = vpop.f32.mrb[0].mxu0
    %v1352 = vadd.f32 %v295, %v1351
    %v1353 = vpop.f32.mrb[0].mxu0
    %v1354 = vadd.f32 %v299, %v1353
    %v1355 = vpop.f32.mrb[0].mxu0
    %v1356 = vadd.f32 %v295, %v1355
    %v1357 = vpop.f32.mrb[0].mxu0
    %v1358 = vadd.f32 %v299, %v1357
    %1359 = vmatprep.mubr.bf16.mxu0 %v131
    %1360 = vmatmul.mubr.bf16.gmra.mrb[0].mxu0 %v130
    %v1361 = vpop.f32.mrb[0].mxu0
    %v1362 = vadd.f32 %v295, %v1361
    %v1363 = vpop.f32.mrb[0].mxu0
    %v1364 = vadd.f32 %v299, %v1363
    %v1365 = vpop.f32.mrb[0].mxu0
    %v1366 = vadd.f32 %v295, %v1365
    %v1367 = vpop.f32.mrb[0].mxu0
    %v1368 = vadd.f32 %v299, %v1367
    %1369 = vmatprep.mubr.bf16.mxu0 %v133
    %1370 = vmatmul.mubr.bf16.gmra.mrb[0].mxu0 %v132
    %v1371 = vpop.f32.mrb[0].mxu0
    %v1372 = vadd.f32 %v295, %v1371
    %v1373 = vpop.f32.mrb[0].mxu0
    %v1374 = vadd.f32 %v299, %v1373
    %v1375 = vpop.f32.mrb[0].mxu0
    %v1376 = vadd.f32 %v295, %v1375
    %v1377 = vpop.f32.mrb[0].mxu0
    %v1378 = vadd.f32 %v299, %v1377
    %1379 = vmatprep.mubr.bf16.mxu0 %v135
    %1380 = vmatmul.mubr.bf16.gmra.mrb[0].mxu0 %v134
    %v1381 = vpop.f32.mrb[0].mxu0
    %v1382 = vadd.f32 %v295, %v1381
    %v1383 = vpop.f32.mrb[0].mxu0
    %v1384 = vadd.f32 %v299, %v1383
    %v1385 = vpop.f32.mrb[0].mxu0
    %v1386 = vadd.f32 %v295, %v1385
    %v1387 = vpop.f32.mrb[0].mxu0
    %v1388 = vadd.f32 %v299, %v1387
    %1389 = vmatprep.mubr.bf16.mxu0 %v137
    %1390 = vmatmul.mubr.bf16.gmra.mrb[0].mxu0 %v136
    %v1391 = vpop.f32.mrb[0].mxu0
    %v1392 = vadd.f32 %v295, %v1391
    %v1393 = vpop.f32.mrb[0].mxu0
    %v1394 = vadd.f32 %v299, %v1393
    %v1395 = vpop.f32.mrb[0].mxu0
    %v1396 = vadd.f32 %v295, %v1395
    %v1397 = vpop.f32.mrb[0].mxu0
    %v1398 = vadd.f32 %v299, %v1397
    %1399 = vdwg.mxu0
    %v1400 = vmax.f32 %v983, 0.0
    %v1401 = vmax.f32 %v985, 0.0
    %v1402 = vmax.f32 %v1096, 0.0
    %v1403 = vmax.f32 %v1098, 0.0
    %v1404 = vmax.f32 %v1209, 0.0
    %v1405 = vmax.f32 %v1211, 0.0
    %v1406 = vmax.f32 %v1322, 0.0
    %v1407 = vmax.f32 %v1324, 0.0
    %v1408 = vmax.f32 %v987, 0.0
    %v1409 = vmax.f32 %v989, 0.0
    %v1410 = vmax.f32 %v1100, 0.0
    %v1411 = vmax.f32 %v1102, 0.0
    %v1412 = vmax.f32 %v1213, 0.0
    %v1413 = vmax.f32 %v1215, 0.0
    %v1414 = vmax.f32 %v1326, 0.0
    %v1415 = vmax.f32 %v1328, 0.0
    %v1416 = vmax.f32 %v993, 0.0
    %v1417 = vmax.f32 %v995, 0.0
    %v1418 = vmax.f32 %v1106, 0.0
    %v1419 = vmax.f32 %v1108, 0.0
    %v1420 = vmax.f32 %v1219, 0.0
    %v1421 = vmax.f32 %v1221, 0.0
    %v1422 = vmax.f32 %v1332, 0.0
    %v1423 = vmax.f32 %v1334, 0.0
    %v1424 = vmax.f32 %v997, 0.0
    %v1425 = vmax.f32 %v999, 0.0
    %v1426 = vmax.f32 %v1110, 0.0
    %v1427 = vmax.f32 %v1112, 0.0
    %v1428 = vmax.f32 %v1223, 0.0
    %v1429 = vmax.f32 %v1225, 0.0
    %v1430 = vmax.f32 %v1336, 0.0
    %v1431 = vmax.f32 %v1338, 0.0
    %v1432 = vmax.f32 %v1003, 0.0
    %v1433 = vmax.f32 %v1005, 0.0
    %v1434 = vmax.f32 %v1116, 0.0
    %v1435 = vmax.f32 %v1118, 0.0
    %v1436 = vmax.f32 %v1229, 0.0
    %v1437 = vmax.f32 %v1231, 0.0
    %v1438 = vmax.f32 %v1342, 0.0
    %v1439 = vmax.f32 %v1344, 0.0
    %v1440 = vmax.f32 %v1007, 0.0
    %v1441 = vmax.f32 %v1009, 0.0
    %v1442 = vmax.f32 %v1120, 0.0
    %v1443 = vmax.f32 %v1122, 0.0
    %v1444 = vmax.f32 %v1233, 0.0
    %v1445 = vmax.f32 %v1235, 0.0
    %v1446 = vmax.f32 %v1346, 0.0
    %v1447 = vmax.f32 %v1348, 0.0
    %v1448 = vmax.f32 %v1013, 0.0
    %v1449 = vmax.f32 %v1015, 0.0
    %v1450 = vmax.f32 %v1126, 0.0
    %v1451 = vmax.f32 %v1128, 0.0
    %v1452 = vmax.f32 %v1239, 0.0
    %v1453 = vmax.f32 %v1241, 0.0
    %v1454 = vmax.f32 %v1352, 0.0
    %v1455 = vmax.f32 %v1354, 0.0
    %v1456 = vmax.f32 %v1017, 0.0
    %v1457 = vmax.f32 %v1019, 0.0
    %v1458 = vmax.f32 %v1130, 0.0
    %v1459 = vmax.f32 %v1132, 0.0
    %v1460 = vmax.f32 %v1243, 0.0
    %v1461 = vmax.f32 %v1245, 0.0
    %v1462 = vmax.f32 %v1356, 0.0
    %v1463 = vmax.f32 %v1358, 0.0
    %v1464 = vmax.f32 %v1023, 0.0
    %v1465 = vmax.f32 %v1025, 0.0
    %v1466 = vmax.f32 %v1136, 0.0
    %v1467 = vmax.f32 %v1138, 0.0
    %v1468 = vmax.f32 %v1249, 0.0
    %v1469 = vmax.f32 %v1251, 0.0
    %v1470 = vmax.f32 %v1362, 0.0
    %v1471 = vmax.f32 %v1364, 0.0
    %v1472 = vmax.f32 %v1027, 0.0
    %v1473 = vmax.f32 %v1029, 0.0
    %v1474 = vmax.f32 %v1140, 0.0
    %v1475 = vmax.f32 %v1142, 0.0
    %v1476 = vmax.f32 %v1253, 0.0
    %v1477 = vmax.f32 %v1255, 0.0
    %v1478 = vmax.f32 %v1366, 0.0
    %v1479 = vmax.f32 %v1368, 0.0
    %v1480 = vmax.f32 %v1033, 0.0
    %v1481 = vmax.f32 %v1035, 0.0
    %v1482 = vmax.f32 %v1146, 0.0
    %v1483 = vmax.f32 %v1148, 0.0
    %v1484 = vmax.f32 %v1259, 0.0
    %v1485 = vmax.f32 %v1261, 0.0
    %v1486 = vmax.f32 %v1372, 0.0
    %v1487 = vmax.f32 %v1374, 0.0
    %v1488 = vmax.f32 %v1037, 0.0
    %v1489 = vmax.f32 %v1039, 0.0
    %v1490 = vmax.f32 %v1150, 0.0
    %v1491 = vmax.f32 %v1152, 0.0
    %v1492 = vmax.f32 %v1263, 0.0
    %v1493 = vmax.f32 %v1265, 0.0
    %v1494 = vmax.f32 %v1376, 0.0
    %v1495 = vmax.f32 %v1378, 0.0
    %v1496 = vmax.f32 %v1043, 0.0
    %v1497 = vmax.f32 %v1045, 0.0
    %v1498 = vmax.f32 %v1156, 0.0
    %v1499 = vmax.f32 %v1158, 0.0
    %v1500 = vmax.f32 %v1269, 0.0
    %v1501 = vmax.f32 %v1271, 0.0
    %v1502 = vmax.f32 %v1382, 0.0
    %v1503 = vmax.f32 %v1384, 0.0
    %v1504 = vmax.f32 %v1047, 0.0
    %v1505 = vmax.f32 %v1049, 0.0
    %v1506 = vmax.f32 %v1160, 0.0
    %v1507 = vmax.f32 %v1162, 0.0
    %v1508 = vmax.f32 %v1273, 0.0
    %v1509 = vmax.f32 %v1275, 0.0
    %v1510 = vmax.f32 %v1386, 0.0
    %v1511 = vmax.f32 %v1388, 0.0
    %v1512 = vmax.f32 %v1053, 0.0
    %v1513 = vmax.f32 %v1055, 0.0
    %v1514 = vmax.f32 %v1166, 0.0
    %v1515 = vmax.f32 %v1168, 0.0
    %v1516 = vmax.f32 %v1279, 0.0
    %v1517 = vmax.f32 %v1281, 0.0
    %v1518 = vmax.f32 %v1392, 0.0
    %v1519 = vmax.f32 %v1394, 0.0
    %v1520 = vmax.f32 %v1057, 0.0
    %v1521 = vmax.f32 %v1059, 0.0
    %v1522 = vmax.f32 %v1170, 0.0
    %v1523 = vmax.f32 %v1172, 0.0
    %v1524 = vmax.f32 %v1283, 0.0
    %v1525 = vmax.f32 %v1285, 0.0
    %v1526 = vmax.f32 %v1396, 0.0
    %v1527 = vmax.f32 %v1398, 0.0
    %v1528 = vpack.c.bf16 %v1408, %v1400
    %v1529 = vpack.c.bf16 %v1409, %v1401
    %v1530 = vpack.c.bf16 %v1410, %v1402
    %v1531 = vpack.c.bf16 %v1411, %v1403
    %v1532 = vpack.c.bf16 %v1412, %v1404
    %v1533 = vpack.c.bf16 %v1413, %v1405
    %v1534 = vpack.c.bf16 %v1414, %v1406
    %v1535 = vpack.c.bf16 %v1415, %v1407
    %v1536 = vpack.c.bf16 %v1424, %v1416
    %v1537 = vpack.c.bf16 %v1425, %v1417
    %v1538 = vpack.c.bf16 %v1426, %v1418
    %v1539 = vpack.c.bf16 %v1427, %v1419
    %v1540 = vpack.c.bf16 %v1428, %v1420
    %v1541 = vpack.c.bf16 %v1429, %v1421
    %v1542 = vpack.c.bf16 %v1430, %v1422
    %v1543 = vpack.c.bf16 %v1431, %v1423
    %v1544 = vpack.c.bf16 %v1440, %v1432
    %v1545 = vpack.c.bf16 %v1441, %v1433
    %v1546 = vpack.c.bf16 %v1442, %v1434
    %v1547 = vpack.c.bf16 %v1443, %v1435
    %v1548 = vpack.c.bf16 %v1444, %v1436
    %v1549 = vpack.c.bf16 %v1445, %v1437
    %v1550 = vpack.c.bf16 %v1446, %v1438
    %v1551 = vpack.c.bf16 %v1447, %v1439
    %v1552 = vpack.c.bf16 %v1456, %v1448
    %v1553 = vpack.c.bf16 %v1457, %v1449
    %v1554 = vpack.c.bf16 %v1458, %v1450
    %v1555 = vpack.c.bf16 %v1459, %v1451
    %v1556 = vpack.c.bf16 %v1460, %v1452
    %v1557 = vpack.c.bf16 %v1461, %v1453
    %v1558 = vpack.c.bf16 %v1462, %v1454
    %v1559 = vpack.c.bf16 %v1463, %v1455
    %v1560 = vpack.c.bf16 %v1472, %v1464
    %v1561 = vpack.c.bf16 %v1473, %v1465
    %v1562 = vpack.c.bf16 %v1474, %v1466
    %v1563 = vpack.c.bf16 %v1475, %v1467
    %v1564 = vpack.c.bf16 %v1476, %v1468
    %v1565 = vpack.c.bf16 %v1477, %v1469
    %v1566 = vpack.c.bf16 %v1478, %v1470
    %v1567 = vpack.c.bf16 %v1479, %v1471
    %v1568 = vpack.c.bf16 %v1488, %v1480
    %v1569 = vpack.c.bf16 %v1489, %v1481
    %v1570 = vpack.c.bf16 %v1490, %v1482
    %v1571 = vpack.c.bf16 %v1491, %v1483
    %v1572 = vpack.c.bf16 %v1492, %v1484
    %v1573 = vpack.c.bf16 %v1493, %v1485
    %v1574 = vpack.c.bf16 %v1494, %v1486
    %v1575 = vpack.c.bf16 %v1495, %v1487
    %v1576 = vpack.c.bf16 %v1504, %v1496
    %v1577 = vpack.c.bf16 %v1505, %v1497
    %v1578 = vpack.c.bf16 %v1506, %v1498
    %v1579 = vpack.c.bf16 %v1507, %v1499
    %v1580 = vpack.c.bf16 %v1508, %v1500
    %v1581 = vpack.c.bf16 %v1509, %v1501
    %v1582 = vpack.c.bf16 %v1510, %v1502
    %v1583 = vpack.c.bf16 %v1511, %v1503
    %v1584 = vpack.c.bf16 %v1520, %v1512
    %v1585 = vpack.c.bf16 %v1521, %v1513
    %v1586 = vpack.c.bf16 %v1522, %v1514
    %v1587 = vpack.c.bf16 %v1523, %v1515
    %v1588 = vpack.c.bf16 %v1524, %v1516
    %v1589 = vpack.c.bf16 %v1525, %v1517
    %v1590 = vpack.c.bf16 %v1526, %v1518
    %v1591 = vpack.c.bf16 %v1527, %v1519
    %v1592 = vld [vmem:[#allocation7] sm:$0xff]
    %v1593 = vld [vmem:[#allocation7 + $0x8] sm:$0xff]
    %v1594 = vld [vmem:[#allocation7 + $0x10] sm:$0xff]
    %v1595 = vld [vmem:[#allocation7 + $0x18] sm:$0xff]
    %v1596 = vld [vmem:[#allocation7 + $0x20] sm:$0xff]
    %v1597 = vld [vmem:[#allocation7 + $0x28] sm:$0xff]
    %v1598 = vld [vmem:[#allocation7 + $0x30] sm:$0xff]
    %v1599 = vld [vmem:[#allocation7 + $0x38] sm:$0xff]
    %v1600 = vld [vmem:[#allocation7 + $0x40] sm:$0xff]
    %v1601 = vld [vmem:[#allocation7 + $0x48] sm:$0xff]
    %v1602 = vld [vmem:[#allocation7 + $0x50] sm:$0xff]
    %v1603 = vld [vmem:[#allocation7 + $0x58] sm:$0xff]
    %v1604 = vld [vmem:[#allocation7 + $0x60] sm:$0xff]
    %v1605 = vld [vmem:[#allocation7 + $0x68] sm:$0xff]
    %v1606 = vld [vmem:[#allocation7 + $0x70] sm:$0xff]
    %v1607 = vld [vmem:[#allocation7 + $0x78] sm:$0xff]
    %v1608 = vld [vmem:[#allocation7 + $0x80] sm:$0xff]
    %v1609 = vld [vmem:[#allocation7 + $0x88] sm:$0xff]
    %v1610 = vld [vmem:[#allocation7 + $0x90] sm:$0xff]
    %v1611 = vld [vmem:[#allocation7 + $0x98] sm:$0xff]
    %v1612 = vld [vmem:[#allocation7 + $0xa0] sm:$0xff]
    %v1613 = vld [vmem:[#allocation7 + $0xa8] sm:$0xff]
    %v1614 = vld [vmem:[#allocation7 + $0xb0] sm:$0xff]
    %v1615 = vld [vmem:[#allocation7 + $0xb8] sm:$0xff]
    %v1616 = vld [vmem:[#allocation7 + $0xc0] sm:$0xff]
    %v1617 = vld [vmem:[#allocation7 + $0xc8] sm:$0xff]
    %v1618 = vld [vmem:[#allocation7 + $0xd0] sm:$0xff]
    %v1619 = vld [vmem:[#allocation7 + $0xd8] sm:$0xff]
    %v1620 = vld [vmem:[#allocation7 + $0xe0] sm:$0xff]
    %v1621 = vld [vmem:[#allocation7 + $0xe8] sm:$0xff]
    %v1622 = vld [vmem:[#allocation7 + $0xf0] sm:$0xff]
    %v1623 = vld [vmem:[#allocation7 + $0xf8] sm:$0xff]
    %v1624 = vld [vmem:[#allocation7 + $0x100] sm:$0xff]
    %v1625 = vld [vmem:[#allocation7 + $0x108] sm:$0xff]
    %v1626 = vld [vmem:[#allocation7 + $0x110] sm:$0xff]
    %v1627 = vld [vmem:[#allocation7 + $0x118] sm:$0xff]
    %v1628 = vld [vmem:[#allocation7 + $0x120] sm:$0xff]
    %v1629 = vld [vmem:[#allocation7 + $0x128] sm:$0xff]
    %v1630 = vld [vmem:[#allocation7 + $0x130] sm:$0xff]
    %v1631 = vld [vmem:[#allocation7 + $0x138] sm:$0xff]
    %v1632 = vld [vmem:[#allocation7 + $0x140] sm:$0xff]
    %v1633 = vld [vmem:[#allocation7 + $0x148] sm:$0xff]
    %v1634 = vld [vmem:[#allocation7 + $0x150] sm:$0xff]
    %v1635 = vld [vmem:[#allocation7 + $0x158] sm:$0xff]
    %v1636 = vld [vmem:[#allocation7 + $0x160] sm:$0xff]
    %v1637 = vld [vmem:[#allocation7 + $0x168] sm:$0xff]
    %v1638 = vld [vmem:[#allocation7 + $0x170] sm:$0xff]
    %v1639 = vld [vmem:[#allocation7 + $0x178] sm:$0xff]
    %v1640 = vld [vmem:[#allocation7 + $0x180] sm:$0xff]
    %v1641 = vld [vmem:[#allocation7 + $0x188] sm:$0xff]
    %v1642 = vld [vmem:[#allocation7 + $0x190] sm:$0xff]
    %v1643 = vld [vmem:[#allocation7 + $0x198] sm:$0xff]
    %v1644 = vld [vmem:[#allocation7 + $0x1a0] sm:$0xff]
    %v1645 = vld [vmem:[#allocation7 + $0x1a8] sm:$0xff]
    %v1646 = vld [vmem:[#allocation7 + $0x1b0] sm:$0xff]
    %v1647 = vld [vmem:[#allocation7 + $0x1b8] sm:$0xff]
    %v1648 = vld [vmem:[#allocation7 + $0x1c0] sm:$0xff]
    %v1649 = vld [vmem:[#allocation7 + $0x1c8] sm:$0xff]
    %v1650 = vld [vmem:[#allocation7 + $0x1d0] sm:$0xff]
    %v1651 = vld [vmem:[#allocation7 + $0x1d8] sm:$0xff]
    %v1652 = vld [vmem:[#allocation7 + $0x1e0] sm:$0xff]
    %v1653 = vld [vmem:[#allocation7 + $0x1e8] sm:$0xff]
    %v1654 = vld [vmem:[#allocation7 + $0x1f0] sm:$0xff]
    %v1655 = vld [vmem:[#allocation7 + $0x1f8] sm:$0xff]
    %v1656 = vld [vmem:[#allocation7 + $0x200] sm:$0xff]
    %v1657 = vld [vmem:[#allocation7 + $0x208] sm:$0xff]
    %v1658 = vld [vmem:[#allocation7 + $0x210] sm:$0xff]
    %v1659 = vld [vmem:[#allocation7 + $0x218] sm:$0xff]
    %v1660 = vld [vmem:[#allocation7 + $0x220] sm:$0xff]
    %v1661 = vld [vmem:[#allocation7 + $0x228] sm:$0xff]
    %v1662 = vld [vmem:[#allocation7 + $0x230] sm:$0xff]
    %v1663 = vld [vmem:[#allocation7 + $0x238] sm:$0xff]
    %v1664 = vld [vmem:[#allocation7 + $0x240] sm:$0xff]
    %v1665 = vld [vmem:[#allocation7 + $0x248] sm:$0xff]
    %v1666 = vld [vmem:[#allocation7 + $0x250] sm:$0xff]
    %v1667 = vld [vmem:[#allocation7 + $0x258] sm:$0xff]
    %v1668 = vld [vmem:[#allocation7 + $0x260] sm:$0xff]
    %v1669 = vld [vmem:[#allocation7 + $0x268] sm:$0xff]
    %v1670 = vld [vmem:[#allocation7 + $0x270] sm:$0xff]
    %v1671 = vld [vmem:[#allocation7 + $0x278] sm:$0xff]
    %v1672 = vld [vmem:[#allocation7 + $0x280] sm:$0xff]
    %v1673 = vld [vmem:[#allocation7 + $0x288] sm:$0xff]
    %v1674 = vld [vmem:[#allocation7 + $0x290] sm:$0xff]
    %v1675 = vld [vmem:[#allocation7 + $0x298] sm:$0xff]
    %v1676 = vld [vmem:[#allocation7 + $0x2a0] sm:$0xff]
    %v1677 = vld [vmem:[#allocation7 + $0x2a8] sm:$0xff]
    %v1678 = vld [vmem:[#allocation7 + $0x2b0] sm:$0xff]
    %v1679 = vld [vmem:[#allocation7 + $0x2b8] sm:$0xff]
    %v1680 = vld [vmem:[#allocation7 + $0x2c0] sm:$0xff]
    %v1681 = vld [vmem:[#allocation7 + $0x2c8] sm:$0xff]
    %v1682 = vld [vmem:[#allocation7 + $0x2d0] sm:$0xff]
    %v1683 = vld [vmem:[#allocation7 + $0x2d8] sm:$0xff]
    %v1684 = vld [vmem:[#allocation7 + $0x2e0] sm:$0xff]
    %v1685 = vld [vmem:[#allocation7 + $0x2e8] sm:$0xff]
    %v1686 = vld [vmem:[#allocation7 + $0x2f0] sm:$0xff]
    %v1687 = vld [vmem:[#allocation7 + $0x2f8] sm:$0xff]
    %v1688 = vld [vmem:[#allocation7 + $0x300] sm:$0xff]
    %v1689 = vld [vmem:[#allocation7 + $0x308] sm:$0xff]
    %v1690 = vld [vmem:[#allocation7 + $0x310] sm:$0xff]
    %v1691 = vld [vmem:[#allocation7 + $0x318] sm:$0xff]
    %v1692 = vld [vmem:[#allocation7 + $0x320] sm:$0xff]
    %v1693 = vld [vmem:[#allocation7 + $0x328] sm:$0xff]
    %v1694 = vld [vmem:[#allocation7 + $0x330] sm:$0xff]
    %v1695 = vld [vmem:[#allocation7 + $0x338] sm:$0xff]
    %v1696 = vld [vmem:[#allocation7 + $0x340] sm:$0xff]
    %v1697 = vld [vmem:[#allocation7 + $0x348] sm:$0xff]
    %v1698 = vld [vmem:[#allocation7 + $0x350] sm:$0xff]
    %v1699 = vld [vmem:[#allocation7 + $0x358] sm:$0xff]
    %v1700 = vld [vmem:[#allocation7 + $0x360] sm:$0xff]
    %v1701 = vld [vmem:[#allocation7 + $0x368] sm:$0xff]
    %v1702 = vld [vmem:[#allocation7 + $0x370] sm:$0xff]
    %v1703 = vld [vmem:[#allocation7 + $0x378] sm:$0xff]
    %v1704 = vld [vmem:[#allocation7 + $0x380] sm:$0xff]
    %v1705 = vld [vmem:[#allocation7 + $0x388] sm:$0xff]
    %v1706 = vld [vmem:[#allocation7 + $0x390] sm:$0xff]
    %v1707 = vld [vmem:[#allocation7 + $0x398] sm:$0xff]
    %v1708 = vld [vmem:[#allocation7 + $0x3a0] sm:$0xff]
    %v1709 = vld [vmem:[#allocation7 + $0x3a8] sm:$0xff]
    %v1710 = vld [vmem:[#allocation7 + $0x3b0] sm:$0xff]
    %v1711 = vld [vmem:[#allocation7 + $0x3b8] sm:$0xff]
    %v1712 = vld [vmem:[#allocation7 + $0x3c0] sm:$0xff]
    %v1713 = vld [vmem:[#allocation7 + $0x3c8] sm:$0xff]
    %v1714 = vld [vmem:[#allocation7 + $0x3d0] sm:$0xff]
    %v1715 = vld [vmem:[#allocation7 + $0x3d8] sm:$0xff]
    %v1716 = vld [vmem:[#allocation7 + $0x3e0] sm:$0xff]
    %v1717 = vld [vmem:[#allocation7 + $0x3e8] sm:$0xff]
    %v1718 = vld [vmem:[#allocation7 + $0x3f0] sm:$0xff]
    %v1719 = vld [vmem:[#allocation7 + $0x3f8] sm:$0xff]
    %v1720 = vld [vmem:[#allocation7 + $0x400] sm:$0xff]
    %v1721 = vld [vmem:[#allocation7 + $0x408] sm:$0xff]
    %v1722 = vld [vmem:[#allocation7 + $0x410] sm:$0xff]
    %v1723 = vld [vmem:[#allocation7 + $0x418] sm:$0xff]
    %v1724 = vld [vmem:[#allocation7 + $0x420] sm:$0xff]
    %v1725 = vld [vmem:[#allocation7 + $0x428] sm:$0xff]
    %v1726 = vld [vmem:[#allocation7 + $0x430] sm:$0xff]
    %v1727 = vld [vmem:[#allocation7 + $0x438] sm:$0xff]
    %v1728 = vld [vmem:[#allocation7 + $0x440] sm:$0xff]
    %v1729 = vld [vmem:[#allocation7 + $0x448] sm:$0xff]
    %v1730 = vld [vmem:[#allocation7 + $0x450] sm:$0xff]
    %v1731 = vld [vmem:[#allocation7 + $0x458] sm:$0xff]
    %v1732 = vld [vmem:[#allocation7 + $0x460] sm:$0xff]
    %v1733 = vld [vmem:[#allocation7 + $0x468] sm:$0xff]
    %v1734 = vld [vmem:[#allocation7 + $0x470] sm:$0xff]
    %v1735 = vld [vmem:[#allocation7 + $0x478] sm:$0xff]
    %v1736 = vld [vmem:[#allocation7 + $0x480] sm:$0xff]
    %v1737 = vld [vmem:[#allocation7 + $0x488] sm:$0xff]
    %v1738 = vld [vmem:[#allocation7 + $0x490] sm:$0xff]
    %v1739 = vld [vmem:[#allocation7 + $0x498] sm:$0xff]
    %v1740 = vld [vmem:[#allocation7 + $0x4a0] sm:$0xff]
    %v1741 = vld [vmem:[#allocation7 + $0x4a8] sm:$0xff]
    %v1742 = vld [vmem:[#allocation7 + $0x4b0] sm:$0xff]
    %v1743 = vld [vmem:[#allocation7 + $0x4b8] sm:$0xff]
    %v1744 = vld [vmem:[#allocation7 + $0x4c0] sm:$0xff]
    %v1745 = vld [vmem:[#allocation7 + $0x4c8] sm:$0xff]
    %v1746 = vld [vmem:[#allocation7 + $0x4d0] sm:$0xff]
    %v1747 = vld [vmem:[#allocation7 + $0x4d8] sm:$0xff]
    %v1748 = vld [vmem:[#allocation7 + $0x4e0] sm:$0xff]
    %v1749 = vld [vmem:[#allocation7 + $0x4e8] sm:$0xff]
    %v1750 = vld [vmem:[#allocation7 + $0x4f0] sm:$0xff]
    %v1751 = vld [vmem:[#allocation7 + $0x4f8] sm:$0xff]
    %v1752 = vld [vmem:[#allocation7 + $0x500] sm:$0xff]
    %v1753 = vld [vmem:[#allocation7 + $0x508] sm:$0xff]
    %v1754 = vld [vmem:[#allocation7 + $0x510] sm:$0xff]
    %v1755 = vld [vmem:[#allocation7 + $0x518] sm:$0xff]
    %v1756 = vld [vmem:[#allocation7 + $0x520] sm:$0xff]
    %v1757 = vld [vmem:[#allocation7 + $0x528] sm:$0xff]
    %v1758 = vld [vmem:[#allocation7 + $0x530] sm:$0xff]
    %v1759 = vld [vmem:[#allocation7 + $0x538] sm:$0xff]
    %v1760 = vld [vmem:[#allocation7 + $0x540] sm:$0xff]
    %v1761 = vld [vmem:[#allocation7 + $0x548] sm:$0xff]
    %v1762 = vld [vmem:[#allocation7 + $0x550] sm:$0xff]
    %v1763 = vld [vmem:[#allocation7 + $0x558] sm:$0xff]
    %v1764 = vld [vmem:[#allocation7 + $0x560] sm:$0xff]
    %v1765 = vld [vmem:[#allocation7 + $0x568] sm:$0xff]
    %v1766 = vld [vmem:[#allocation7 + $0x570] sm:$0xff]
    %v1767 = vld [vmem:[#allocation7 + $0x578] sm:$0xff]
    %v1768 = vld [vmem:[#allocation7 + $0x580] sm:$0xff]
    %v1769 = vld [vmem:[#allocation7 + $0x588] sm:$0xff]
    %v1770 = vld [vmem:[#allocation7 + $0x590] sm:$0xff]
    %v1771 = vld [vmem:[#allocation7 + $0x598] sm:$0xff]
    %v1772 = vld [vmem:[#allocation7 + $0x5a0] sm:$0xff]
    %v1773 = vld [vmem:[#allocation7 + $0x5a8] sm:$0xff]
    %v1774 = vld [vmem:[#allocation7 + $0x5b0] sm:$0xff]
    %v1775 = vld [vmem:[#allocation7 + $0x5b8] sm:$0xff]
    %v1776 = vld [vmem:[#allocation7 + $0x5c0] sm:$0xff]
    %v1777 = vld [vmem:[#allocation7 + $0x5c8] sm:$0xff]
    %v1778 = vld [vmem:[#allocation7 + $0x5d0] sm:$0xff]
    %v1779 = vld [vmem:[#allocation7 + $0x5d8] sm:$0xff]
    %v1780 = vld [vmem:[#allocation7 + $0x5e0] sm:$0xff]
    %v1781 = vld [vmem:[#allocation7 + $0x5e8] sm:$0xff]
    %v1782 = vld [vmem:[#allocation7 + $0x5f0] sm:$0xff]
    %v1783 = vld [vmem:[#allocation7 + $0x5f8] sm:$0xff]
    %v1784 = vld [vmem:[#allocation7 + $0x600] sm:$0xff]
    %v1785 = vld [vmem:[#allocation7 + $0x608] sm:$0xff]
    %v1786 = vld [vmem:[#allocation7 + $0x610] sm:$0xff]
    %v1787 = vld [vmem:[#allocation7 + $0x618] sm:$0xff]
    %v1788 = vld [vmem:[#allocation7 + $0x620] sm:$0xff]
    %v1789 = vld [vmem:[#allocation7 + $0x628] sm:$0xff]
    %v1790 = vld [vmem:[#allocation7 + $0x630] sm:$0xff]
    %v1791 = vld [vmem:[#allocation7 + $0x638] sm:$0xff]
    %v1792 = vld [vmem:[#allocation7 + $0x640] sm:$0xff]
    %v1793 = vld [vmem:[#allocation7 + $0x648] sm:$0xff]
    %v1794 = vld [vmem:[#allocation7 + $0x650] sm:$0xff]
    %v1795 = vld [vmem:[#allocation7 + $0x658] sm:$0xff]
    %v1796 = vld [vmem:[#allocation7 + $0x660] sm:$0xff]
    %v1797 = vld [vmem:[#allocation7 + $0x668] sm:$0xff]
    %v1798 = vld [vmem:[#allocation7 + $0x670] sm:$0xff]
    %v1799 = vld [vmem:[#allocation7 + $0x678] sm:$0xff]
    %v1800 = vld [vmem:[#allocation7 + $0x680] sm:$0xff]
    %v1801 = vld [vmem:[#allocation7 + $0x688] sm:$0xff]
    %v1802 = vld [vmem:[#allocation7 + $0x690] sm:$0xff]
    %v1803 = vld [vmem:[#allocation7 + $0x698] sm:$0xff]
    %v1804 = vld [vmem:[#allocation7 + $0x6a0] sm:$0xff]
    %v1805 = vld [vmem:[#allocation7 + $0x6a8] sm:$0xff]
    %v1806 = vld [vmem:[#allocation7 + $0x6b0] sm:$0xff]
    %v1807 = vld [vmem:[#allocation7 + $0x6b8] sm:$0xff]
    %v1808 = vld [vmem:[#allocation7 + $0x6c0] sm:$0xff]
    %v1809 = vld [vmem:[#allocation7 + $0x6c8] sm:$0xff]
    %v1810 = vld [vmem:[#allocation7 + $0x6d0] sm:$0xff]
    %v1811 = vld [vmem:[#allocation7 + $0x6d8] sm:$0xff]
    %v1812 = vld [vmem:[#allocation7 + $0x6e0] sm:$0xff]
    %v1813 = vld [vmem:[#allocation7 + $0x6e8] sm:$0xff]
    %v1814 = vld [vmem:[#allocation7 + $0x6f0] sm:$0xff]
    %v1815 = vld [vmem:[#allocation7 + $0x6f8] sm:$0xff]
    %v1816 = vld [vmem:[#allocation7 + $0x700] sm:$0xff]
    %v1817 = vld [vmem:[#allocation7 + $0x708] sm:$0xff]
    %v1818 = vld [vmem:[#allocation7 + $0x710] sm:$0xff]
    %v1819 = vld [vmem:[#allocation7 + $0x718] sm:$0xff]
    %v1820 = vld [vmem:[#allocation7 + $0x720] sm:$0xff]
    %v1821 = vld [vmem:[#allocation7 + $0x728] sm:$0xff]
    %v1822 = vld [vmem:[#allocation7 + $0x730] sm:$0xff]
    %v1823 = vld [vmem:[#allocation7 + $0x738] sm:$0xff]
    %v1824 = vld [vmem:[#allocation7 + $0x740] sm:$0xff]
    %v1825 = vld [vmem:[#allocation7 + $0x748] sm:$0xff]
    %v1826 = vld [vmem:[#allocation7 + $0x750] sm:$0xff]
    %v1827 = vld [vmem:[#allocation7 + $0x758] sm:$0xff]
    %v1828 = vld [vmem:[#allocation7 + $0x760] sm:$0xff]
    %v1829 = vld [vmem:[#allocation7 + $0x768] sm:$0xff]
    %v1830 = vld [vmem:[#allocation7 + $0x770] sm:$0xff]
    %v1831 = vld [vmem:[#allocation7 + $0x778] sm:$0xff]
    %v1832 = vld [vmem:[#allocation7 + $0x780] sm:$0xff]
    %v1833 = vld [vmem:[#allocation7 + $0x788] sm:$0xff]
    %v1834 = vld [vmem:[#allocation7 + $0x790] sm:$0xff]
    %v1835 = vld [vmem:[#allocation7 + $0x798] sm:$0xff]
    %v1836 = vld [vmem:[#allocation7 + $0x7a0] sm:$0xff]
    %v1837 = vld [vmem:[#allocation7 + $0x7a8] sm:$0xff]
    %v1838 = vld [vmem:[#allocation7 + $0x7b0] sm:$0xff]
    %v1839 = vld [vmem:[#allocation7 + $0x7b8] sm:$0xff]
    %v1840 = vld [vmem:[#allocation7 + $0x7c0] sm:$0xff]
    %v1841 = vld [vmem:[#allocation7 + $0x7c8] sm:$0xff]
    %v1842 = vld [vmem:[#allocation7 + $0x7d0] sm:$0xff]
    %v1843 = vld [vmem:[#allocation7 + $0x7d8] sm:$0xff]
    %v1844 = vld [vmem:[#allocation7 + $0x7e0] sm:$0xff]
    %v1845 = vld [vmem:[#allocation7 + $0x7e8] sm:$0xff]
    %v1846 = vld [vmem:[#allocation7 + $0x7f0] sm:$0xff]
    %v1847 = vld [vmem:[#allocation7 + $0x7f8] sm:$0xff]
    %v1848 = vld [vmem:[#allocation7 + $0x800] sm:$0xff]
    %v1849 = vld [vmem:[#allocation7 + $0x808] sm:$0xff]
    %v1850 = vld [vmem:[#allocation7 + $0x810] sm:$0xff]
    %v1851 = vld [vmem:[#allocation7 + $0x818] sm:$0xff]
    %v1852 = vld [vmem:[#allocation7 + $0x820] sm:$0xff]
    %v1853 = vld [vmem:[#allocation7 + $0x828] sm:$0xff]
    %v1854 = vld [vmem:[#allocation7 + $0x830] sm:$0xff]
    %v1855 = vld [vmem:[#allocation7 + $0x838] sm:$0xff]
    %v1856 = vld [vmem:[#allocation7 + $0x840] sm:$0xff]
    %v1857 = vld [vmem:[#allocation7 + $0x848] sm:$0xff]
    %v1858 = vld [vmem:[#allocation7 + $0x850] sm:$0xff]
    %v1859 = vld [vmem:[#allocation7 + $0x858] sm:$0xff]
    %v1860 = vld [vmem:[#allocation7 + $0x860] sm:$0xff]
    %v1861 = vld [vmem:[#allocation7 + $0x868] sm:$0xff]
    %v1862 = vld [vmem:[#allocation7 + $0x870] sm:$0xff]
    %v1863 = vld [vmem:[#allocation7 + $0x878] sm:$0xff]
    %v1864 = vld [vmem:[#allocation7 + $0x880] sm:$0xff]
    %v1865 = vld [vmem:[#allocation7 + $0x888] sm:$0xff]
    %v1866 = vld [vmem:[#allocation7 + $0x890] sm:$0xff]
    %v1867 = vld [vmem:[#allocation7 + $0x898] sm:$0xff]
    %v1868 = vld [vmem:[#allocation7 + $0x8a0] sm:$0xff]
    %v1869 = vld [vmem:[#allocation7 + $0x8a8] sm:$0xff]
    %v1870 = vld [vmem:[#allocation7 + $0x8b0] sm:$0xff]
    %v1871 = vld [vmem:[#allocation7 + $0x8b8] sm:$0xff]
    %v1872 = vld [vmem:[#allocation7 + $0x8c0] sm:$0xff]
    %v1873 = vld [vmem:[#allocation7 + $0x8c8] sm:$0xff]
    %v1874 = vld [vmem:[#allocation7 + $0x8d0] sm:$0xff]
    %v1875 = vld [vmem:[#allocation7 + $0x8d8] sm:$0xff]
    %v1876 = vld [vmem:[#allocation7 + $0x8e0] sm:$0xff]
    %v1877 = vld [vmem:[#allocation7 + $0x8e8] sm:$0xff]
    %v1878 = vld [vmem:[#allocation7 + $0x8f0] sm:$0xff]
    %v1879 = vld [vmem:[#allocation7 + $0x8f8] sm:$0xff]
    %v1880 = vld [vmem:[#allocation7 + $0x900] sm:$0xff]
    %v1881 = vld [vmem:[#allocation7 + $0x908] sm:$0xff]
    %v1882 = vld [vmem:[#allocation7 + $0x910] sm:$0xff]
    %v1883 = vld [vmem:[#allocation7 + $0x918] sm:$0xff]
    %v1884 = vld [vmem:[#allocation7 + $0x920] sm:$0xff]
    %v1885 = vld [vmem:[#allocation7 + $0x928] sm:$0xff]
    %v1886 = vld [vmem:[#allocation7 + $0x930] sm:$0xff]
    %v1887 = vld [vmem:[#allocation7 + $0x938] sm:$0xff]
    %v1888 = vld [vmem:[#allocation7 + $0x940] sm:$0xff]
    %v1889 = vld [vmem:[#allocation7 + $0x948] sm:$0xff]
    %v1890 = vld [vmem:[#allocation7 + $0x950] sm:$0xff]
    %v1891 = vld [vmem:[#allocation7 + $0x958] sm:$0xff]
    %v1892 = vld [vmem:[#allocation7 + $0x960] sm:$0xff]
    %v1893 = vld [vmem:[#allocation7 + $0x968] sm:$0xff]
    %v1894 = vld [vmem:[#allocation7 + $0x970] sm:$0xff]
    %v1895 = vld [vmem:[#allocation7 + $0x978] sm:$0xff]
    %v1896 = vld [vmem:[#allocation7 + $0x980] sm:$0xff]
    %v1897 = vld [vmem:[#allocation7 + $0x988] sm:$0xff]
    %v1898 = vld [vmem:[#allocation7 + $0x990] sm:$0xff]
    %v1899 = vld [vmem:[#allocation7 + $0x998] sm:$0xff]
    %v1900 = vld [vmem:[#allocation7 + $0x9a0] sm:$0xff]
    %v1901 = vld [vmem:[#allocation7 + $0x9a8] sm:$0xff]
    %v1902 = vld [vmem:[#allocation7 + $0x9b0] sm:$0xff]
    %v1903 = vld [vmem:[#allocation7 + $0x9b8] sm:$0xff]
    %v1904 = vld [vmem:[#allocation7 + $0x9c0] sm:$0xff]
    %v1905 = vld [vmem:[#allocation7 + $0x9c8] sm:$0xff]
    %v1906 = vld [vmem:[#allocation7 + $0x9d0] sm:$0xff]
    %v1907 = vld [vmem:[#allocation7 + $0x9d8] sm:$0xff]
    %v1908 = vld [vmem:[#allocation7 + $0x9e0] sm:$0xff]
    %v1909 = vld [vmem:[#allocation7 + $0x9e8] sm:$0xff]
    %v1910 = vld [vmem:[#allocation7 + $0x9f0] sm:$0xff]
    %v1911 = vld [vmem:[#allocation7 + $0x9f8] sm:$0xff]
    %v1912 = vld [vmem:[#allocation7 + $0xa00] sm:$0xff]
    %v1913 = vld [vmem:[#allocation7 + $0xa08] sm:$0xff]
    %v1914 = vld [vmem:[#allocation7 + $0xa10] sm:$0xff]
    %v1915 = vld [vmem:[#allocation7 + $0xa18] sm:$0xff]
    %v1916 = vld [vmem:[#allocation7 + $0xa20] sm:$0xff]
    %v1917 = vld [vmem:[#allocation7 + $0xa28] sm:$0xff]
    %v1918 = vld [vmem:[#allocation7 + $0xa30] sm:$0xff]
    %v1919 = vld [vmem:[#allocation7 + $0xa38] sm:$0xff]
    %v1920 = vld [vmem:[#allocation7 + $0xa40] sm:$0xff]
    %v1921 = vld [vmem:[#allocation7 + $0xa48] sm:$0xff]
    %v1922 = vld [vmem:[#allocation7 + $0xa50] sm:$0xff]
    %v1923 = vld [vmem:[#allocation7 + $0xa58] sm:$0xff]
    %v1924 = vld [vmem:[#allocation7 + $0xa60] sm:$0xff]
    %v1925 = vld [vmem:[#allocation7 + $0xa68] sm:$0xff]
    %v1926 = vld [vmem:[#allocation7 + $0xa70] sm:$0xff]
    %v1927 = vld [vmem:[#allocation7 + $0xa78] sm:$0xff]
    %v1928 = vld [vmem:[#allocation7 + $0xa80] sm:$0xff]
    %v1929 = vld [vmem:[#allocation7 + $0xa88] sm:$0xff]
    %v1930 = vld [vmem:[#allocation7 + $0xa90] sm:$0xff]
    %v1931 = vld [vmem:[#allocation7 + $0xa98] sm:$0xff]
    %v1932 = vld [vmem:[#allocation7 + $0xaa0] sm:$0xff]
    %v1933 = vld [vmem:[#allocation7 + $0xaa8] sm:$0xff]
    %v1934 = vld [vmem:[#allocation7 + $0xab0] sm:$0xff]
    %v1935 = vld [vmem:[#allocation7 + $0xab8] sm:$0xff]
    %v1936 = vld [vmem:[#allocation7 + $0xac0] sm:$0xff]
    %v1937 = vld [vmem:[#allocation7 + $0xac8] sm:$0xff]
    %v1938 = vld [vmem:[#allocation7 + $0xad0] sm:$0xff]
    %v1939 = vld [vmem:[#allocation7 + $0xad8] sm:$0xff]
    %v1940 = vld [vmem:[#allocation7 + $0xae0] sm:$0xff]
    %v1941 = vld [vmem:[#allocation7 + $0xae8] sm:$0xff]
    %v1942 = vld [vmem:[#allocation7 + $0xaf0] sm:$0xff]
    %v1943 = vld [vmem:[#allocation7 + $0xaf8] sm:$0xff]
    %v1944 = vld [vmem:[#allocation7 + $0xb00] sm:$0xff]
    %v1945 = vld [vmem:[#allocation7 + $0xb08] sm:$0xff]
    %v1946 = vld [vmem:[#allocation7 + $0xb10] sm:$0xff]
    %v1947 = vld [vmem:[#allocation7 + $0xb18] sm:$0xff]
    %v1948 = vld [vmem:[#allocation7 + $0xb20] sm:$0xff]
    %v1949 = vld [vmem:[#allocation7 + $0xb28] sm:$0xff]
    %v1950 = vld [vmem:[#allocation7 + $0xb30] sm:$0xff]
    %v1951 = vld [vmem:[#allocation7 + $0xb38] sm:$0xff]
    %v1952 = vld [vmem:[#allocation7 + $0xb40] sm:$0xff]
    %v1953 = vld [vmem:[#allocation7 + $0xb48] sm:$0xff]
    %v1954 = vld [vmem:[#allocation7 + $0xb50] sm:$0xff]
    %v1955 = vld [vmem:[#allocation7 + $0xb58] sm:$0xff]
    %v1956 = vld [vmem:[#allocation7 + $0xb60] sm:$0xff]
    %v1957 = vld [vmem:[#allocation7 + $0xb68] sm:$0xff]
    %v1958 = vld [vmem:[#allocation7 + $0xb70] sm:$0xff]
    %v1959 = vld [vmem:[#allocation7 + $0xb78] sm:$0xff]
    %v1960 = vld [vmem:[#allocation7 + $0xb80] sm:$0xff]
    %v1961 = vld [vmem:[#allocation7 + $0xb88] sm:$0xff]
    %v1962 = vld [vmem:[#allocation7 + $0xb90] sm:$0xff]
    %v1963 = vld [vmem:[#allocation7 + $0xb98] sm:$0xff]
    %v1964 = vld [vmem:[#allocation7 + $0xba0] sm:$0xff]
    %v1965 = vld [vmem:[#allocation7 + $0xba8] sm:$0xff]
    %v1966 = vld [vmem:[#allocation7 + $0xbb0] sm:$0xff]
    %v1967 = vld [vmem:[#allocation7 + $0xbb8] sm:$0xff]
    %v1968 = vld [vmem:[#allocation7 + $0xbc0] sm:$0xff]
    %v1969 = vld [vmem:[#allocation7 + $0xbc8] sm:$0xff]
    %v1970 = vld [vmem:[#allocation7 + $0xbd0] sm:$0xff]
    %v1971 = vld [vmem:[#allocation7 + $0xbd8] sm:$0xff]
    %v1972 = vld [vmem:[#allocation7 + $0xbe0] sm:$0xff]
    %v1973 = vld [vmem:[#allocation7 + $0xbe8] sm:$0xff]
    %v1974 = vld [vmem:[#allocation7 + $0xbf0] sm:$0xff]
    %v1975 = vld [vmem:[#allocation7 + $0xbf8] sm:$0xff]
    %v1976 = vld [vmem:[#allocation7 + $0xc00] sm:$0xff]
    %v1977 = vld [vmem:[#allocation7 + $0xc08] sm:$0xff]
    %v1978 = vld [vmem:[#allocation7 + $0xc10] sm:$0xff]
    %v1979 = vld [vmem:[#allocation7 + $0xc18] sm:$0xff]
    %v1980 = vld [vmem:[#allocation7 + $0xc20] sm:$0xff]
    %v1981 = vld [vmem:[#allocation7 + $0xc28] sm:$0xff]
    %v1982 = vld [vmem:[#allocation7 + $0xc30] sm:$0xff]
    %v1983 = vld [vmem:[#allocation7 + $0xc38] sm:$0xff]
    %v1984 = vld [vmem:[#allocation7 + $0xc40] sm:$0xff]
    %v1985 = vld [vmem:[#allocation7 + $0xc48] sm:$0xff]
    %v1986 = vld [vmem:[#allocation7 + $0xc50] sm:$0xff]
    %v1987 = vld [vmem:[#allocation7 + $0xc58] sm:$0xff]
    %v1988 = vld [vmem:[#allocation7 + $0xc60] sm:$0xff]
    %v1989 = vld [vmem:[#allocation7 + $0xc68] sm:$0xff]
    %v1990 = vld [vmem:[#allocation7 + $0xc70] sm:$0xff]
    %v1991 = vld [vmem:[#allocation7 + $0xc78] sm:$0xff]
    %v1992 = vld [vmem:[#allocation7 + $0xc80] sm:$0xff]
    %v1993 = vld [vmem:[#allocation7 + $0xc88] sm:$0xff]
    %v1994 = vld [vmem:[#allocation7 + $0xc90] sm:$0xff]
    %v1995 = vld [vmem:[#allocation7 + $0xc98] sm:$0xff]
    %v1996 = vld [vmem:[#allocation7 + $0xca0] sm:$0xff]
    %v1997 = vld [vmem:[#allocation7 + $0xca8] sm:$0xff]
    %v1998 = vld [vmem:[#allocation7 + $0xcb0] sm:$0xff]
    %v1999 = vld [vmem:[#allocation7 + $0xcb8] sm:$0xff]
    %v2000 = vld [vmem:[#allocation7 + $0xcc0] sm:$0xff]
    %v2001 = vld [vmem:[#allocation7 + $0xcc8] sm:$0xff]
    %v2002 = vld [vmem:[#allocation7 + $0xcd0] sm:$0xff]
    %v2003 = vld [vmem:[#allocation7 + $0xcd8] sm:$0xff]
    %v2004 = vld [vmem:[#allocation7 + $0xce0] sm:$0xff]
    %v2005 = vld [vmem:[#allocation7 + $0xce8] sm:$0xff]
    %v2006 = vld [vmem:[#allocation7 + $0xcf0] sm:$0xff]
    %v2007 = vld [vmem:[#allocation7 + $0xcf8] sm:$0xff]
    %v2008 = vld [vmem:[#allocation7 + $0xd00] sm:$0xff]
    %v2009 = vld [vmem:[#allocation7 + $0xd08] sm:$0xff]
    %v2010 = vld [vmem:[#allocation7 + $0xd10] sm:$0xff]
    %v2011 = vld [vmem:[#allocation7 + $0xd18] sm:$0xff]
    %v2012 = vld [vmem:[#allocation7 + $0xd20] sm:$0xff]
    %v2013 = vld [vmem:[#allocation7 + $0xd28] sm:$0xff]
    %v2014 = vld [vmem:[#allocation7 + $0xd30] sm:$0xff]
    %v2015 = vld [vmem:[#allocation7 + $0xd38] sm:$0xff]
    %v2016 = vld [vmem:[#allocation7 + $0xd40] sm:$0xff]
    %v2017 = vld [vmem:[#allocation7 + $0xd48] sm:$0xff]
    %v2018 = vld [vmem:[#allocation7 + $0xd50] sm:$0xff]
    %v2019 = vld [vmem:[#allocation7 + $0xd58] sm:$0xff]
    %v2020 = vld [vmem:[#allocation7 + $0xd60] sm:$0xff]
    %v2021 = vld [vmem:[#allocation7 + $0xd68] sm:$0xff]
    %v2022 = vld [vmem:[#allocation7 + $0xd70] sm:$0xff]
    %v2023 = vld [vmem:[#allocation7 + $0xd78] sm:$0xff]
    %v2024 = vld [vmem:[#allocation7 + $0xd80] sm:$0xff]
    %v2025 = vld [vmem:[#allocation7 + $0xd88] sm:$0xff]
    %v2026 = vld [vmem:[#allocation7 + $0xd90] sm:$0xff]
    %v2027 = vld [vmem:[#allocation7 + $0xd98] sm:$0xff]
    %v2028 = vld [vmem:[#allocation7 + $0xda0] sm:$0xff]
    %v2029 = vld [vmem:[#allocation7 + $0xda8] sm:$0xff]
    %v2030 = vld [vmem:[#allocation7 + $0xdb0] sm:$0xff]
    %v2031 = vld [vmem:[#allocation7 + $0xdb8] sm:$0xff]
    %v2032 = vld [vmem:[#allocation7 + $0xdc0] sm:$0xff]
    %v2033 = vld [vmem:[#allocation7 + $0xdc8] sm:$0xff]
    %v2034 = vld [vmem:[#allocation7 + $0xdd0] sm:$0xff]
    %v2035 = vld [vmem:[#allocation7 + $0xdd8] sm:$0xff]
    %v2036 = vld [vmem:[#allocation7 + $0xde0] sm:$0xff]
    %v2037 = vld [vmem:[#allocation7 + $0xde8] sm:$0xff]
    %v2038 = vld [vmem:[#allocation7 + $0xdf0] sm:$0xff]
    %v2039 = vld [vmem:[#allocation7 + $0xdf8] sm:$0xff]
    %v2040 = vld [vmem:[#allocation7 + $0xe00] sm:$0xff]
    %v2041 = vld [vmem:[#allocation7 + $0xe08] sm:$0xff]
    %v2042 = vld [vmem:[#allocation7 + $0xe10] sm:$0xff]
    %v2043 = vld [vmem:[#allocation7 + $0xe18] sm:$0xff]
    %v2044 = vld [vmem:[#allocation7 + $0xe20] sm:$0xff]
    %v2045 = vld [vmem:[#allocation7 + $0xe28] sm:$0xff]
    %v2046 = vld [vmem:[#allocation7 + $0xe30] sm:$0xff]
    %v2047 = vld [vmem:[#allocation7 + $0xe38] sm:$0xff]
    %v2048 = vld [vmem:[#allocation7 + $0xe40] sm:$0xff]
    %v2049 = vld [vmem:[#allocation7 + $0xe48] sm:$0xff]
    %v2050 = vld [vmem:[#allocation7 + $0xe50] sm:$0xff]
    %v2051 = vld [vmem:[#allocation7 + $0xe58] sm:$0xff]
    %v2052 = vld [vmem:[#allocation7 + $0xe60] sm:$0xff]
    %v2053 = vld [vmem:[#allocation7 + $0xe68] sm:$0xff]
    %v2054 = vld [vmem:[#allocation7 + $0xe70] sm:$0xff]
    %v2055 = vld [vmem:[#allocation7 + $0xe78] sm:$0xff]
    %v2056 = vld [vmem:[#allocation7 + $0xe80] sm:$0xff]
    %v2057 = vld [vmem:[#allocation7 + $0xe88] sm:$0xff]
    %v2058 = vld [vmem:[#allocation7 + $0xe90] sm:$0xff]
    %v2059 = vld [vmem:[#allocation7 + $0xe98] sm:$0xff]
    %v2060 = vld [vmem:[#allocation7 + $0xea0] sm:$0xff]
    %v2061 = vld [vmem:[#allocation7 + $0xea8] sm:$0xff]
    %v2062 = vld [vmem:[#allocation7 + $0xeb0] sm:$0xff]
    %v2063 = vld [vmem:[#allocation7 + $0xeb8] sm:$0xff]
    %v2064 = vld [vmem:[#allocation7 + $0xec0] sm:$0xff]
    %v2065 = vld [vmem:[#allocation7 + $0xec8] sm:$0xff]
    %v2066 = vld [vmem:[#allocation7 + $0xed0] sm:$0xff]
    %v2067 = vld [vmem:[#allocation7 + $0xed8] sm:$0xff]
    %v2068 = vld [vmem:[#allocation7 + $0xee0] sm:$0xff]
    %v2069 = vld [vmem:[#allocation7 + $0xee8] sm:$0xff]
    %v2070 = vld [vmem:[#allocation7 + $0xef0] sm:$0xff]
    %v2071 = vld [vmem:[#allocation7 + $0xef8] sm:$0xff]
    %v2072 = vld [vmem:[#allocation7 + $0xf00] sm:$0xff]
    %v2073 = vld [vmem:[#allocation7 + $0xf08] sm:$0xff]
    %v2074 = vld [vmem:[#allocation7 + $0xf10] sm:$0xff]
    %v2075 = vld [vmem:[#allocation7 + $0xf18] sm:$0xff]
    %v2076 = vld [vmem:[#allocation7 + $0xf20] sm:$0xff]
    %v2077 = vld [vmem:[#allocation7 + $0xf28] sm:$0xff]
    %v2078 = vld [vmem:[#allocation7 + $0xf30] sm:$0xff]
    %v2079 = vld [vmem:[#allocation7 + $0xf38] sm:$0xff]
    %v2080 = vld [vmem:[#allocation7 + $0xf40] sm:$0xff]
    %v2081 = vld [vmem:[#allocation7 + $0xf48] sm:$0xff]
    %v2082 = vld [vmem:[#allocation7 + $0xf50] sm:$0xff]
    %v2083 = vld [vmem:[#allocation7 + $0xf58] sm:$0xff]
    %v2084 = vld [vmem:[#allocation7 + $0xf60] sm:$0xff]
    %v2085 = vld [vmem:[#allocation7 + $0xf68] sm:$0xff]
    %v2086 = vld [vmem:[#allocation7 + $0xf70] sm:$0xff]
    %v2087 = vld [vmem:[#allocation7 + $0xf78] sm:$0xff]
    %v2088 = vld [vmem:[#allocation7 + $0xf80] sm:$0xff]
    %v2089 = vld [vmem:[#allocation7 + $0xf88] sm:$0xff]
    %v2090 = vld [vmem:[#allocation7 + $0xf90] sm:$0xff]
    %v2091 = vld [vmem:[#allocation7 + $0xf98] sm:$0xff]
    %v2092 = vld [vmem:[#allocation7 + $0xfa0] sm:$0xff]
    %v2093 = vld [vmem:[#allocation7 + $0xfa8] sm:$0xff]
    %v2094 = vld [vmem:[#allocation7 + $0xfb0] sm:$0xff]
    %v2095 = vld [vmem:[#allocation7 + $0xfb8] sm:$0xff]
    %v2096 = vld [vmem:[#allocation7 + $0xfc0] sm:$0xff]
    %v2097 = vld [vmem:[#allocation7 + $0xfc8] sm:$0xff]
    %v2098 = vld [vmem:[#allocation7 + $0xfd0] sm:$0xff]
    %v2099 = vld [vmem:[#allocation7 + $0xfd8] sm:$0xff]
    %v2100 = vld [vmem:[#allocation7 + $0xfe0] sm:$0xff]
    %v2101 = vld [vmem:[#allocation7 + $0xfe8] sm:$0xff]
    %v2102 = vld [vmem:[#allocation7 + $0xff0] sm:$0xff]
    %v2103 = vld [vmem:[#allocation7 + $0xff8] sm:$0xff]
    %v2104 = vld [vmem:[#allocation8] sm:$0xff]
    %v2106 = vlaneseq
    %v2107 = vshrl.u32 %v2106, 7
    %v2108 = vsub.s32 0, %v2107
    %v2109 = vrot.slane %v2104, %v2108
    %v2110 = vlaneseq
    %v2111 = vshrl.u32 %v2110, 7
    %v2112 = vsub.s32 1, %v2111
    %v2113 = vrot.slane %v2104, %v2112
    %v2114 = vlaneseq
    %v2115 = vshrl.u32 %v2114, 7
    %v2116 = vsub.s32 2, %v2115
    %v2117 = vrot.slane %v2104, %v2116
    %v2118 = vlaneseq
    %v2119 = vshrl.u32 %v2118, 7
    %v2120 = vsub.s32 3, %v2119
    %v2121 = vrot.slane %v2104, %v2120
    %v2122 = vlaneseq
    %v2123 = vshrl.u32 %v2122, 7
    %v2124 = vsub.s32 4, %v2123
    %v2125 = vrot.slane %v2104, %v2124
    %v2126 = vlaneseq
    %v2127 = vshrl.u32 %v2126, 7
    %v2128 = vsub.s32 5, %v2127
    %v2129 = vrot.slane %v2104, %v2128
    %v2130 = vlaneseq
    %v2131 = vshrl.u32 %v2130, 7
    %v2132 = vsub.s32 6, %v2131
    %v2133 = vrot.slane %v2104, %v2132
    %v2134 = vlaneseq
    %v2135 = vshrl.u32 %v2134, 7
    %v2136 = vsub.s32 7, %v2135
    %v2137 = vrot.slane %v2104, %v2136
    %v2658 = vunpack.c.l.b16 %v1592
    %v2659 = vunpack.c.h.b16 %v1592
    %v2660 = vunpack.c.l.b16 %v1593
    %v2661 = vunpack.c.h.b16 %v1593
    %v2662 = vunpack.c.l.b16 %v1594
    %v2663 = vunpack.c.h.b16 %v1594
    %v2664 = vunpack.c.l.b16 %v1595
    %v2665 = vunpack.c.h.b16 %v1595
    %v2666 = vunpack.c.l.b16 %v1596
    %v2667 = vunpack.c.h.b16 %v1596
    %v2668 = vunpack.c.l.b16 %v1597
    %v2669 = vunpack.c.h.b16 %v1597
    %v2670 = vunpack.c.l.b16 %v1598
    %v2671 = vunpack.c.h.b16 %v1598
    %v2672 = vunpack.c.l.b16 %v1599
    %v2673 = vunpack.c.h.b16 %v1599
    %v2674 = vunpack.c.l.b16 %v1600
    %v2675 = vunpack.c.h.b16 %v1600
    %v2676 = vunpack.c.l.b16 %v1601
    %v2677 = vunpack.c.h.b16 %v1601
    %v2678 = vunpack.c.l.b16 %v1602
    %v2679 = vunpack.c.h.b16 %v1602
    %v2680 = vunpack.c.l.b16 %v1603
    %v2681 = vunpack.c.h.b16 %v1603
    %v2682 = vunpack.c.l.b16 %v1604
    %v2683 = vunpack.c.h.b16 %v1604
    %v2684 = vunpack.c.l.b16 %v1605
    %v2685 = vunpack.c.h.b16 %v1605
    %v2686 = vunpack.c.l.b16 %v1606
    %v2687 = vunpack.c.h.b16 %v1606
    %v2688 = vunpack.c.l.b16 %v1607
    %v2689 = vunpack.c.h.b16 %v1607
    %v2690 = vunpack.c.l.b16 %v1608
    %v2691 = vunpack.c.h.b16 %v1608
    %v2692 = vunpack.c.l.b16 %v1609
    %v2693 = vunpack.c.h.b16 %v1609
    %v2694 = vunpack.c.l.b16 %v1610
    %v2695 = vunpack.c.h.b16 %v1610
    %v2696 = vunpack.c.l.b16 %v1611
    %v2697 = vunpack.c.h.b16 %v1611
    %v2698 = vunpack.c.l.b16 %v1612
    %v2699 = vunpack.c.h.b16 %v1612
    %v2700 = vunpack.c.l.b16 %v1613
    %v2701 = vunpack.c.h.b16 %v1613
    %v2702 = vunpack.c.l.b16 %v1614
    %v2703 = vunpack.c.h.b16 %v1614
    %v2704 = vunpack.c.l.b16 %v1615
    %v2705 = vunpack.c.h.b16 %v1615
    %v2706 = vunpack.c.l.b16 %v1616
    %v2707 = vunpack.c.h.b16 %v1616
    %v2708 = vunpack.c.l.b16 %v1617
    %v2709 = vunpack.c.h.b16 %v1617
    %v2710 = vunpack.c.l.b16 %v1618
    %v2711 = vunpack.c.h.b16 %v1618
    %v2712 = vunpack.c.l.b16 %v1619
    %v2713 = vunpack.c.h.b16 %v1619
    %v2714 = vunpack.c.l.b16 %v1620
    %v2715 = vunpack.c.h.b16 %v1620
    %v2716 = vunpack.c.l.b16 %v1621
    %v2717 = vunpack.c.h.b16 %v1621
    %v2718 = vunpack.c.l.b16 %v1622
    %v2719 = vunpack.c.h.b16 %v1622
    %v2720 = vunpack.c.l.b16 %v1623
    %v2721 = vunpack.c.h.b16 %v1623
    %v2722 = vunpack.c.l.b16 %v1624
    %v2723 = vunpack.c.h.b16 %v1624
    %v2724 = vunpack.c.l.b16 %v1625
    %v2725 = vunpack.c.h.b16 %v1625
    %v2726 = vunpack.c.l.b16 %v1626
    %v2727 = vunpack.c.h.b16 %v1626
    %v2728 = vunpack.c.l.b16 %v1627
    %v2729 = vunpack.c.h.b16 %v1627
    %v2730 = vunpack.c.l.b16 %v1628
    %v2731 = vunpack.c.h.b16 %v1628
    %v2732 = vunpack.c.l.b16 %v1629
    %v2733 = vunpack.c.h.b16 %v1629
    %v2734 = vunpack.c.l.b16 %v1630
    %v2735 = vunpack.c.h.b16 %v1630
    %v2736 = vunpack.c.l.b16 %v1631
    %v2737 = vunpack.c.h.b16 %v1631
    %v2738 = vunpack.c.l.b16 %v1632
    %v2739 = vunpack.c.h.b16 %v1632
    %v2740 = vunpack.c.l.b16 %v1633
    %v2741 = vunpack.c.h.b16 %v1633
    %v2742 = vunpack.c.l.b16 %v1634
    %v2743 = vunpack.c.h.b16 %v1634
    %v2744 = vunpack.c.l.b16 %v1635
    %v2745 = vunpack.c.h.b16 %v1635
    %v2746 = vunpack.c.l.b16 %v1636
    %v2747 = vunpack.c.h.b16 %v1636
    %v2748 = vunpack.c.l.b16 %v1637
    %v2749 = vunpack.c.h.b16 %v1637
    %v2750 = vunpack.c.l.b16 %v1638
    %v2751 = vunpack.c.h.b16 %v1638
    %v2752 = vunpack.c.l.b16 %v1639
    %v2753 = vunpack.c.h.b16 %v1639
    %v2754 = vunpack.c.l.b16 %v1640
    %v2755 = vunpack.c.h.b16 %v1640
    %v2756 = vunpack.c.l.b16 %v1641
    %v2757 = vunpack.c.h.b16 %v1641
    %v2758 = vunpack.c.l.b16 %v1642
    %v2759 = vunpack.c.h.b16 %v1642
    %v2760 = vunpack.c.l.b16 %v1643
    %v2761 = vunpack.c.h.b16 %v1643
    %v2762 = vunpack.c.l.b16 %v1644
    %v2763 = vunpack.c.h.b16 %v1644
    %v2764 = vunpack.c.l.b16 %v1645
    %v2765 = vunpack.c.h.b16 %v1645
    %v2766 = vunpack.c.l.b16 %v1646
    %v2767 = vunpack.c.h.b16 %v1646
    %v2768 = vunpack.c.l.b16 %v1647
    %v2769 = vunpack.c.h.b16 %v1647
    %v2770 = vunpack.c.l.b16 %v1648
    %v2771 = vunpack.c.h.b16 %v1648
    %v2772 = vunpack.c.l.b16 %v1649
    %v2773 = vunpack.c.h.b16 %v1649
    %v2774 = vunpack.c.l.b16 %v1650
    %v2775 = vunpack.c.h.b16 %v1650
    %v2776 = vunpack.c.l.b16 %v1651
    %v2777 = vunpack.c.h.b16 %v1651
    %v2778 = vunpack.c.l.b16 %v1652
    %v2779 = vunpack.c.h.b16 %v1652
    %v2780 = vunpack.c.l.b16 %v1653
    %v2781 = vunpack.c.h.b16 %v1653
    %v2782 = vunpack.c.l.b16 %v1654
    %v2783 = vunpack.c.h.b16 %v1654
    %v2784 = vunpack.c.l.b16 %v1655
    %v2785 = vunpack.c.h.b16 %v1655
    %v2786 = vunpack.c.l.b16 %v1656
    %v2787 = vunpack.c.h.b16 %v1656
    %v2788 = vunpack.c.l.b16 %v1657
    %v2789 = vunpack.c.h.b16 %v1657
    %v2790 = vunpack.c.l.b16 %v1658
    %v2791 = vunpack.c.h.b16 %v1658
    %v2792 = vunpack.c.l.b16 %v1659
    %v2793 = vunpack.c.h.b16 %v1659
    %v2794 = vunpack.c.l.b16 %v1660
    %v2795 = vunpack.c.h.b16 %v1660
    %v2796 = vunpack.c.l.b16 %v1661
    %v2797 = vunpack.c.h.b16 %v1661
    %v2798 = vunpack.c.l.b16 %v1662
    %v2799 = vunpack.c.h.b16 %v1662
    %v2800 = vunpack.c.l.b16 %v1663
    %v2801 = vunpack.c.h.b16 %v1663
    %v2802 = vunpack.c.l.b16 %v1664
    %v2803 = vunpack.c.h.b16 %v1664
    %v2804 = vunpack.c.l.b16 %v1665
    %v2805 = vunpack.c.h.b16 %v1665
    %v2806 = vunpack.c.l.b16 %v1666
    %v2807 = vunpack.c.h.b16 %v1666
    %v2808 = vunpack.c.l.b16 %v1667
    %v2809 = vunpack.c.h.b16 %v1667
    %v2810 = vunpack.c.l.b16 %v1668
    %v2811 = vunpack.c.h.b16 %v1668
    %v2812 = vunpack.c.l.b16 %v1669
    %v2813 = vunpack.c.h.b16 %v1669
    %v2814 = vunpack.c.l.b16 %v1670
    %v2815 = vunpack.c.h.b16 %v1670
    %v2816 = vunpack.c.l.b16 %v1671
    %v2817 = vunpack.c.h.b16 %v1671
    %v2818 = vunpack.c.l.b16 %v1672
    %v2819 = vunpack.c.h.b16 %v1672
    %v2820 = vunpack.c.l.b16 %v1673
    %v2821 = vunpack.c.h.b16 %v1673
    %v2822 = vunpack.c.l.b16 %v1674
    %v2823 = vunpack.c.h.b16 %v1674
    %v2824 = vunpack.c.l.b16 %v1675
    %v2825 = vunpack.c.h.b16 %v1675
    %v2826 = vunpack.c.l.b16 %v1676
    %v2827 = vunpack.c.h.b16 %v1676
    %v2828 = vunpack.c.l.b16 %v1677
    %v2829 = vunpack.c.h.b16 %v1677
    %v2830 = vunpack.c.l.b16 %v1678
    %v2831 = vunpack.c.h.b16 %v1678
    %v2832 = vunpack.c.l.b16 %v1679
    %v2833 = vunpack.c.h.b16 %v1679
    %v2834 = vunpack.c.l.b16 %v1680
    %v2835 = vunpack.c.h.b16 %v1680
    %v2836 = vunpack.c.l.b16 %v1681
    %v2837 = vunpack.c.h.b16 %v1681
    %v2838 = vunpack.c.l.b16 %v1682
    %v2839 = vunpack.c.h.b16 %v1682
    %v2840 = vunpack.c.l.b16 %v1683
    %v2841 = vunpack.c.h.b16 %v1683
    %v2842 = vunpack.c.l.b16 %v1684
    %v2843 = vunpack.c.h.b16 %v1684
    %v2844 = vunpack.c.l.b16 %v1685
    %v2845 = vunpack.c.h.b16 %v1685
    %v2846 = vunpack.c.l.b16 %v1686
    %v2847 = vunpack.c.h.b16 %v1686
    %v2848 = vunpack.c.l.b16 %v1687
    %v2849 = vunpack.c.h.b16 %v1687
    %v2850 = vunpack.c.l.b16 %v1688
    %v2851 = vunpack.c.h.b16 %v1688
    %v2852 = vunpack.c.l.b16 %v1689
    %v2853 = vunpack.c.h.b16 %v1689
    %v2854 = vunpack.c.l.b16 %v1690
    %v2855 = vunpack.c.h.b16 %v1690
    %v2856 = vunpack.c.l.b16 %v1691
    %v2857 = vunpack.c.h.b16 %v1691
    %v2858 = vunpack.c.l.b16 %v1692
    %v2859 = vunpack.c.h.b16 %v1692
    %v2860 = vunpack.c.l.b16 %v1693
    %v2861 = vunpack.c.h.b16 %v1693
    %v2862 = vunpack.c.l.b16 %v1694
    %v2863 = vunpack.c.h.b16 %v1694
    %v2864 = vunpack.c.l.b16 %v1695
    %v2865 = vunpack.c.h.b16 %v1695
    %v2866 = vunpack.c.l.b16 %v1696
    %v2867 = vunpack.c.h.b16 %v1696
    %v2868 = vunpack.c.l.b16 %v1697
    %v2869 = vunpack.c.h.b16 %v1697
    %v2870 = vunpack.c.l.b16 %v1698
    %v2871 = vunpack.c.h.b16 %v1698
    %v2872 = vunpack.c.l.b16 %v1699
    %v2873 = vunpack.c.h.b16 %v1699
    %v2874 = vunpack.c.l.b16 %v1700
    %v2875 = vunpack.c.h.b16 %v1700
    %v2876 = vunpack.c.l.b16 %v1701
    %v2877 = vunpack.c.h.b16 %v1701
    %v2878 = vunpack.c.l.b16 %v1702
    %v2879 = vunpack.c.h.b16 %v1702
    %v2880 = vunpack.c.l.b16 %v1703
    %v2881 = vunpack.c.h.b16 %v1703
    %v2882 = vunpack.c.l.b16 %v1704
    %v2883 = vunpack.c.h.b16 %v1704
    %v2884 = vunpack.c.l.b16 %v1705
    %v2885 = vunpack.c.h.b16 %v1705
    %v2886 = vunpack.c.l.b16 %v1706
    %v2887 = vunpack.c.h.b16 %v1706
    %v2888 = vunpack.c.l.b16 %v1707
    %v2889 = vunpack.c.h.b16 %v1707
    %v2890 = vunpack.c.l.b16 %v1708
    %v2891 = vunpack.c.h.b16 %v1708
    %v2892 = vunpack.c.l.b16 %v1709
    %v2893 = vunpack.c.h.b16 %v1709
    %v2894 = vunpack.c.l.b16 %v1710
    %v2895 = vunpack.c.h.b16 %v1710
    %v2896 = vunpack.c.l.b16 %v1711
    %v2897 = vunpack.c.h.b16 %v1711
    %v2898 = vunpack.c.l.b16 %v1712
    %v2899 = vunpack.c.h.b16 %v1712
    %v2900 = vunpack.c.l.b16 %v1713
    %v2901 = vunpack.c.h.b16 %v1713
    %v2902 = vunpack.c.l.b16 %v1714
    %v2903 = vunpack.c.h.b16 %v1714
    %v2904 = vunpack.c.l.b16 %v1715
    %v2905 = vunpack.c.h.b16 %v1715
    %v2906 = vunpack.c.l.b16 %v1716
    %v2907 = vunpack.c.h.b16 %v1716
    %v2908 = vunpack.c.l.b16 %v1717
    %v2909 = vunpack.c.h.b16 %v1717
    %v2910 = vunpack.c.l.b16 %v1718
    %v2911 = vunpack.c.h.b16 %v1718
    %v2912 = vunpack.c.l.b16 %v1719
    %v2913 = vunpack.c.h.b16 %v1719
    %v2914 = vunpack.c.l.b16 %v1720
    %v2915 = vunpack.c.h.b16 %v1720
    %v2916 = vunpack.c.l.b16 %v1721
    %v2917 = vunpack.c.h.b16 %v1721
    %v2918 = vunpack.c.l.b16 %v1722
    %v2919 = vunpack.c.h.b16 %v1722
    %v2920 = vunpack.c.l.b16 %v1723
    %v2921 = vunpack.c.h.b16 %v1723
    %v2922 = vunpack.c.l.b16 %v1724
    %v2923 = vunpack.c.h.b16 %v1724
    %v2924 = vunpack.c.l.b16 %v1725
    %v2925 = vunpack.c.h.b16 %v1725
    %v2926 = vunpack.c.l.b16 %v1726
    %v2927 = vunpack.c.h.b16 %v1726
    %v2928 = vunpack.c.l.b16 %v1727
    %v2929 = vunpack.c.h.b16 %v1727
    %v2930 = vunpack.c.l.b16 %v1728
    %v2931 = vunpack.c.h.b16 %v1728
    %v2932 = vunpack.c.l.b16 %v1729
    %v2933 = vunpack.c.h.b16 %v1729
    %v2934 = vunpack.c.l.b16 %v1730
    %v2935 = vunpack.c.h.b16 %v1730
    %v2936 = vunpack.c.l.b16 %v1731
    %v2937 = vunpack.c.h.b16 %v1731
    %v2938 = vunpack.c.l.b16 %v1732
    %v2939 = vunpack.c.h.b16 %v1732
    %v2940 = vunpack.c.l.b16 %v1733
    %v2941 = vunpack.c.h.b16 %v1733
    %v2942 = vunpack.c.l.b16 %v1734
    %v2943 = vunpack.c.h.b16 %v1734
    %v2944 = vunpack.c.l.b16 %v1735
    %v2945 = vunpack.c.h.b16 %v1735
    %v2946 = vunpack.c.l.b16 %v1736
    %v2947 = vunpack.c.h.b16 %v1736
    %v2948 = vunpack.c.l.b16 %v1737
    %v2949 = vunpack.c.h.b16 %v1737
    %v2950 = vunpack.c.l.b16 %v1738
    %v2951 = vunpack.c.h.b16 %v1738
    %v2952 = vunpack.c.l.b16 %v1739
    %v2953 = vunpack.c.h.b16 %v1739
    %v2954 = vunpack.c.l.b16 %v1740
    %v2955 = vunpack.c.h.b16 %v1740
    %v2956 = vunpack.c.l.b16 %v1741
    %v2957 = vunpack.c.h.b16 %v1741
    %v2958 = vunpack.c.l.b16 %v1742
    %v2959 = vunpack.c.h.b16 %v1742
    %v2960 = vunpack.c.l.b16 %v1743
    %v2961 = vunpack.c.h.b16 %v1743
    %v2962 = vunpack.c.l.b16 %v1744
    %v2963 = vunpack.c.h.b16 %v1744
    %v2964 = vunpack.c.l.b16 %v1745
    %v2965 = vunpack.c.h.b16 %v1745
    %v2966 = vunpack.c.l.b16 %v1746
    %v2967 = vunpack.c.h.b16 %v1746
    %v2968 = vunpack.c.l.b16 %v1747
    %v2969 = vunpack.c.h.b16 %v1747
    %v2970 = vunpack.c.l.b16 %v1748
    %v2971 = vunpack.c.h.b16 %v1748
    %v2972 = vunpack.c.l.b16 %v1749
    %v2973 = vunpack.c.h.b16 %v1749
    %v2974 = vunpack.c.l.b16 %v1750
    %v2975 = vunpack.c.h.b16 %v1750
    %v2976 = vunpack.c.l.b16 %v1751
    %v2977 = vunpack.c.h.b16 %v1751
    %v2978 = vunpack.c.l.b16 %v1752
    %v2979 = vunpack.c.h.b16 %v1752
    %v2980 = vunpack.c.l.b16 %v1753
    %v2981 = vunpack.c.h.b16 %v1753
    %v2982 = vunpack.c.l.b16 %v1754
    %v2983 = vunpack.c.h.b16 %v1754
    %v2984 = vunpack.c.l.b16 %v1755
    %v2985 = vunpack.c.h.b16 %v1755
    %v2986 = vunpack.c.l.b16 %v1756
    %v2987 = vunpack.c.h.b16 %v1756
    %v2988 = vunpack.c.l.b16 %v1757
    %v2989 = vunpack.c.h.b16 %v1757
    %v2990 = vunpack.c.l.b16 %v1758
    %v2991 = vunpack.c.h.b16 %v1758
    %v2992 = vunpack.c.l.b16 %v1759
    %v2993 = vunpack.c.h.b16 %v1759
    %v2994 = vunpack.c.l.b16 %v1760
    %v2995 = vunpack.c.h.b16 %v1760
    %v2996 = vunpack.c.l.b16 %v1761
    %v2997 = vunpack.c.h.b16 %v1761
    %v2998 = vunpack.c.l.b16 %v1762
    %v2999 = vunpack.c.h.b16 %v1762
    %v3000 = vunpack.c.l.b16 %v1763
    %v3001 = vunpack.c.h.b16 %v1763
    %v3002 = vunpack.c.l.b16 %v1764
    %v3003 = vunpack.c.h.b16 %v1764
    %v3004 = vunpack.c.l.b16 %v1765
    %v3005 = vunpack.c.h.b16 %v1765
    %v3006 = vunpack.c.l.b16 %v1766
    %v3007 = vunpack.c.h.b16 %v1766
    %v3008 = vunpack.c.l.b16 %v1767
    %v3009 = vunpack.c.h.b16 %v1767
    %v3010 = vunpack.c.l.b16 %v1768
    %v3011 = vunpack.c.h.b16 %v1768
    %v3012 = vunpack.c.l.b16 %v1769
    %v3013 = vunpack.c.h.b16 %v1769
    %v3014 = vunpack.c.l.b16 %v1770
    %v3015 = vunpack.c.h.b16 %v1770
    %v3016 = vunpack.c.l.b16 %v1771
    %v3017 = vunpack.c.h.b16 %v1771
    %v3018 = vunpack.c.l.b16 %v1772
    %v3019 = vunpack.c.h.b16 %v1772
    %v3020 = vunpack.c.l.b16 %v1773
    %v3021 = vunpack.c.h.b16 %v1773
    %v3022 = vunpack.c.l.b16 %v1774
    %v3023 = vunpack.c.h.b16 %v1774
    %v3024 = vunpack.c.l.b16 %v1775
    %v3025 = vunpack.c.h.b16 %v1775
    %v3026 = vunpack.c.l.b16 %v1776
    %v3027 = vunpack.c.h.b16 %v1776
    %v3028 = vunpack.c.l.b16 %v1777
    %v3029 = vunpack.c.h.b16 %v1777
    %v3030 = vunpack.c.l.b16 %v1778
    %v3031 = vunpack.c.h.b16 %v1778
    %v3032 = vunpack.c.l.b16 %v1779
    %v3033 = vunpack.c.h.b16 %v1779
    %v3034 = vunpack.c.l.b16 %v1780
    %v3035 = vunpack.c.h.b16 %v1780
    %v3036 = vunpack.c.l.b16 %v1781
    %v3037 = vunpack.c.h.b16 %v1781
    %v3038 = vunpack.c.l.b16 %v1782
    %v3039 = vunpack.c.h.b16 %v1782
    %v3040 = vunpack.c.l.b16 %v1783
    %v3041 = vunpack.c.h.b16 %v1783
    %v3042 = vunpack.c.l.b16 %v1784
    %v3043 = vunpack.c.h.b16 %v1784
    %v3044 = vunpack.c.l.b16 %v1785
    %v3045 = vunpack.c.h.b16 %v1785
    %v3046 = vunpack.c.l.b16 %v1786
    %v3047 = vunpack.c.h.b16 %v1786
    %v3048 = vunpack.c.l.b16 %v1787
    %v3049 = vunpack.c.h.b16 %v1787
    %v3050 = vunpack.c.l.b16 %v1788
    %v3051 = vunpack.c.h.b16 %v1788
    %v3052 = vunpack.c.l.b16 %v1789
    %v3053 = vunpack.c.h.b16 %v1789
    %v3054 = vunpack.c.l.b16 %v1790
    %v3055 = vunpack.c.h.b16 %v1790
    %v3056 = vunpack.c.l.b16 %v1791
    %v3057 = vunpack.c.h.b16 %v1791
    %v3058 = vunpack.c.l.b16 %v1792
    %v3059 = vunpack.c.h.b16 %v1792
    %v3060 = vunpack.c.l.b16 %v1793
    %v3061 = vunpack.c.h.b16 %v1793
    %v3062 = vunpack.c.l.b16 %v1794
    %v3063 = vunpack.c.h.b16 %v1794
    %v3064 = vunpack.c.l.b16 %v1795
    %v3065 = vunpack.c.h.b16 %v1795
    %v3066 = vunpack.c.l.b16 %v1796
    %v3067 = vunpack.c.h.b16 %v1796
    %v3068 = vunpack.c.l.b16 %v1797
    %v3069 = vunpack.c.h.b16 %v1797
    %v3070 = vunpack.c.l.b16 %v1798
    %v3071 = vunpack.c.h.b16 %v1798
    %v3072 = vunpack.c.l.b16 %v1799
    %v3073 = vunpack.c.h.b16 %v1799
    %v3074 = vunpack.c.l.b16 %v1800
    %v3075 = vunpack.c.h.b16 %v1800
    %v3076 = vunpack.c.l.b16 %v1801
    %v3077 = vunpack.c.h.b16 %v1801
    %v3078 = vunpack.c.l.b16 %v1802
    %v3079 = vunpack.c.h.b16 %v1802
    %v3080 = vunpack.c.l.b16 %v1803
    %v3081 = vunpack.c.h.b16 %v1803
    %v3082 = vunpack.c.l.b16 %v1804
    %v3083 = vunpack.c.h.b16 %v1804
    %v3084 = vunpack.c.l.b16 %v1805
    %v3085 = vunpack.c.h.b16 %v1805
    %v3086 = vunpack.c.l.b16 %v1806
    %v3087 = vunpack.c.h.b16 %v1806
    %v3088 = vunpack.c.l.b16 %v1807
    %v3089 = vunpack.c.h.b16 %v1807
    %v3090 = vunpack.c.l.b16 %v1808
    %v3091 = vunpack.c.h.b16 %v1808
    %v3092 = vunpack.c.l.b16 %v1809
    %v3093 = vunpack.c.h.b16 %v1809
    %v3094 = vunpack.c.l.b16 %v1810
    %v3095 = vunpack.c.h.b16 %v1810
    %v3096 = vunpack.c.l.b16 %v1811
    %v3097 = vunpack.c.h.b16 %v1811
    %v3098 = vunpack.c.l.b16 %v1812
    %v3099 = vunpack.c.h.b16 %v1812
    %v3100 = vunpack.c.l.b16 %v1813
    %v3101 = vunpack.c.h.b16 %v1813
    %v3102 = vunpack.c.l.b16 %v1814
    %v3103 = vunpack.c.h.b16 %v1814
    %v3104 = vunpack.c.l.b16 %v1815
    %v3105 = vunpack.c.h.b16 %v1815
    %v3106 = vunpack.c.l.b16 %v1816
    %v3107 = vunpack.c.h.b16 %v1816
    %v3108 = vunpack.c.l.b16 %v1817
    %v3109 = vunpack.c.h.b16 %v1817
    %v3110 = vunpack.c.l.b16 %v1818
    %v3111 = vunpack.c.h.b16 %v1818
    %v3112 = vunpack.c.l.b16 %v1819
    %v3113 = vunpack.c.h.b16 %v1819
    %v3114 = vunpack.c.l.b16 %v1820
    %v3115 = vunpack.c.h.b16 %v1820
    %v3116 = vunpack.c.l.b16 %v1821
    %v3117 = vunpack.c.h.b16 %v1821
    %v3118 = vunpack.c.l.b16 %v1822
    %v3119 = vunpack.c.h.b16 %v1822
    %v3120 = vunpack.c.l.b16 %v1823
    %v3121 = vunpack.c.h.b16 %v1823
    %v3122 = vunpack.c.l.b16 %v1824
    %v3123 = vunpack.c.h.b16 %v1824
    %v3124 = vunpack.c.l.b16 %v1825
    %v3125 = vunpack.c.h.b16 %v1825
    %v3126 = vunpack.c.l.b16 %v1826
    %v3127 = vunpack.c.h.b16 %v1826
    %v3128 = vunpack.c.l.b16 %v1827
    %v3129 = vunpack.c.h.b16 %v1827
    %v3130 = vunpack.c.l.b16 %v1828
    %v3131 = vunpack.c.h.b16 %v1828
    %v3132 = vunpack.c.l.b16 %v1829
    %v3133 = vunpack.c.h.b16 %v1829
    %v3134 = vunpack.c.l.b16 %v1830
    %v3135 = vunpack.c.h.b16 %v1830
    %v3136 = vunpack.c.l.b16 %v1831
    %v3137 = vunpack.c.h.b16 %v1831
    %v3138 = vunpack.c.l.b16 %v1832
    %v3139 = vunpack.c.h.b16 %v1832
    %v3140 = vunpack.c.l.b16 %v1833
    %v3141 = vunpack.c.h.b16 %v1833
    %v3142 = vunpack.c.l.b16 %v1834
    %v3143 = vunpack.c.h.b16 %v1834
    %v3144 = vunpack.c.l.b16 %v1835
    %v3145 = vunpack.c.h.b16 %v1835
    %v3146 = vunpack.c.l.b16 %v1836
    %v3147 = vunpack.c.h.b16 %v1836
    %v3148 = vunpack.c.l.b16 %v1837
    %v3149 = vunpack.c.h.b16 %v1837
    %v3150 = vunpack.c.l.b16 %v1838
    %v3151 = vunpack.c.h.b16 %v1838
    %v3152 = vunpack.c.l.b16 %v1839
    %v3153 = vunpack.c.h.b16 %v1839
    %v3154 = vunpack.c.l.b16 %v1840
    %v3155 = vunpack.c.h.b16 %v1840
    %v3156 = vunpack.c.l.b16 %v1841
    %v3157 = vunpack.c.h.b16 %v1841
    %v3158 = vunpack.c.l.b16 %v1842
    %v3159 = vunpack.c.h.b16 %v1842
    %v3160 = vunpack.c.l.b16 %v1843
    %v3161 = vunpack.c.h.b16 %v1843
    %v3162 = vunpack.c.l.b16 %v1844
    %v3163 = vunpack.c.h.b16 %v1844
    %v3164 = vunpack.c.l.b16 %v1845
    %v3165 = vunpack.c.h.b16 %v1845
    %v3166 = vunpack.c.l.b16 %v1846
    %v3167 = vunpack.c.h.b16 %v1846
    %v3168 = vunpack.c.l.b16 %v1847
    %v3169 = vunpack.c.h.b16 %v1847
    %v3170 = vunpack.c.l.b16 %v1848
    %v3171 = vunpack.c.h.b16 %v1848
    %v3172 = vunpack.c.l.b16 %v1849
    %v3173 = vunpack.c.h.b16 %v1849
    %v3174 = vunpack.c.l.b16 %v1850
    %v3175 = vunpack.c.h.b16 %v1850
    %v3176 = vunpack.c.l.b16 %v1851
    %v3177 = vunpack.c.h.b16 %v1851
    %v3178 = vunpack.c.l.b16 %v1852
    %v3179 = vunpack.c.h.b16 %v1852
    %v3180 = vunpack.c.l.b16 %v1853
    %v3181 = vunpack.c.h.b16 %v1853
    %v3182 = vunpack.c.l.b16 %v1854
    %v3183 = vunpack.c.h.b16 %v1854
    %v3184 = vunpack.c.l.b16 %v1855
    %v3185 = vunpack.c.h.b16 %v1855
    %v3186 = vunpack.c.l.b16 %v1856
    %v3187 = vunpack.c.h.b16 %v1856
    %v3188 = vunpack.c.l.b16 %v1857
    %v3189 = vunpack.c.h.b16 %v1857
    %v3190 = vunpack.c.l.b16 %v1858
    %v3191 = vunpack.c.h.b16 %v1858
    %v3192 = vunpack.c.l.b16 %v1859
    %v3193 = vunpack.c.h.b16 %v1859
    %v3194 = vunpack.c.l.b16 %v1860
    %v3195 = vunpack.c.h.b16 %v1860
    %v3196 = vunpack.c.l.b16 %v1861
    %v3197 = vunpack.c.h.b16 %v1861
    %v3198 = vunpack.c.l.b16 %v1862
    %v3199 = vunpack.c.h.b16 %v1862
    %v3200 = vunpack.c.l.b16 %v1863
    %v3201 = vunpack.c.h.b16 %v1863
    %v3202 = vunpack.c.l.b16 %v1864
    %v3203 = vunpack.c.h.b16 %v1864
    %v3204 = vunpack.c.l.b16 %v1865
    %v3205 = vunpack.c.h.b16 %v1865
    %v3206 = vunpack.c.l.b16 %v1866
    %v3207 = vunpack.c.h.b16 %v1866
    %v3208 = vunpack.c.l.b16 %v1867
    %v3209 = vunpack.c.h.b16 %v1867
    %v3210 = vunpack.c.l.b16 %v1868
    %v3211 = vunpack.c.h.b16 %v1868
    %v3212 = vunpack.c.l.b16 %v1869
    %v3213 = vunpack.c.h.b16 %v1869
    %v3214 = vunpack.c.l.b16 %v1870
    %v3215 = vunpack.c.h.b16 %v1870
    %v3216 = vunpack.c.l.b16 %v1871
    %v3217 = vunpack.c.h.b16 %v1871
    %v3218 = vunpack.c.l.b16 %v1872
    %v3219 = vunpack.c.h.b16 %v1872
    %v3220 = vunpack.c.l.b16 %v1873
    %v3221 = vunpack.c.h.b16 %v1873
    %v3222 = vunpack.c.l.b16 %v1874
    %v3223 = vunpack.c.h.b16 %v1874
    %v3224 = vunpack.c.l.b16 %v1875
    %v3225 = vunpack.c.h.b16 %v1875
    %v3226 = vunpack.c.l.b16 %v1876
    %v3227 = vunpack.c.h.b16 %v1876
    %v3228 = vunpack.c.l.b16 %v1877
    %v3229 = vunpack.c.h.b16 %v1877
    %v3230 = vunpack.c.l.b16 %v1878
    %v3231 = vunpack.c.h.b16 %v1878
    %v3232 = vunpack.c.l.b16 %v1879
    %v3233 = vunpack.c.h.b16 %v1879
    %v3234 = vunpack.c.l.b16 %v1880
    %v3235 = vunpack.c.h.b16 %v1880
    %v3236 = vunpack.c.l.b16 %v1881
    %v3237 = vunpack.c.h.b16 %v1881
    %v3238 = vunpack.c.l.b16 %v1882
    %v3239 = vunpack.c.h.b16 %v1882
    %v3240 = vunpack.c.l.b16 %v1883
    %v3241 = vunpack.c.h.b16 %v1883
    %v3242 = vunpack.c.l.b16 %v1884
    %v3243 = vunpack.c.h.b16 %v1884
    %v3244 = vunpack.c.l.b16 %v1885
    %v3245 = vunpack.c.h.b16 %v1885
    %v3246 = vunpack.c.l.b16 %v1886
    %v3247 = vunpack.c.h.b16 %v1886
    %v3248 = vunpack.c.l.b16 %v1887
    %v3249 = vunpack.c.h.b16 %v1887
    %v3250 = vunpack.c.l.b16 %v1888
    %v3251 = vunpack.c.h.b16 %v1888
    %v3252 = vunpack.c.l.b16 %v1889
    %v3253 = vunpack.c.h.b16 %v1889
    %v3254 = vunpack.c.l.b16 %v1890
    %v3255 = vunpack.c.h.b16 %v1890
    %v3256 = vunpack.c.l.b16 %v1891
    %v3257 = vunpack.c.h.b16 %v1891
    %v3258 = vunpack.c.l.b16 %v1892
    %v3259 = vunpack.c.h.b16 %v1892
    %v3260 = vunpack.c.l.b16 %v1893
    %v3261 = vunpack.c.h.b16 %v1893
    %v3262 = vunpack.c.l.b16 %v1894
    %v3263 = vunpack.c.h.b16 %v1894
    %v3264 = vunpack.c.l.b16 %v1895
    %v3265 = vunpack.c.h.b16 %v1895
    %v3266 = vunpack.c.l.b16 %v1896
    %v3267 = vunpack.c.h.b16 %v1896
    %v3268 = vunpack.c.l.b16 %v1897
    %v3269 = vunpack.c.h.b16 %v1897
    %v3270 = vunpack.c.l.b16 %v1898
    %v3271 = vunpack.c.h.b16 %v1898
    %v3272 = vunpack.c.l.b16 %v1899
    %v3273 = vunpack.c.h.b16 %v1899
    %v3274 = vunpack.c.l.b16 %v1900
    %v3275 = vunpack.c.h.b16 %v1900
    %v3276 = vunpack.c.l.b16 %v1901
    %v3277 = vunpack.c.h.b16 %v1901
    %v3278 = vunpack.c.l.b16 %v1902
    %v3279 = vunpack.c.h.b16 %v1902
    %v3280 = vunpack.c.l.b16 %v1903
    %v3281 = vunpack.c.h.b16 %v1903
    %v3282 = vunpack.c.l.b16 %v1904
    %v3283 = vunpack.c.h.b16 %v1904
    %v3284 = vunpack.c.l.b16 %v1905
    %v3285 = vunpack.c.h.b16 %v1905
    %v3286 = vunpack.c.l.b16 %v1906
    %v3287 = vunpack.c.h.b16 %v1906
    %v3288 = vunpack.c.l.b16 %v1907
    %v3289 = vunpack.c.h.b16 %v1907
    %v3290 = vunpack.c.l.b16 %v1908
    %v3291 = vunpack.c.h.b16 %v1908
    %v3292 = vunpack.c.l.b16 %v1909
    %v3293 = vunpack.c.h.b16 %v1909
    %v3294 = vunpack.c.l.b16 %v1910
    %v3295 = vunpack.c.h.b16 %v1910
    %v3296 = vunpack.c.l.b16 %v1911
    %v3297 = vunpack.c.h.b16 %v1911
    %v3298 = vunpack.c.l.b16 %v1912
    %v3299 = vunpack.c.h.b16 %v1912
    %v3300 = vunpack.c.l.b16 %v1913
    %v3301 = vunpack.c.h.b16 %v1913
    %v3302 = vunpack.c.l.b16 %v1914
    %v3303 = vunpack.c.h.b16 %v1914
    %v3304 = vunpack.c.l.b16 %v1915
    %v3305 = vunpack.c.h.b16 %v1915
    %v3306 = vunpack.c.l.b16 %v1916
    %v3307 = vunpack.c.h.b16 %v1916
    %v3308 = vunpack.c.l.b16 %v1917
    %v3309 = vunpack.c.h.b16 %v1917
    %v3310 = vunpack.c.l.b16 %v1918
    %v3311 = vunpack.c.h.b16 %v1918
    %v3312 = vunpack.c.l.b16 %v1919
    %v3313 = vunpack.c.h.b16 %v1919
    %v3314 = vunpack.c.l.b16 %v1920
    %v3315 = vunpack.c.h.b16 %v1920
    %v3316 = vunpack.c.l.b16 %v1921
    %v3317 = vunpack.c.h.b16 %v1921
    %v3318 = vunpack.c.l.b16 %v1922
    %v3319 = vunpack.c.h.b16 %v1922
    %v3320 = vunpack.c.l.b16 %v1923
    %v3321 = vunpack.c.h.b16 %v1923
    %v3322 = vunpack.c.l.b16 %v1924
    %v3323 = vunpack.c.h.b16 %v1924
    %v3324 = vunpack.c.l.b16 %v1925
    %v3325 = vunpack.c.h.b16 %v1925
    %v3326 = vunpack.c.l.b16 %v1926
    %v3327 = vunpack.c.h.b16 %v1926
    %v3328 = vunpack.c.l.b16 %v1927
    %v3329 = vunpack.c.h.b16 %v1927
    %v3330 = vunpack.c.l.b16 %v1928
    %v3331 = vunpack.c.h.b16 %v1928
    %v3332 = vunpack.c.l.b16 %v1929
    %v3333 = vunpack.c.h.b16 %v1929
    %v3334 = vunpack.c.l.b16 %v1930
    %v3335 = vunpack.c.h.b16 %v1930
    %v3336 = vunpack.c.l.b16 %v1931
    %v3337 = vunpack.c.h.b16 %v1931
    %v3338 = vunpack.c.l.b16 %v1932
    %v3339 = vunpack.c.h.b16 %v1932
    %v3340 = vunpack.c.l.b16 %v1933
    %v3341 = vunpack.c.h.b16 %v1933
    %v3342 = vunpack.c.l.b16 %v1934
    %v3343 = vunpack.c.h.b16 %v1934
    %v3344 = vunpack.c.l.b16 %v1935
    %v3345 = vunpack.c.h.b16 %v1935
    %v3346 = vunpack.c.l.b16 %v1936
    %v3347 = vunpack.c.h.b16 %v1936
    %v3348 = vunpack.c.l.b16 %v1937
    %v3349 = vunpack.c.h.b16 %v1937
    %v3350 = vunpack.c.l.b16 %v1938
    %v3351 = vunpack.c.h.b16 %v1938
    %v3352 = vunpack.c.l.b16 %v1939
    %v3353 = vunpack.c.h.b16 %v1939
    %v3354 = vunpack.c.l.b16 %v1940
    %v3355 = vunpack.c.h.b16 %v1940
    %v3356 = vunpack.c.l.b16 %v1941
    %v3357 = vunpack.c.h.b16 %v1941
    %v3358 = vunpack.c.l.b16 %v1942
    %v3359 = vunpack.c.h.b16 %v1942
    %v3360 = vunpack.c.l.b16 %v1943
    %v3361 = vunpack.c.h.b16 %v1943
    %v3362 = vunpack.c.l.b16 %v1944
    %v3363 = vunpack.c.h.b16 %v1944
    %v3364 = vunpack.c.l.b16 %v1945
    %v3365 = vunpack.c.h.b16 %v1945
    %v3366 = vunpack.c.l.b16 %v1946
    %v3367 = vunpack.c.h.b16 %v1946
    %v3368 = vunpack.c.l.b16 %v1947
    %v3369 = vunpack.c.h.b16 %v1947
    %v3370 = vunpack.c.l.b16 %v1948
    %v3371 = vunpack.c.h.b16 %v1948
    %v3372 = vunpack.c.l.b16 %v1949
    %v3373 = vunpack.c.h.b16 %v1949
    %v3374 = vunpack.c.l.b16 %v1950
    %v3375 = vunpack.c.h.b16 %v1950
    %v3376 = vunpack.c.l.b16 %v1951
    %v3377 = vunpack.c.h.b16 %v1951
    %v3378 = vunpack.c.l.b16 %v1952
    %v3379 = vunpack.c.h.b16 %v1952
    %v3380 = vunpack.c.l.b16 %v1953
    %v3381 = vunpack.c.h.b16 %v1953
    %v3382 = vunpack.c.l.b16 %v1954
    %v3383 = vunpack.c.h.b16 %v1954
    %v3384 = vunpack.c.l.b16 %v1955
    %v3385 = vunpack.c.h.b16 %v1955
    %v3386 = vunpack.c.l.b16 %v1956
    %v3387 = vunpack.c.h.b16 %v1956
    %v3388 = vunpack.c.l.b16 %v1957
    %v3389 = vunpack.c.h.b16 %v1957
    %v3390 = vunpack.c.l.b16 %v1958
    %v3391 = vunpack.c.h.b16 %v1958
    %v3392 = vunpack.c.l.b16 %v1959
    %v3393 = vunpack.c.h.b16 %v1959
    %v3394 = vunpack.c.l.b16 %v1960
    %v3395 = vunpack.c.h.b16 %v1960
    %v3396 = vunpack.c.l.b16 %v1961
    %v3397 = vunpack.c.h.b16 %v1961
    %v3398 = vunpack.c.l.b16 %v1962
    %v3399 = vunpack.c.h.b16 %v1962
    %v3400 = vunpack.c.l.b16 %v1963
    %v3401 = vunpack.c.h.b16 %v1963
    %v3402 = vunpack.c.l.b16 %v1964
    %v3403 = vunpack.c.h.b16 %v1964
    %v3404 = vunpack.c.l.b16 %v1965
    %v3405 = vunpack.c.h.b16 %v1965
    %v3406 = vunpack.c.l.b16 %v1966
    %v3407 = vunpack.c.h.b16 %v1966
    %v3408 = vunpack.c.l.b16 %v1967
    %v3409 = vunpack.c.h.b16 %v1967
    %v3410 = vunpack.c.l.b16 %v1968
    %v3411 = vunpack.c.h.b16 %v1968
    %v3412 = vunpack.c.l.b16 %v1969
    %v3413 = vunpack.c.h.b16 %v1969
    %v3414 = vunpack.c.l.b16 %v1970
    %v3415 = vunpack.c.h.b16 %v1970
    %v3416 = vunpack.c.l.b16 %v1971
    %v3417 = vunpack.c.h.b16 %v1971
    %v3418 = vunpack.c.l.b16 %v1972
    %v3419 = vunpack.c.h.b16 %v1972
    %v3420 = vunpack.c.l.b16 %v1973
    %v3421 = vunpack.c.h.b16 %v1973
    %v3422 = vunpack.c.l.b16 %v1974
    %v3423 = vunpack.c.h.b16 %v1974
    %v3424 = vunpack.c.l.b16 %v1975
    %v3425 = vunpack.c.h.b16 %v1975
    %v3426 = vunpack.c.l.b16 %v1976
    %v3427 = vunpack.c.h.b16 %v1976
    %v3428 = vunpack.c.l.b16 %v1977
    %v3429 = vunpack.c.h.b16 %v1977
    %v3430 = vunpack.c.l.b16 %v1978
    %v3431 = vunpack.c.h.b16 %v1978
    %v3432 = vunpack.c.l.b16 %v1979
    %v3433 = vunpack.c.h.b16 %v1979
    %v3434 = vunpack.c.l.b16 %v1980
    %v3435 = vunpack.c.h.b16 %v1980
    %v3436 = vunpack.c.l.b16 %v1981
    %v3437 = vunpack.c.h.b16 %v1981
    %v3438 = vunpack.c.l.b16 %v1982
    %v3439 = vunpack.c.h.b16 %v1982
    %v3440 = vunpack.c.l.b16 %v1983
    %v3441 = vunpack.c.h.b16 %v1983
    %v3442 = vunpack.c.l.b16 %v1984
    %v3443 = vunpack.c.h.b16 %v1984
    %v3444 = vunpack.c.l.b16 %v1985
    %v3445 = vunpack.c.h.b16 %v1985
    %v3446 = vunpack.c.l.b16 %v1986
    %v3447 = vunpack.c.h.b16 %v1986
    %v3448 = vunpack.c.l.b16 %v1987
    %v3449 = vunpack.c.h.b16 %v1987
    %v3450 = vunpack.c.l.b16 %v1988
    %v3451 = vunpack.c.h.b16 %v1988
    %v3452 = vunpack.c.l.b16 %v1989
    %v3453 = vunpack.c.h.b16 %v1989
    %v3454 = vunpack.c.l.b16 %v1990
    %v3455 = vunpack.c.h.b16 %v1990
    %v3456 = vunpack.c.l.b16 %v1991
    %v3457 = vunpack.c.h.b16 %v1991
    %v3458 = vunpack.c.l.b16 %v1992
    %v3459 = vunpack.c.h.b16 %v1992
    %v3460 = vunpack.c.l.b16 %v1993
    %v3461 = vunpack.c.h.b16 %v1993
    %v3462 = vunpack.c.l.b16 %v1994
    %v3463 = vunpack.c.h.b16 %v1994
    %v3464 = vunpack.c.l.b16 %v1995
    %v3465 = vunpack.c.h.b16 %v1995
    %v3466 = vunpack.c.l.b16 %v1996
    %v3467 = vunpack.c.h.b16 %v1996
    %v3468 = vunpack.c.l.b16 %v1997
    %v3469 = vunpack.c.h.b16 %v1997
    %v3470 = vunpack.c.l.b16 %v1998
    %v3471 = vunpack.c.h.b16 %v1998
    %v3472 = vunpack.c.l.b16 %v1999
    %v3473 = vunpack.c.h.b16 %v1999
    %v3474 = vunpack.c.l.b16 %v2000
    %v3475 = vunpack.c.h.b16 %v2000
    %v3476 = vunpack.c.l.b16 %v2001
    %v3477 = vunpack.c.h.b16 %v2001
    %v3478 = vunpack.c.l.b16 %v2002
    %v3479 = vunpack.c.h.b16 %v2002
    %v3480 = vunpack.c.l.b16 %v2003
    %v3481 = vunpack.c.h.b16 %v2003
    %v3482 = vunpack.c.l.b16 %v2004
    %v3483 = vunpack.c.h.b16 %v2004
    %v3484 = vunpack.c.l.b16 %v2005
    %v3485 = vunpack.c.h.b16 %v2005
    %v3486 = vunpack.c.l.b16 %v2006
    %v3487 = vunpack.c.h.b16 %v2006
    %v3488 = vunpack.c.l.b16 %v2007
    %v3489 = vunpack.c.h.b16 %v2007
    %v3490 = vunpack.c.l.b16 %v2008
    %v3491 = vunpack.c.h.b16 %v2008
    %v3492 = vunpack.c.l.b16 %v2009
    %v3493 = vunpack.c.h.b16 %v2009
    %v3494 = vunpack.c.l.b16 %v2010
    %v3495 = vunpack.c.h.b16 %v2010
    %v3496 = vunpack.c.l.b16 %v2011
    %v3497 = vunpack.c.h.b16 %v2011
    %v3498 = vunpack.c.l.b16 %v2012
    %v3499 = vunpack.c.h.b16 %v2012
    %v3500 = vunpack.c.l.b16 %v2013
    %v3501 = vunpack.c.h.b16 %v2013
    %v3502 = vunpack.c.l.b16 %v2014
    %v3503 = vunpack.c.h.b16 %v2014
    %v3504 = vunpack.c.l.b16 %v2015
    %v3505 = vunpack.c.h.b16 %v2015
    %v3506 = vunpack.c.l.b16 %v2016
    %v3507 = vunpack.c.h.b16 %v2016
    %v3508 = vunpack.c.l.b16 %v2017
    %v3509 = vunpack.c.h.b16 %v2017
    %v3510 = vunpack.c.l.b16 %v2018
    %v3511 = vunpack.c.h.b16 %v2018
    %v3512 = vunpack.c.l.b16 %v2019
    %v3513 = vunpack.c.h.b16 %v2019
    %v3514 = vunpack.c.l.b16 %v2020
    %v3515 = vunpack.c.h.b16 %v2020
    %v3516 = vunpack.c.l.b16 %v2021
    %v3517 = vunpack.c.h.b16 %v2021
    %v3518 = vunpack.c.l.b16 %v2022
    %v3519 = vunpack.c.h.b16 %v2022
    %v3520 = vunpack.c.l.b16 %v2023
    %v3521 = vunpack.c.h.b16 %v2023
    %v3522 = vunpack.c.l.b16 %v2024
    %v3523 = vunpack.c.h.b16 %v2024
    %v3524 = vunpack.c.l.b16 %v2025
    %v3525 = vunpack.c.h.b16 %v2025
    %v3526 = vunpack.c.l.b16 %v2026
    %v3527 = vunpack.c.h.b16 %v2026
    %v3528 = vunpack.c.l.b16 %v2027
    %v3529 = vunpack.c.h.b16 %v2027
    %v3530 = vunpack.c.l.b16 %v2028
    %v3531 = vunpack.c.h.b16 %v2028
    %v3532 = vunpack.c.l.b16 %v2029
    %v3533 = vunpack.c.h.b16 %v2029
    %v3534 = vunpack.c.l.b16 %v2030
    %v3535 = vunpack.c.h.b16 %v2030
    %v3536 = vunpack.c.l.b16 %v2031
    %v3537 = vunpack.c.h.b16 %v2031
    %v3538 = vunpack.c.l.b16 %v2032
    %v3539 = vunpack.c.h.b16 %v2032
    %v3540 = vunpack.c.l.b16 %v2033
    %v3541 = vunpack.c.h.b16 %v2033
    %v3542 = vunpack.c.l.b16 %v2034
    %v3543 = vunpack.c.h.b16 %v2034
    %v3544 = vunpack.c.l.b16 %v2035
    %v3545 = vunpack.c.h.b16 %v2035
    %v3546 = vunpack.c.l.b16 %v2036
    %v3547 = vunpack.c.h.b16 %v2036
    %v3548 = vunpack.c.l.b16 %v2037
    %v3549 = vunpack.c.h.b16 %v2037
    %v3550 = vunpack.c.l.b16 %v2038
    %v3551 = vunpack.c.h.b16 %v2038
    %v3552 = vunpack.c.l.b16 %v2039
    %v3553 = vunpack.c.h.b16 %v2039
    %v3554 = vunpack.c.l.b16 %v2040
    %v3555 = vunpack.c.h.b16 %v2040
    %v3556 = vunpack.c.l.b16 %v2041
    %v3557 = vunpack.c.h.b16 %v2041
    %v3558 = vunpack.c.l.b16 %v2042
    %v3559 = vunpack.c.h.b16 %v2042
    %v3560 = vunpack.c.l.b16 %v2043
    %v3561 = vunpack.c.h.b16 %v2043
    %v3562 = vunpack.c.l.b16 %v2044
    %v3563 = vunpack.c.h.b16 %v2044
    %v3564 = vunpack.c.l.b16 %v2045
    %v3565 = vunpack.c.h.b16 %v2045
    %v3566 = vunpack.c.l.b16 %v2046
    %v3567 = vunpack.c.h.b16 %v2046
    %v3568 = vunpack.c.l.b16 %v2047
    %v3569 = vunpack.c.h.b16 %v2047
    %v3570 = vunpack.c.l.b16 %v2048
    %v3571 = vunpack.c.h.b16 %v2048
    %v3572 = vunpack.c.l.b16 %v2049
    %v3573 = vunpack.c.h.b16 %v2049
    %v3574 = vunpack.c.l.b16 %v2050
    %v3575 = vunpack.c.h.b16 %v2050
    %v3576 = vunpack.c.l.b16 %v2051
    %v3577 = vunpack.c.h.b16 %v2051
    %v3578 = vunpack.c.l.b16 %v2052
    %v3579 = vunpack.c.h.b16 %v2052
    %v3580 = vunpack.c.l.b16 %v2053
    %v3581 = vunpack.c.h.b16 %v2053
    %v3582 = vunpack.c.l.b16 %v2054
    %v3583 = vunpack.c.h.b16 %v2054
    %v3584 = vunpack.c.l.b16 %v2055
    %v3585 = vunpack.c.h.b16 %v2055
    %v3586 = vunpack.c.l.b16 %v2056
    %v3587 = vunpack.c.h.b16 %v2056
    %v3588 = vunpack.c.l.b16 %v2057
    %v3589 = vunpack.c.h.b16 %v2057
    %v3590 = vunpack.c.l.b16 %v2058
    %v3591 = vunpack.c.h.b16 %v2058
    %v3592 = vunpack.c.l.b16 %v2059
    %v3593 = vunpack.c.h.b16 %v2059
    %v3594 = vunpack.c.l.b16 %v2060
    %v3595 = vunpack.c.h.b16 %v2060
    %v3596 = vunpack.c.l.b16 %v2061
    %v3597 = vunpack.c.h.b16 %v2061
    %v3598 = vunpack.c.l.b16 %v2062
    %v3599 = vunpack.c.h.b16 %v2062
    %v3600 = vunpack.c.l.b16 %v2063
    %v3601 = vunpack.c.h.b16 %v2063
    %v3602 = vunpack.c.l.b16 %v2064
    %v3603 = vunpack.c.h.b16 %v2064
    %v3604 = vunpack.c.l.b16 %v2065
    %v3605 = vunpack.c.h.b16 %v2065
    %v3606 = vunpack.c.l.b16 %v2066
    %v3607 = vunpack.c.h.b16 %v2066
    %v3608 = vunpack.c.l.b16 %v2067
    %v3609 = vunpack.c.h.b16 %v2067
    %v3610 = vunpack.c.l.b16 %v2068
    %v3611 = vunpack.c.h.b16 %v2068
    %v3612 = vunpack.c.l.b16 %v2069
    %v3613 = vunpack.c.h.b16 %v2069
    %v3614 = vunpack.c.l.b16 %v2070
    %v3615 = vunpack.c.h.b16 %v2070
    %v3616 = vunpack.c.l.b16 %v2071
    %v3617 = vunpack.c.h.b16 %v2071
    %v3618 = vunpack.c.l.b16 %v2072
    %v3619 = vunpack.c.h.b16 %v2072
    %v3620 = vunpack.c.l.b16 %v2073
    %v3621 = vunpack.c.h.b16 %v2073
    %v3622 = vunpack.c.l.b16 %v2074
    %v3623 = vunpack.c.h.b16 %v2074
    %v3624 = vunpack.c.l.b16 %v2075
    %v3625 = vunpack.c.h.b16 %v2075
    %v3626 = vunpack.c.l.b16 %v2076
    %v3627 = vunpack.c.h.b16 %v2076
    %v3628 = vunpack.c.l.b16 %v2077
    %v3629 = vunpack.c.h.b16 %v2077
    %v3630 = vunpack.c.l.b16 %v2078
    %v3631 = vunpack.c.h.b16 %v2078
    %v3632 = vunpack.c.l.b16 %v2079
    %v3633 = vunpack.c.h.b16 %v2079
    %v3634 = vunpack.c.l.b16 %v2080
    %v3635 = vunpack.c.h.b16 %v2080
    %v3636 = vunpack.c.l.b16 %v2081
    %v3637 = vunpack.c.h.b16 %v2081
    %v3638 = vunpack.c.l.b16 %v2082
    %v3639 = vunpack.c.h.b16 %v2082
    %v3640 = vunpack.c.l.b16 %v2083
    %v3641 = vunpack.c.h.b16 %v2083
    %v3642 = vunpack.c.l.b16 %v2084
    %v3643 = vunpack.c.h.b16 %v2084
    %v3644 = vunpack.c.l.b16 %v2085
    %v3645 = vunpack.c.h.b16 %v2085
    %v3646 = vunpack.c.l.b16 %v2086
    %v3647 = vunpack.c.h.b16 %v2086
    %v3648 = vunpack.c.l.b16 %v2087
    %v3649 = vunpack.c.h.b16 %v2087
    %v3650 = vunpack.c.l.b16 %v2088
    %v3651 = vunpack.c.h.b16 %v2088
    %v3652 = vunpack.c.l.b16 %v2089
    %v3653 = vunpack.c.h.b16 %v2089
    %v3654 = vunpack.c.l.b16 %v2090
    %v3655 = vunpack.c.h.b16 %v2090
    %v3656 = vunpack.c.l.b16 %v2091
    %v3657 = vunpack.c.h.b16 %v2091
    %v3658 = vunpack.c.l.b16 %v2092
    %v3659 = vunpack.c.h.b16 %v2092
    %v3660 = vunpack.c.l.b16 %v2093
    %v3661 = vunpack.c.h.b16 %v2093
    %v3662 = vunpack.c.l.b16 %v2094
    %v3663 = vunpack.c.h.b16 %v2094
    %v3664 = vunpack.c.l.b16 %v2095
    %v3665 = vunpack.c.h.b16 %v2095
    %v3666 = vunpack.c.l.b16 %v2096
    %v3667 = vunpack.c.h.b16 %v2096
    %v3668 = vunpack.c.l.b16 %v2097
    %v3669 = vunpack.c.h.b16 %v2097
    %v3670 = vunpack.c.l.b16 %v2098
    %v3671 = vunpack.c.h.b16 %v2098
    %v3672 = vunpack.c.l.b16 %v2099
    %v3673 = vunpack.c.h.b16 %v2099
    %v3674 = vunpack.c.l.b16 %v2100
    %v3675 = vunpack.c.h.b16 %v2100
    %v3676 = vunpack.c.l.b16 %v2101
    %v3677 = vunpack.c.h.b16 %v2101
    %v3678 = vunpack.c.l.b16 %v2102
    %v3679 = vunpack.c.h.b16 %v2102
    %v3680 = vunpack.c.l.b16 %v2103
    %v3681 = vunpack.c.h.b16 %v2103
    %v3682 = vpack.c.b16 %v2666, %v2658
    %v3683 = vpack.c.b16 %v2667, %v2659
    %v3684 = vpack.c.b16 %v2668, %v2660
    %v3685 = vpack.c.b16 %v2669, %v2661
    %v3686 = vpack.c.b16 %v2670, %v2662
    %v3687 = vpack.c.b16 %v2671, %v2663
    %v3688 = vpack.c.b16 %v2672, %v2664
    %v3689 = vpack.c.b16 %v2673, %v2665
    %v3690 = vpack.c.b16 %v2682, %v2674
    %v3691 = vpack.c.b16 %v2683, %v2675
    %v3692 = vpack.c.b16 %v2684, %v2676
    %v3693 = vpack.c.b16 %v2685, %v2677
    %v3694 = vpack.c.b16 %v2686, %v2678
    %v3695 = vpack.c.b16 %v2687, %v2679
    %v3696 = vpack.c.b16 %v2688, %v2680
    %v3697 = vpack.c.b16 %v2689, %v2681
    %v3698 = vpack.c.b16 %v2698, %v2690
    %v3699 = vpack.c.b16 %v2699, %v2691
    %v3700 = vpack.c.b16 %v2700, %v2692
    %v3701 = vpack.c.b16 %v2701, %v2693
    %v3702 = vpack.c.b16 %v2702, %v2694
    %v3703 = vpack.c.b16 %v2703, %v2695
    %v3704 = vpack.c.b16 %v2704, %v2696
    %v3705 = vpack.c.b16 %v2705, %v2697
    %v3706 = vpack.c.b16 %v2714, %v2706
    %v3707 = vpack.c.b16 %v2715, %v2707
    %v3708 = vpack.c.b16 %v2716, %v2708
    %v3709 = vpack.c.b16 %v2717, %v2709
    %v3710 = vpack.c.b16 %v2718, %v2710
    %v3711 = vpack.c.b16 %v2719, %v2711
    %v3712 = vpack.c.b16 %v2720, %v2712
    %v3713 = vpack.c.b16 %v2721, %v2713
    %v3714 = vpack.c.b16 %v2730, %v2722
    %v3715 = vpack.c.b16 %v2731, %v2723
    %v3716 = vpack.c.b16 %v2732, %v2724
    %v3717 = vpack.c.b16 %v2733, %v2725
    %v3718 = vpack.c.b16 %v2734, %v2726
    %v3719 = vpack.c.b16 %v2735, %v2727
    %v3720 = vpack.c.b16 %v2736, %v2728
    %v3721 = vpack.c.b16 %v2737, %v2729
    %v3722 = vpack.c.b16 %v2746, %v2738
    %v3723 = vpack.c.b16 %v2747, %v2739
    %v3724 = vpack.c.b16 %v2748, %v2740
    %v3725 = vpack.c.b16 %v2749, %v2741
    %v3726 = vpack.c.b16 %v2750, %v2742
    %v3727 = vpack.c.b16 %v2751, %v2743
    %v3728 = vpack.c.b16 %v2752, %v2744
    %v3729 = vpack.c.b16 %v2753, %v2745
    %v3730 = vpack.c.b16 %v2762, %v2754
    %v3731 = vpack.c.b16 %v2763, %v2755
    %v3732 = vpack.c.b16 %v2764, %v2756
    %v3733 = vpack.c.b16 %v2765, %v2757
    %v3734 = vpack.c.b16 %v2766, %v2758
    %v3735 = vpack.c.b16 %v2767, %v2759
    %v3736 = vpack.c.b16 %v2768, %v2760
    %v3737 = vpack.c.b16 %v2769, %v2761
    %v3738 = vpack.c.b16 %v2778, %v2770
    %v3739 = vpack.c.b16 %v2779, %v2771
    %v3740 = vpack.c.b16 %v2780, %v2772
    %v3741 = vpack.c.b16 %v2781, %v2773
    %v3742 = vpack.c.b16 %v2782, %v2774
    %v3743 = vpack.c.b16 %v2783, %v2775
    %v3744 = vpack.c.b16 %v2784, %v2776
    %v3745 = vpack.c.b16 %v2785, %v2777
    %v3746 = vpack.c.b16 %v2794, %v2786
    %v3747 = vpack.c.b16 %v2795, %v2787
    %v3748 = vpack.c.b16 %v2796, %v2788
    %v3749 = vpack.c.b16 %v2797, %v2789
    %v3750 = vpack.c.b16 %v2798, %v2790
    %v3751 = vpack.c.b16 %v2799, %v2791
    %v3752 = vpack.c.b16 %v2800, %v2792
    %v3753 = vpack.c.b16 %v2801, %v2793
    %v3754 = vpack.c.b16 %v2810, %v2802
    %v3755 = vpack.c.b16 %v2811, %v2803
    %v3756 = vpack.c.b16 %v2812, %v2804
    %v3757 = vpack.c.b16 %v2813, %v2805
    %v3758 = vpack.c.b16 %v2814, %v2806
    %v3759 = vpack.c.b16 %v2815, %v2807
    %v3760 = vpack.c.b16 %v2816, %v2808
    %v3761 = vpack.c.b16 %v2817, %v2809
    %v3762 = vpack.c.b16 %v2826, %v2818
    %v3763 = vpack.c.b16 %v2827, %v2819
    %v3764 = vpack.c.b16 %v2828, %v2820
    %v3765 = vpack.c.b16 %v2829, %v2821
    %v3766 = vpack.c.b16 %v2830, %v2822
    %v3767 = vpack.c.b16 %v2831, %v2823
    %v3768 = vpack.c.b16 %v2832, %v2824
    %v3769 = vpack.c.b16 %v2833, %v2825
    %v3770 = vpack.c.b16 %v2842, %v2834
    %v3771 = vpack.c.b16 %v2843, %v2835
    %v3772 = vpack.c.b16 %v2844, %v2836
    %v3773 = vpack.c.b16 %v2845, %v2837
    %v3774 = vpack.c.b16 %v2846, %v2838
    %v3775 = vpack.c.b16 %v2847, %v2839
    %v3776 = vpack.c.b16 %v2848, %v2840
    %v3777 = vpack.c.b16 %v2849, %v2841
    %v3778 = vpack.c.b16 %v2858, %v2850
    %v3779 = vpack.c.b16 %v2859, %v2851
    %v3780 = vpack.c.b16 %v2860, %v2852
    %v3781 = vpack.c.b16 %v2861, %v2853
    %v3782 = vpack.c.b16 %v2862, %v2854
    %v3783 = vpack.c.b16 %v2863, %v2855
    %v3784 = vpack.c.b16 %v2864, %v2856
    %v3785 = vpack.c.b16 %v2865, %v2857
    %v3786 = vpack.c.b16 %v2874, %v2866
    %v3787 = vpack.c.b16 %v2875, %v2867
    %v3788 = vpack.c.b16 %v2876, %v2868
    %v3789 = vpack.c.b16 %v2877, %v2869
    %v3790 = vpack.c.b16 %v2878, %v2870
    %v3791 = vpack.c.b16 %v2879, %v2871
    %v3792 = vpack.c.b16 %v2880, %v2872
    %v3793 = vpack.c.b16 %v2881, %v2873
    %v3794 = vpack.c.b16 %v2890, %v2882
    %v3795 = vpack.c.b16 %v2891, %v2883
    %v3796 = vpack.c.b16 %v2892, %v2884
    %v3797 = vpack.c.b16 %v2893, %v2885
    %v3798 = vpack.c.b16 %v2894, %v2886
    %v3799 = vpack.c.b16 %v2895, %v2887
    %v3800 = vpack.c.b16 %v2896, %v2888
    %v3801 = vpack.c.b16 %v2897, %v2889
    %v3802 = vpack.c.b16 %v2906, %v2898
    %v3803 = vpack.c.b16 %v2907, %v2899
    %v3804 = vpack.c.b16 %v2908, %v2900
    %v3805 = vpack.c.b16 %v2909, %v2901
    %v3806 = vpack.c.b16 %v2910, %v2902
    %v3807 = vpack.c.b16 %v2911, %v2903
    %v3808 = vpack.c.b16 %v2912, %v2904
    %v3809 = vpack.c.b16 %v2913, %v2905
    %v3810 = vpack.c.b16 %v2922, %v2914
    %v3811 = vpack.c.b16 %v2923, %v2915
    %v3812 = vpack.c.b16 %v2924, %v2916
    %v3813 = vpack.c.b16 %v2925, %v2917
    %v3814 = vpack.c.b16 %v2926, %v2918
    %v3815 = vpack.c.b16 %v2927, %v2919
    %v3816 = vpack.c.b16 %v2928, %v2920
    %v3817 = vpack.c.b16 %v2929, %v2921
    %v3818 = vpack.c.b16 %v2938, %v2930
    %v3819 = vpack.c.b16 %v2939, %v2931
    %v3820 = vpack.c.b16 %v2940, %v2932
    %v3821 = vpack.c.b16 %v2941, %v2933
    %v3822 = vpack.c.b16 %v2942, %v2934
    %v3823 = vpack.c.b16 %v2943, %v2935
    %v3824 = vpack.c.b16 %v2944, %v2936
    %v3825 = vpack.c.b16 %v2945, %v2937
    %v3826 = vpack.c.b16 %v2954, %v2946
    %v3827 = vpack.c.b16 %v2955, %v2947
    %v3828 = vpack.c.b16 %v2956, %v2948
    %v3829 = vpack.c.b16 %v2957, %v2949
    %v3830 = vpack.c.b16 %v2958, %v2950
    %v3831 = vpack.c.b16 %v2959, %v2951
    %v3832 = vpack.c.b16 %v2960, %v2952
    %v3833 = vpack.c.b16 %v2961, %v2953
    %v3834 = vpack.c.b16 %v2970, %v2962
    %v3835 = vpack.c.b16 %v2971, %v2963
    %v3836 = vpack.c.b16 %v2972, %v2964
    %v3837 = vpack.c.b16 %v2973, %v2965
    %v3838 = vpack.c.b16 %v2974, %v2966
    %v3839 = vpack.c.b16 %v2975, %v2967
    %v3840 = vpack.c.b16 %v2976, %v2968
    %v3841 = vpack.c.b16 %v2977, %v2969
    %v3842 = vpack.c.b16 %v2986, %v2978
    %v3843 = vpack.c.b16 %v2987, %v2979
    %v3844 = vpack.c.b16 %v2988, %v2980
    %v3845 = vpack.c.b16 %v2989, %v2981
    %v3846 = vpack.c.b16 %v2990, %v2982
    %v3847 = vpack.c.b16 %v2991, %v2983
    %v3848 = vpack.c.b16 %v2992, %v2984
    %v3849 = vpack.c.b16 %v2993, %v2985
    %v3850 = vpack.c.b16 %v3002, %v2994
    %v3851 = vpack.c.b16 %v3003, %v2995
    %v3852 = vpack.c.b16 %v3004, %v2996
    %v3853 = vpack.c.b16 %v3005, %v2997
    %v3854 = vpack.c.b16 %v3006, %v2998
    %v3855 = vpack.c.b16 %v3007, %v2999
    %v3856 = vpack.c.b16 %v3008, %v3000
    %v3857 = vpack.c.b16 %v3009, %v3001
    %v3858 = vpack.c.b16 %v3018, %v3010
    %v3859 = vpack.c.b16 %v3019, %v3011
    %v3860 = vpack.c.b16 %v3020, %v3012
    %v3861 = vpack.c.b16 %v3021, %v3013
    %v3862 = vpack.c.b16 %v3022, %v3014
    %v3863 = vpack.c.b16 %v3023, %v3015
    %v3864 = vpack.c.b16 %v3024, %v3016
    %v3865 = vpack.c.b16 %v3025, %v3017
    %v3866 = vpack.c.b16 %v3034, %v3026
    %v3867 = vpack.c.b16 %v3035, %v3027
    %v3868 = vpack.c.b16 %v3036, %v3028
    %v3869 = vpack.c.b16 %v3037, %v3029
    %v3870 = vpack.c.b16 %v3038, %v3030
    %v3871 = vpack.c.b16 %v3039, %v3031
    %v3872 = vpack.c.b16 %v3040, %v3032
    %v3873 = vpack.c.b16 %v3041, %v3033
    %v3874 = vpack.c.b16 %v3050, %v3042
    %v3875 = vpack.c.b16 %v3051, %v3043
    %v3876 = vpack.c.b16 %v3052, %v3044
    %v3877 = vpack.c.b16 %v3053, %v3045
    %v3878 = vpack.c.b16 %v3054, %v3046
    %v3879 = vpack.c.b16 %v3055, %v3047
    %v3880 = vpack.c.b16 %v3056, %v3048
    %v3881 = vpack.c.b16 %v3057, %v3049
    %v3882 = vpack.c.b16 %v3066, %v3058
    %v3883 = vpack.c.b16 %v3067, %v3059
    %v3884 = vpack.c.b16 %v3068, %v3060
    %v3885 = vpack.c.b16 %v3069, %v3061
    %v3886 = vpack.c.b16 %v3070, %v3062
    %v3887 = vpack.c.b16 %v3071, %v3063
    %v3888 = vpack.c.b16 %v3072, %v3064
    %v3889 = vpack.c.b16 %v3073, %v3065
    %v3890 = vpack.c.b16 %v3082, %v3074
    %v3891 = vpack.c.b16 %v3083, %v3075
    %v3892 = vpack.c.b16 %v3084, %v3076
    %v3893 = vpack.c.b16 %v3085, %v3077
    %v3894 = vpack.c.b16 %v3086, %v3078
    %v3895 = vpack.c.b16 %v3087, %v3079
    %v3896 = vpack.c.b16 %v3088, %v3080
    %v3897 = vpack.c.b16 %v3089, %v3081
    %v3898 = vpack.c.b16 %v3098, %v3090
    %v3899 = vpack.c.b16 %v3099, %v3091
    %v3900 = vpack.c.b16 %v3100, %v3092
    %v3901 = vpack.c.b16 %v3101, %v3093
    %v3902 = vpack.c.b16 %v3102, %v3094
    %v3903 = vpack.c.b16 %v3103, %v3095
    %v3904 = vpack.c.b16 %v3104, %v3096
    %v3905 = vpack.c.b16 %v3105, %v3097
    %v3906 = vpack.c.b16 %v3114, %v3106
    %v3907 = vpack.c.b16 %v3115, %v3107
    %v3908 = vpack.c.b16 %v3116, %v3108
    %v3909 = vpack.c.b16 %v3117, %v3109
    %v3910 = vpack.c.b16 %v3118, %v3110
    %v3911 = vpack.c.b16 %v3119, %v3111
    %v3912 = vpack.c.b16 %v3120, %v3112
    %v3913 = vpack.c.b16 %v3121, %v3113
    %v3914 = vpack.c.b16 %v3130, %v3122
    %v3915 = vpack.c.b16 %v3131, %v3123
    %v3916 = vpack.c.b16 %v3132, %v3124
    %v3917 = vpack.c.b16 %v3133, %v3125
    %v3918 = vpack.c.b16 %v3134, %v3126
    %v3919 = vpack.c.b16 %v3135, %v3127
    %v3920 = vpack.c.b16 %v3136, %v3128
    %v3921 = vpack.c.b16 %v3137, %v3129
    %v3922 = vpack.c.b16 %v3146, %v3138
    %v3923 = vpack.c.b16 %v3147, %v3139
    %v3924 = vpack.c.b16 %v3148, %v3140
    %v3925 = vpack.c.b16 %v3149, %v3141
    %v3926 = vpack.c.b16 %v3150, %v3142
    %v3927 = vpack.c.b16 %v3151, %v3143
    %v3928 = vpack.c.b16 %v3152, %v3144
    %v3929 = vpack.c.b16 %v3153, %v3145
    %v3930 = vpack.c.b16 %v3162, %v3154
    %v3931 = vpack.c.b16 %v3163, %v3155
    %v3932 = vpack.c.b16 %v3164, %v3156
    %v3933 = vpack.c.b16 %v3165, %v3157
    %v3934 = vpack.c.b16 %v3166, %v3158
    %v3935 = vpack.c.b16 %v3167, %v3159
    %v3936 = vpack.c.b16 %v3168, %v3160
    %v3937 = vpack.c.b16 %v3169, %v3161
    %v3938 = vpack.c.b16 %v3178, %v3170
    %v3939 = vpack.c.b16 %v3179, %v3171
    %v3940 = vpack.c.b16 %v3180, %v3172
    %v3941 = vpack.c.b16 %v3181, %v3173
    %v3942 = vpack.c.b16 %v3182, %v3174
    %v3943 = vpack.c.b16 %v3183, %v3175
    %v3944 = vpack.c.b16 %v3184, %v3176
    %v3945 = vpack.c.b16 %v3185, %v3177
    %v3946 = vpack.c.b16 %v3194, %v3186
    %v3947 = vpack.c.b16 %v3195, %v3187
    %v3948 = vpack.c.b16 %v3196, %v3188
    %v3949 = vpack.c.b16 %v3197, %v3189
    %v3950 = vpack.c.b16 %v3198, %v3190
    %v3951 = vpack.c.b16 %v3199, %v3191
    %v3952 = vpack.c.b16 %v3200, %v3192
    %v3953 = vpack.c.b16 %v3201, %v3193
    %v3954 = vpack.c.b16 %v3210, %v3202
    %v3955 = vpack.c.b16 %v3211, %v3203
    %v3956 = vpack.c.b16 %v3212, %v3204
    %v3957 = vpack.c.b16 %v3213, %v3205
    %v3958 = vpack.c.b16 %v3214, %v3206
    %v3959 = vpack.c.b16 %v3215, %v3207
    %v3960 = vpack.c.b16 %v3216, %v3208
    %v3961 = vpack.c.b16 %v3217, %v3209
    %v3962 = vpack.c.b16 %v3226, %v3218
    %v3963 = vpack.c.b16 %v3227, %v3219
    %v3964 = vpack.c.b16 %v3228, %v3220
    %v3965 = vpack.c.b16 %v3229, %v3221
    %v3966 = vpack.c.b16 %v3230, %v3222
    %v3967 = vpack.c.b16 %v3231, %v3223
    %v3968 = vpack.c.b16 %v3232, %v3224
    %v3969 = vpack.c.b16 %v3233, %v3225
    %v3970 = vpack.c.b16 %v3242, %v3234
    %v3971 = vpack.c.b16 %v3243, %v3235
    %v3972 = vpack.c.b16 %v3244, %v3236
    %v3973 = vpack.c.b16 %v3245, %v3237
    %v3974 = vpack.c.b16 %v3246, %v3238
    %v3975 = vpack.c.b16 %v3247, %v3239
    %v3976 = vpack.c.b16 %v3248, %v3240
    %v3977 = vpack.c.b16 %v3249, %v3241
    %v3978 = vpack.c.b16 %v3258, %v3250
    %v3979 = vpack.c.b16 %v3259, %v3251
    %v3980 = vpack.c.b16 %v3260, %v3252
    %v3981 = vpack.c.b16 %v3261, %v3253
    %v3982 = vpack.c.b16 %v3262, %v3254
    %v3983 = vpack.c.b16 %v3263, %v3255
    %v3984 = vpack.c.b16 %v3264, %v3256
    %v3985 = vpack.c.b16 %v3265, %v3257
    %v3986 = vpack.c.b16 %v3274, %v3266
    %v3987 = vpack.c.b16 %v3275, %v3267
    %v3988 = vpack.c.b16 %v3276, %v3268
    %v3989 = vpack.c.b16 %v3277, %v3269
    %v3990 = vpack.c.b16 %v3278, %v3270
    %v3991 = vpack.c.b16 %v3279, %v3271
    %v3992 = vpack.c.b16 %v3280, %v3272
    %v3993 = vpack.c.b16 %v3281, %v3273
    %v3994 = vpack.c.b16 %v3290, %v3282
    %v3995 = vpack.c.b16 %v3291, %v3283
    %v3996 = vpack.c.b16 %v3292, %v3284
    %v3997 = vpack.c.b16 %v3293, %v3285
    %v3998 = vpack.c.b16 %v3294, %v3286
    %v3999 = vpack.c.b16 %v3295, %v3287
    %v4000 = vpack.c.b16 %v3296, %v3288
    %v4001 = vpack.c.b16 %v3297, %v3289
    %v4002 = vpack.c.b16 %v3306, %v3298
    %v4003 = vpack.c.b16 %v3307, %v3299
    %v4004 = vpack.c.b16 %v3308, %v3300
    %v4005 = vpack.c.b16 %v3309, %v3301
    %v4006 = vpack.c.b16 %v3310, %v3302
    %v4007 = vpack.c.b16 %v3311, %v3303
    %v4008 = vpack.c.b16 %v3312, %v3304
    %v4009 = vpack.c.b16 %v3313, %v3305
    %v4010 = vpack.c.b16 %v3322, %v3314
    %v4011 = vpack.c.b16 %v3323, %v3315
    %v4012 = vpack.c.b16 %v3324, %v3316
    %v4013 = vpack.c.b16 %v3325, %v3317
    %v4014 = vpack.c.b16 %v3326, %v3318
    %v4015 = vpack.c.b16 %v3327, %v3319
    %v4016 = vpack.c.b16 %v3328, %v3320
    %v4017 = vpack.c.b16 %v3329, %v3321
    %v4018 = vpack.c.b16 %v3338, %v3330
    %v4019 = vpack.c.b16 %v3339, %v3331
    %v4020 = vpack.c.b16 %v3340, %v3332
    %v4021 = vpack.c.b16 %v3341, %v3333
    %v4022 = vpack.c.b16 %v3342, %v3334
    %v4023 = vpack.c.b16 %v3343, %v3335
    %v4024 = vpack.c.b16 %v3344, %v3336
    %v4025 = vpack.c.b16 %v3345, %v3337
    %v4026 = vpack.c.b16 %v3354, %v3346
    %v4027 = vpack.c.b16 %v3355, %v3347
    %v4028 = vpack.c.b16 %v3356, %v3348
    %v4029 = vpack.c.b16 %v3357, %v3349
    %v4030 = vpack.c.b16 %v3358, %v3350
    %v4031 = vpack.c.b16 %v3359, %v3351
    %v4032 = vpack.c.b16 %v3360, %v3352
    %v4033 = vpack.c.b16 %v3361, %v3353
    %v4034 = vpack.c.b16 %v3370, %v3362
    %v4035 = vpack.c.b16 %v3371, %v3363
    %v4036 = vpack.c.b16 %v3372, %v3364
    %v4037 = vpack.c.b16 %v3373, %v3365
    %v4038 = vpack.c.b16 %v3374, %v3366
    %v4039 = vpack.c.b16 %v3375, %v3367
    %v4040 = vpack.c.b16 %v3376, %v3368
    %v4041 = vpack.c.b16 %v3377, %v3369
    %v4042 = vpack.c.b16 %v3386, %v3378
    %v4043 = vpack.c.b16 %v3387, %v3379
    %v4044 = vpack.c.b16 %v3388, %v3380
    %v4045 = vpack.c.b16 %v3389, %v3381
    %v4046 = vpack.c.b16 %v3390, %v3382
    %v4047 = vpack.c.b16 %v3391, %v3383
    %v4048 = vpack.c.b16 %v3392, %v3384
    %v4049 = vpack.c.b16 %v3393, %v3385
    %v4050 = vpack.c.b16 %v3402, %v3394
    %v4051 = vpack.c.b16 %v3403, %v3395
    %v4052 = vpack.c.b16 %v3404, %v3396
    %v4053 = vpack.c.b16 %v3405, %v3397
    %v4054 = vpack.c.b16 %v3406, %v3398
    %v4055 = vpack.c.b16 %v3407, %v3399
    %v4056 = vpack.c.b16 %v3408, %v3400
    %v4057 = vpack.c.b16 %v3409, %v3401
    %v4058 = vpack.c.b16 %v3418, %v3410
    %v4059 = vpack.c.b16 %v3419, %v3411
    %v4060 = vpack.c.b16 %v3420, %v3412
    %v4061 = vpack.c.b16 %v3421, %v3413
    %v4062 = vpack.c.b16 %v3422, %v3414
    %v4063 = vpack.c.b16 %v3423, %v3415
    %v4064 = vpack.c.b16 %v3424, %v3416
    %v4065 = vpack.c.b16 %v3425, %v3417
    %v4066 = vpack.c.b16 %v3434, %v3426
    %v4067 = vpack.c.b16 %v3435, %v3427
    %v4068 = vpack.c.b16 %v3436, %v3428
    %v4069 = vpack.c.b16 %v3437, %v3429
    %v4070 = vpack.c.b16 %v3438, %v3430
    %v4071 = vpack.c.b16 %v3439, %v3431
    %v4072 = vpack.c.b16 %v3440, %v3432
    %v4073 = vpack.c.b16 %v3441, %v3433
    %v4074 = vpack.c.b16 %v3450, %v3442
    %v4075 = vpack.c.b16 %v3451, %v3443
    %v4076 = vpack.c.b16 %v3452, %v3444
    %v4077 = vpack.c.b16 %v3453, %v3445
    %v4078 = vpack.c.b16 %v3454, %v3446
    %v4079 = vpack.c.b16 %v3455, %v3447
    %v4080 = vpack.c.b16 %v3456, %v3448
    %v4081 = vpack.c.b16 %v3457, %v3449
    %v4082 = vpack.c.b16 %v3466, %v3458
    %v4083 = vpack.c.b16 %v3467, %v3459
    %v4084 = vpack.c.b16 %v3468, %v3460
    %v4085 = vpack.c.b16 %v3469, %v3461
    %v4086 = vpack.c.b16 %v3470, %v3462
    %v4087 = vpack.c.b16 %v3471, %v3463
    %v4088 = vpack.c.b16 %v3472, %v3464
    %v4089 = vpack.c.b16 %v3473, %v3465
    %v4090 = vpack.c.b16 %v3482, %v3474
    %v4091 = vpack.c.b16 %v3483, %v3475
    %v4092 = vpack.c.b16 %v3484, %v3476
    %v4093 = vpack.c.b16 %v3485, %v3477
    %v4094 = vpack.c.b16 %v3486, %v3478
    %v4095 = vpack.c.b16 %v3487, %v3479
    %v4096 = vpack.c.b16 %v3488, %v3480
    %v4097 = vpack.c.b16 %v3489, %v3481
    %v4098 = vpack.c.b16 %v3498, %v3490
    %v4099 = vpack.c.b16 %v3499, %v3491
    %v4100 = vpack.c.b16 %v3500, %v3492
    %v4101 = vpack.c.b16 %v3501, %v3493
    %v4102 = vpack.c.b16 %v3502, %v3494
    %v4103 = vpack.c.b16 %v3503, %v3495
    %v4104 = vpack.c.b16 %v3504, %v3496
    %v4105 = vpack.c.b16 %v3505, %v3497
    %v4106 = vpack.c.b16 %v3514, %v3506
    %v4107 = vpack.c.b16 %v3515, %v3507
    %v4108 = vpack.c.b16 %v3516, %v3508
    %v4109 = vpack.c.b16 %v3517, %v3509
    %v4110 = vpack.c.b16 %v3518, %v3510
    %v4111 = vpack.c.b16 %v3519, %v3511
    %v4112 = vpack.c.b16 %v3520, %v3512
    %v4113 = vpack.c.b16 %v3521, %v3513
    %v4114 = vpack.c.b16 %v3530, %v3522
    %v4115 = vpack.c.b16 %v3531, %v3523
    %v4116 = vpack.c.b16 %v3532, %v3524
    %v4117 = vpack.c.b16 %v3533, %v3525
    %v4118 = vpack.c.b16 %v3534, %v3526
    %v4119 = vpack.c.b16 %v3535, %v3527
    %v4120 = vpack.c.b16 %v3536, %v3528
    %v4121 = vpack.c.b16 %v3537, %v3529
    %v4122 = vpack.c.b16 %v3546, %v3538
    %v4123 = vpack.c.b16 %v3547, %v3539
    %v4124 = vpack.c.b16 %v3548, %v3540
    %v4125 = vpack.c.b16 %v3549, %v3541
    %v4126 = vpack.c.b16 %v3550, %v3542
    %v4127 = vpack.c.b16 %v3551, %v3543
    %v4128 = vpack.c.b16 %v3552, %v3544
    %v4129 = vpack.c.b16 %v3553, %v3545
    %v4130 = vpack.c.b16 %v3562, %v3554
    %v4131 = vpack.c.b16 %v3563, %v3555
    %v4132 = vpack.c.b16 %v3564, %v3556
    %v4133 = vpack.c.b16 %v3565, %v3557
    %v4134 = vpack.c.b16 %v3566, %v3558
    %v4135 = vpack.c.b16 %v3567, %v3559
    %v4136 = vpack.c.b16 %v3568, %v3560
    %v4137 = vpack.c.b16 %v3569, %v3561
    %v4138 = vpack.c.b16 %v3578, %v3570
    %v4139 = vpack.c.b16 %v3579, %v3571
    %v4140 = vpack.c.b16 %v3580, %v3572
    %v4141 = vpack.c.b16 %v3581, %v3573
    %v4142 = vpack.c.b16 %v3582, %v3574
    %v4143 = vpack.c.b16 %v3583, %v3575
    %v4144 = vpack.c.b16 %v3584, %v3576
    %v4145 = vpack.c.b16 %v3585, %v3577
    %v4146 = vpack.c.b16 %v3594, %v3586
    %v4147 = vpack.c.b16 %v3595, %v3587
    %v4148 = vpack.c.b16 %v3596, %v3588
    %v4149 = vpack.c.b16 %v3597, %v3589
    %v4150 = vpack.c.b16 %v3598, %v3590
    %v4151 = vpack.c.b16 %v3599, %v3591
    %v4152 = vpack.c.b16 %v3600, %v3592
    %v4153 = vpack.c.b16 %v3601, %v3593
    %v4154 = vpack.c.b16 %v3610, %v3602
    %v4155 = vpack.c.b16 %v3611, %v3603
    %v4156 = vpack.c.b16 %v3612, %v3604
    %v4157 = vpack.c.b16 %v3613, %v3605
    %v4158 = vpack.c.b16 %v3614, %v3606
    %v4159 = vpack.c.b16 %v3615, %v3607
    %v4160 = vpack.c.b16 %v3616, %v3608
    %v4161 = vpack.c.b16 %v3617, %v3609
    %v4162 = vpack.c.b16 %v3626, %v3618
    %v4163 = vpack.c.b16 %v3627, %v3619
    %v4164 = vpack.c.b16 %v3628, %v3620
    %v4165 = vpack.c.b16 %v3629, %v3621
    %v4166 = vpack.c.b16 %v3630, %v3622
    %v4167 = vpack.c.b16 %v3631, %v3623
    %v4168 = vpack.c.b16 %v3632, %v3624
    %v4169 = vpack.c.b16 %v3633, %v3625
    %v4170 = vpack.c.b16 %v3642, %v3634
    %v4171 = vpack.c.b16 %v3643, %v3635
    %v4172 = vpack.c.b16 %v3644, %v3636
    %v4173 = vpack.c.b16 %v3645, %v3637
    %v4174 = vpack.c.b16 %v3646, %v3638
    %v4175 = vpack.c.b16 %v3647, %v3639
    %v4176 = vpack.c.b16 %v3648, %v3640
    %v4177 = vpack.c.b16 %v3649, %v3641
    %v4178 = vpack.c.b16 %v3658, %v3650
    %v4179 = vpack.c.b16 %v3659, %v3651
    %v4180 = vpack.c.b16 %v3660, %v3652
    %v4181 = vpack.c.b16 %v3661, %v3653
    %v4182 = vpack.c.b16 %v3662, %v3654
    %v4183 = vpack.c.b16 %v3663, %v3655
    %v4184 = vpack.c.b16 %v3664, %v3656
    %v4185 = vpack.c.b16 %v3665, %v3657
    %v4186 = vpack.c.b16 %v3674, %v3666
    %v4187 = vpack.c.b16 %v3675, %v3667
    %v4188 = vpack.c.b16 %v3676, %v3668
    %v4189 = vpack.c.b16 %v3677, %v3669
    %v4190 = vpack.c.b16 %v3678, %v3670
    %v4191 = vpack.c.b16 %v3679, %v3671
    %v4192 = vpack.c.b16 %v3680, %v3672
    %v4193 = vpack.c.b16 %v3681, %v3673
    %4706 = vmatprep.subr.bf16.mxu0 %v3683
    %4707 = vmatpush1.bf16.msra.mxu0 %v3682
    %4708 = vmatprep.subr.bf16.mxu0 %v3691
    %4709 = vmatpush1.bf16.msra.mxu0 %v3690
    %4710 = vmatprep.subr.bf16.mxu0 %v3699
    %4711 = vmatpush1.bf16.msra.mxu0 %v3698
    %4712 = vmatprep.subr.bf16.mxu0 %v3707
    %4713 = vmatpush1.bf16.msra.mxu0 %v3706
    %4714 = vmatprep.subr.bf16.mxu0 %v3715
    %4715 = vmatpush1.bf16.msra.mxu0 %v3714
    %4716 = vmatprep.subr.bf16.mxu0 %v3723
    %4717 = vmatpush1.bf16.msra.mxu0 %v3722
    %4718 = vmatprep.subr.bf16.mxu0 %v3731
    %4719 = vmatpush1.bf16.msra.mxu0 %v3730
    %4720 = vmatprep.subr.bf16.mxu0 %v3739
    %4721 = vmatpush1.bf16.msra.mxu0 %v3738
    %4722 = vmatprep.subr.bf16.mxu0 %v3747
    %4723 = vmatpush1.bf16.msra.mxu0 %v3746
    %4724 = vmatprep.subr.bf16.mxu0 %v3755
    %4725 = vmatpush1.bf16.msra.mxu0 %v3754
    %4726 = vmatprep.subr.bf16.mxu0 %v3763
    %4727 = vmatpush1.bf16.msra.mxu0 %v3762
    %4728 = vmatprep.subr.bf16.mxu0 %v3771
    %4729 = vmatpush1.bf16.msra.mxu0 %v3770
    %4730 = vmatprep.subr.bf16.mxu0 %v3779
    %4731 = vmatpush1.bf16.msra.mxu0 %v3778
    %4732 = vmatprep.subr.bf16.mxu0 %v3787
    %4733 = vmatpush1.bf16.msra.mxu0 %v3786
    %4734 = vmatprep.subr.bf16.mxu0 %v3795
    %4735 = vmatpush1.bf16.msra.mxu0 %v3794
    %4736 = vmatprep.subr.bf16.mxu0 %v3803
    %4737 = vmatpush1.bf16.msra.mxu0 %v3802
    %4738 = vmatprep.mubr.bf16.mxu0 %v1529
    %4739 = vmatmul.mubr.bf16.gmra.mrb[0].mxu0 %v1528
    %v4740 = vpop.f32.mrb[0].mxu0
    %v4741 = vadd.f32 %v2109, %v4740
    %v4742 = vpop.f32.mrb[0].mxu0
    %v4743 = vadd.f32 %v2113, %v4742
    %v4744 = vpop.f32.mrb[0].mxu0
    %v4745 = vadd.f32 %v2109, %v4744
    %v4746 = vpop.f32.mrb[0].mxu0
    %v4747 = vadd.f32 %v2113, %v4746
    %4748 = vmatprep.mubr.bf16.mxu0 %v1537
    %4749 = vmatmul.mubr.bf16.gmra.mrb[0].mxu0 %v1536
    %v4750 = vpop.f32.mrb[0].mxu0
    %v4751 = vadd.f32 %v2109, %v4750
    %v4752 = vpop.f32.mrb[0].mxu0
    %v4753 = vadd.f32 %v2113, %v4752
    %v4754 = vpop.f32.mrb[0].mxu0
    %v4755 = vadd.f32 %v2109, %v4754
    %v4756 = vpop.f32.mrb[0].mxu0
    %v4757 = vadd.f32 %v2113, %v4756
    %4758 = vmatprep.mubr.bf16.mxu0 %v1545
    %4759 = vmatmul.mubr.bf16.gmra.mrb[0].mxu0 %v1544
    %v4760 = vpop.f32.mrb[0].mxu0
    %v4761 = vadd.f32 %v2109, %v4760
    %v4762 = vpop.f32.mrb[0].mxu0
    %v4763 = vadd.f32 %v2113, %v4762
    %v4764 = vpop.f32.mrb[0].mxu0
    %v4765 = vadd.f32 %v2109, %v4764
    %v4766 = vpop.f32.mrb[0].mxu0
    %v4767 = vadd.f32 %v2113, %v4766
    %4768 = vmatprep.mubr.bf16.mxu0 %v1553
    %4769 = vmatmul.mubr.bf16.gmra.mrb[0].mxu0 %v1552
    %v4770 = vpop.f32.mrb[0].mxu0
    %v4771 = vadd.f32 %v2109, %v4770
    %v4772 = vpop.f32.mrb[0].mxu0
    %v4773 = vadd.f32 %v2113, %v4772
    %v4774 = vpop.f32.mrb[0].mxu0
    %v4775 = vadd.f32 %v2109, %v4774
    %v4776 = vpop.f32.mrb[0].mxu0
    %v4777 = vadd.f32 %v2113, %v4776
    %4778 = vmatprep.mubr.bf16.mxu0 %v1561
    %4779 = vmatmul.mubr.bf16.gmra.mrb[0].mxu0 %v1560
    %v4780 = vpop.f32.mrb[0].mxu0
    %v4781 = vadd.f32 %v2109, %v4780
    %v4782 = vpop.f32.mrb[0].mxu0
    %v4783 = vadd.f32 %v2113, %v4782
    %v4784 = vpop.f32.mrb[0].mxu0
    %v4785 = vadd.f32 %v2109, %v4784
    %v4786 = vpop.f32.mrb[0].mxu0
    %v4787 = vadd.f32 %v2113, %v4786
    %4788 = vmatprep.mubr.bf16.mxu0 %v1569
    %4789 = vmatmul.mubr.bf16.gmra.mrb[0].mxu0 %v1568
    %v4790 = vpop.f32.mrb[0].mxu0
    %v4791 = vadd.f32 %v2109, %v4790
    %v4792 = vpop.f32.mrb[0].mxu0
    %v4793 = vadd.f32 %v2113, %v4792
    %v4794 = vpop.f32.mrb[0].mxu0
    %v4795 = vadd.f32 %v2109, %v4794
    %v4796 = vpop.f32.mrb[0].mxu0
    %v4797 = vadd.f32 %v2113, %v4796
    %4798 = vmatprep.mubr.bf16.mxu0 %v1577
    %4799 = vmatmul.mubr.bf16.gmra.mrb[0].mxu0 %v1576
    %v4800 = vpop.f32.mrb[0].mxu0
    %v4801 = vadd.f32 %v2109, %v4800
    %v4802 = vpop.f32.mrb[0].mxu0
    %v4803 = vadd.f32 %v2113, %v4802
    %v4804 = vpop.f32.mrb[0].mxu0
    %v4805 = vadd.f32 %v2109, %v4804
    %v4806 = vpop.f32.mrb[0].mxu0
    %v4807 = vadd.f32 %v2113, %v4806
    %4808 = vmatprep.mubr.bf16.mxu0 %v1585
    %4809 = vmatmul.mubr.bf16.gmra.mrb[0].mxu0 %v1584
    %v4810 = vpop.f32.mrb[0].mxu0
    %v4811 = vadd.f32 %v2109, %v4810
    %v4812 = vpop.f32.mrb[0].mxu0
    %v4813 = vadd.f32 %v2113, %v4812
    %v4814 = vpop.f32.mrb[0].mxu0
    %v4815 = vadd.f32 %v2109, %v4814
    %v4816 = vpop.f32.mrb[0].mxu0
    %v4817 = vadd.f32 %v2113, %v4816
    %4818 = vdwg.mxu0
    %4819 = vmatprep.subr.bf16.mxu0 %v3811
    %4820 = vmatpush1.bf16.msra.mxu0 %v3810
    %4821 = vmatprep.subr.bf16.mxu0 %v3819
    %4822 = vmatpush1.bf16.msra.mxu0 %v3818
    %4823 = vmatprep.subr.bf16.mxu0 %v3827
    %4824 = vmatpush1.bf16.msra.mxu0 %v3826
    %4825 = vmatprep.subr.bf16.mxu0 %v3835
    %4826 = vmatpush1.bf16.msra.mxu0 %v3834
    %4827 = vmatprep.subr.bf16.mxu0 %v3843
    %4828 = vmatpush1.bf16.msra.mxu0 %v3842
    %4829 = vmatprep.subr.bf16.mxu0 %v3851
    %4830 = vmatpush1.bf16.msra.mxu0 %v3850
    %4831 = vmatprep.subr.bf16.mxu0 %v3859
    %4832 = vmatpush1.bf16.msra.mxu0 %v3858
    %4833 = vmatprep.subr.bf16.mxu0 %v3867
    %4834 = vmatpush1.bf16.msra.mxu0 %v3866
    %4835 = vmatprep.subr.bf16.mxu0 %v3875
    %4836 = vmatpush1.bf16.msra.mxu0 %v3874
    %4837 = vmatprep.subr.bf16.mxu0 %v3883
    %4838 = vmatpush1.bf16.msra.mxu0 %v3882
    %4839 = vmatprep.subr.bf16.mxu0 %v3891
    %4840 = vmatpush1.bf16.msra.mxu0 %v3890
    %4841 = vmatprep.subr.bf16.mxu0 %v3899
    %4842 = vmatpush1.bf16.msra.mxu0 %v3898
    %4843 = vmatprep.subr.bf16.mxu0 %v3907
    %4844 = vmatpush1.bf16.msra.mxu0 %v3906
    %4845 = vmatprep.subr.bf16.mxu0 %v3915
    %4846 = vmatpush1.bf16.msra.mxu0 %v3914
    %4847 = vmatprep.subr.bf16.mxu0 %v3923
    %4848 = vmatpush1.bf16.msra.mxu0 %v3922
    %4849 = vmatprep.subr.bf16.mxu0 %v3931
    %4850 = vmatpush1.bf16.msra.mxu0 %v3930
    %4851 = vmatprep.mubr.bf16.mxu0 %v1531
    %4852 = vmatmul.mubr.bf16.gmra.mrb[0].mxu0 %v1530
    %v4853 = vpop.f32.mrb[0].mxu0
    %v4854 = vadd.f32 %v4741, %v4853
    %v4855 = vpop.f32.mrb[0].mxu0
    %v4856 = vadd.f32 %v4743, %v4855
    %v4857 = vpop.f32.mrb[0].mxu0
    %v4858 = vadd.f32 %v4745, %v4857
    %v4859 = vpop.f32.mrb[0].mxu0
    %v4860 = vadd.f32 %v4747, %v4859
    %4861 = vmatprep.mubr.bf16.mxu0 %v1539
    %4862 = vmatmul.mubr.bf16.gmra.mrb[0].mxu0 %v1538
    %v4863 = vpop.f32.mrb[0].mxu0
    %v4864 = vadd.f32 %v4751, %v4863
    %v4865 = vpop.f32.mrb[0].mxu0
    %v4866 = vadd.f32 %v4753, %v4865
    %v4867 = vpop.f32.mrb[0].mxu0
    %v4868 = vadd.f32 %v4755, %v4867
    %v4869 = vpop.f32.mrb[0].mxu0
    %v4870 = vadd.f32 %v4757, %v4869
    %4871 = vmatprep.mubr.bf16.mxu0 %v1547
    %4872 = vmatmul.mubr.bf16.gmra.mrb[0].mxu0 %v1546
    %v4873 = vpop.f32.mrb[0].mxu0
    %v4874 = vadd.f32 %v4761, %v4873
    %v4875 = vpop.f32.mrb[0].mxu0
    %v4876 = vadd.f32 %v4763, %v4875
    %v4877 = vpop.f32.mrb[0].mxu0
    %v4878 = vadd.f32 %v4765, %v4877
    %v4879 = vpop.f32.mrb[0].mxu0
    %v4880 = vadd.f32 %v4767, %v4879
    %4881 = vmatprep.mubr.bf16.mxu0 %v1555
    %4882 = vmatmul.mubr.bf16.gmra.mrb[0].mxu0 %v1554
    %v4883 = vpop.f32.mrb[0].mxu0
    %v4884 = vadd.f32 %v4771, %v4883
    %v4885 = vpop.f32.mrb[0].mxu0
    %v4886 = vadd.f32 %v4773, %v4885
    %v4887 = vpop.f32.mrb[0].mxu0
    %v4888 = vadd.f32 %v4775, %v4887
    %v4889 = vpop.f32.mrb[0].mxu0
    %v4890 = vadd.f32 %v4777, %v4889
    %4891 = vmatprep.mubr.bf16.mxu0 %v1563
    %4892 = vmatmul.mubr.bf16.gmra.mrb[0].mxu0 %v1562
    %v4893 = vpop.f32.mrb[0].mxu0
    %v4894 = vadd.f32 %v4781, %v4893
    %v4895 = vpop.f32.mrb[0].mxu0
    %v4896 = vadd.f32 %v4783, %v4895
    %v4897 = vpop.f32.mrb[0].mxu0
    %v4898 = vadd.f32 %v4785, %v4897
    %v4899 = vpop.f32.mrb[0].mxu0
    %v4900 = vadd.f32 %v4787, %v4899
    %4901 = vmatprep.mubr.bf16.mxu0 %v1571
    %4902 = vmatmul.mubr.bf16.gmra.mrb[0].mxu0 %v1570
    %v4903 = vpop.f32.mrb[0].mxu0
    %v4904 = vadd.f32 %v4791, %v4903
    %v4905 = vpop.f32.mrb[0].mxu0
    %v4906 = vadd.f32 %v4793, %v4905
    %v4907 = vpop.f32.mrb[0].mxu0
    %v4908 = vadd.f32 %v4795, %v4907
    %v4909 = vpop.f32.mrb[0].mxu0
    %v4910 = vadd.f32 %v4797, %v4909
    %4911 = vmatprep.mubr.bf16.mxu0 %v1579
    %4912 = vmatmul.mubr.bf16.gmra.mrb[0].mxu0 %v1578
    %v4913 = vpop.f32.mrb[0].mxu0
    %v4914 = vadd.f32 %v4801, %v4913
    %v4915 = vpop.f32.mrb[0].mxu0
    %v4916 = vadd.f32 %v4803, %v4915
    %v4917 = vpop.f32.mrb[0].mxu0
    %v4918 = vadd.f32 %v4805, %v4917
    %v4919 = vpop.f32.mrb[0].mxu0
    %v4920 = vadd.f32 %v4807, %v4919
    %4921 = vmatprep.mubr.bf16.mxu0 %v1587
    %4922 = vmatmul.mubr.bf16.gmra.mrb[0].mxu0 %v1586
    %v4923 = vpop.f32.mrb[0].mxu0
    %v4924 = vadd.f32 %v4811, %v4923
    %v4925 = vpop.f32.mrb[0].mxu0
    %v4926 = vadd.f32 %v4813, %v4925
    %v4927 = vpop.f32.mrb[0].mxu0
    %v4928 = vadd.f32 %v4815, %v4927
    %v4929 = vpop.f32.mrb[0].mxu0
    %v4930 = vadd.f32 %v4817, %v4929
    %4931 = vdwg.mxu0
    %4932 = vmatprep.subr.bf16.mxu0 %v3939
    %4933 = vmatpush1.bf16.msra.mxu0 %v3938
    %4934 = vmatprep.subr.bf16.mxu0 %v3947
    %4935 = vmatpush1.bf16.msra.mxu0 %v3946
    %4936 = vmatprep.subr.bf16.mxu0 %v3955
    %4937 = vmatpush1.bf16.msra.mxu0 %v3954
    %4938 = vmatprep.subr.bf16.mxu0 %v3963
    %4939 = vmatpush1.bf16.msra.mxu0 %v3962
    %4940 = vmatprep.subr.bf16.mxu0 %v3971
    %4941 = vmatpush1.bf16.msra.mxu0 %v3970
    %4942 = vmatprep.subr.bf16.mxu0 %v3979
    %4943 = vmatpush1.bf16.msra.mxu0 %v3978
    %4944 = vmatprep.subr.bf16.mxu0 %v3987
    %4945 = vmatpush1.bf16.msra.mxu0 %v3986
    %4946 = vmatprep.subr.bf16.mxu0 %v3995
    %4947 = vmatpush1.bf16.msra.mxu0 %v3994
    %4948 = vmatprep.subr.bf16.mxu0 %v4003
    %4949 = vmatpush1.bf16.msra.mxu0 %v4002
    %4950 = vmatprep.subr.bf16.mxu0 %v4011
    %4951 = vmatpush1.bf16.msra.mxu0 %v4010
    %4952 = vmatprep.subr.bf16.mxu0 %v4019
    %4953 = vmatpush1.bf16.msra.mxu0 %v4018
    %4954 = vmatprep.subr.bf16.mxu0 %v4027
    %4955 = vmatpush1.bf16.msra.mxu0 %v4026
    %4956 = vmatprep.subr.bf16.mxu0 %v4035
    %4957 = vmatpush1.bf16.msra.mxu0 %v4034
    %4958 = vmatprep.subr.bf16.mxu0 %v4043
    %4959 = vmatpush1.bf16.msra.mxu0 %v4042
    %4960 = vmatprep.subr.bf16.mxu0 %v4051
    %4961 = vmatpush1.bf16.msra.mxu0 %v4050
    %4962 = vmatprep.subr.bf16.mxu0 %v4059
    %4963 = vmatpush1.bf16.msra.mxu0 %v4058
    %4964 = vmatprep.mubr.bf16.mxu0 %v1533
    %4965 = vmatmul.mubr.bf16.gmra.mrb[0].mxu0 %v1532
    %v4966 = vpop.f32.mrb[0].mxu0
    %v4967 = vadd.f32 %v4854, %v4966
    %v4968 = vpop.f32.mrb[0].mxu0
    %v4969 = vadd.f32 %v4856, %v4968
    %v4970 = vpop.f32.mrb[0].mxu0
    %v4971 = vadd.f32 %v4858, %v4970
    %v4972 = vpop.f32.mrb[0].mxu0
    %v4973 = vadd.f32 %v4860, %v4972
    %4974 = vmatprep.mubr.bf16.mxu0 %v1541
    %4975 = vmatmul.mubr.bf16.gmra.mrb[0].mxu0 %v1540
    %v4976 = vpop.f32.mrb[0].mxu0
    %v4977 = vadd.f32 %v4864, %v4976
    %v4978 = vpop.f32.mrb[0].mxu0
    %v4979 = vadd.f32 %v4866, %v4978
    %v4980 = vpop.f32.mrb[0].mxu0
    %v4981 = vadd.f32 %v4868, %v4980
    %v4982 = vpop.f32.mrb[0].mxu0
    %v4983 = vadd.f32 %v4870, %v4982
    %4984 = vmatprep.mubr.bf16.mxu0 %v1549
    %4985 = vmatmul.mubr.bf16.gmra.mrb[0].mxu0 %v1548
    %v4986 = vpop.f32.mrb[0].mxu0
    %v4987 = vadd.f32 %v4874, %v4986
    %v4988 = vpop.f32.mrb[0].mxu0
    %v4989 = vadd.f32 %v4876, %v4988
    %v4990 = vpop.f32.mrb[0].mxu0
    %v4991 = vadd.f32 %v4878, %v4990
    %v4992 = vpop.f32.mrb[0].mxu0
    %v4993 = vadd.f32 %v4880, %v4992
    %4994 = vmatprep.mubr.bf16.mxu0 %v1557
    %4995 = vmatmul.mubr.bf16.gmra.mrb[0].mxu0 %v1556
    %v4996 = vpop.f32.mrb[0].mxu0
    %v4997 = vadd.f32 %v4884, %v4996
    %v4998 = vpop.f32.mrb[0].mxu0
    %v4999 = vadd.f32 %v4886, %v4998
    %v5000 = vpop.f32.mrb[0].mxu0
    %v5001 = vadd.f32 %v4888, %v5000
    %v5002 = vpop.f32.mrb[0].mxu0
    %v5003 = vadd.f32 %v4890, %v5002
    %5004 = vmatprep.mubr.bf16.mxu0 %v1565
    %5005 = vmatmul.mubr.bf16.gmra.mrb[0].mxu0 %v1564
    %v5006 = vpop.f32.mrb[0].mxu0
    %v5007 = vadd.f32 %v4894, %v5006
    %v5008 = vpop.f32.mrb[0].mxu0
    %v5009 = vadd.f32 %v4896, %v5008
    %v5010 = vpop.f32.mrb[0].mxu0
    %v5011 = vadd.f32 %v4898, %v5010
    %v5012 = vpop.f32.mrb[0].mxu0
    %v5013 = vadd.f32 %v4900, %v5012
    %5014 = vmatprep.mubr.bf16.mxu0 %v1573
    %5015 = vmatmul.mubr.bf16.gmra.mrb[0].mxu0 %v1572
    %v5016 = vpop.f32.mrb[0].mxu0
    %v5017 = vadd.f32 %v4904, %v5016
    %v5018 = vpop.f32.mrb[0].mxu0
    %v5019 = vadd.f32 %v4906, %v5018
    %v5020 = vpop.f32.mrb[0].mxu0
    %v5021 = vadd.f32 %v4908, %v5020
    %v5022 = vpop.f32.mrb[0].mxu0
    %v5023 = vadd.f32 %v4910, %v5022
    %5024 = vmatprep.mubr.bf16.mxu0 %v1581
    %5025 = vmatmul.mubr.bf16.gmra.mrb[0].mxu0 %v1580
    %v5026 = vpop.f32.mrb[0].mxu0
    %v5027 = vadd.f32 %v4914, %v5026
    %v5028 = vpop.f32.mrb[0].mxu0
    %v5029 = vadd.f32 %v4916, %v5028
    %v5030 = vpop.f32.mrb[0].mxu0
    %v5031 = vadd.f32 %v4918, %v5030
    %v5032 = vpop.f32.mrb[0].mxu0
    %v5033 = vadd.f32 %v4920, %v5032
    %5034 = vmatprep.mubr.bf16.mxu0 %v1589
    %5035 = vmatmul.mubr.bf16.gmra.mrb[0].mxu0 %v1588
    %v5036 = vpop.f32.mrb[0].mxu0
    %v5037 = vadd.f32 %v4924, %v5036
    %v5038 = vpop.f32.mrb[0].mxu0
    %v5039 = vadd.f32 %v4926, %v5038
    %v5040 = vpop.f32.mrb[0].mxu0
    %v5041 = vadd.f32 %v4928, %v5040
    %v5042 = vpop.f32.mrb[0].mxu0
    %v5043 = vadd.f32 %v4930, %v5042
    %5044 = vdwg.mxu0
    %5045 = vmatprep.subr.bf16.mxu0 %v4067
    %5046 = vmatpush1.bf16.msra.mxu0 %v4066
    %5047 = vmatprep.subr.bf16.mxu0 %v4075
    %5048 = vmatpush1.bf16.msra.mxu0 %v4074
    %5049 = vmatprep.subr.bf16.mxu0 %v4083
    %5050 = vmatpush1.bf16.msra.mxu0 %v4082
    %5051 = vmatprep.subr.bf16.mxu0 %v4091
    %5052 = vmatpush1.bf16.msra.mxu0 %v4090
    %5053 = vmatprep.subr.bf16.mxu0 %v4099
    %5054 = vmatpush1.bf16.msra.mxu0 %v4098
    %5055 = vmatprep.subr.bf16.mxu0 %v4107
    %5056 = vmatpush1.bf16.msra.mxu0 %v4106
    %5057 = vmatprep.subr.bf16.mxu0 %v4115
    %5058 = vmatpush1.bf16.msra.mxu0 %v4114
    %5059 = vmatprep.subr.bf16.mxu0 %v4123
    %5060 = vmatpush1.bf16.msra.mxu0 %v4122
    %5061 = vmatprep.subr.bf16.mxu0 %v4131
    %5062 = vmatpush1.bf16.msra.mxu0 %v4130
    %5063 = vmatprep.subr.bf16.mxu0 %v4139
    %5064 = vmatpush1.bf16.msra.mxu0 %v4138
    %5065 = vmatprep.subr.bf16.mxu0 %v4147
    %5066 = vmatpush1.bf16.msra.mxu0 %v4146
    %5067 = vmatprep.subr.bf16.mxu0 %v4155
    %5068 = vmatpush1.bf16.msra.mxu0 %v4154
    %5069 = vmatprep.subr.bf16.mxu0 %v4163
    %5070 = vmatpush1.bf16.msra.mxu0 %v4162
    %5071 = vmatprep.subr.bf16.mxu0 %v4171
    %5072 = vmatpush1.bf16.msra.mxu0 %v4170
    %5073 = vmatprep.subr.bf16.mxu0 %v4179
    %5074 = vmatpush1.bf16.msra.mxu0 %v4178
    %5075 = vmatprep.subr.bf16.mxu0 %v4187
    %5076 = vmatpush1.bf16.msra.mxu0 %v4186
    %5077 = vmatprep.mubr.bf16.mxu0 %v1535
    %5078 = vmatmul.mubr.bf16.gmra.mrb[0].mxu0 %v1534
    %v5079 = vpop.f32.mrb[0].mxu0
    %v5080 = vadd.f32 %v4967, %v5079
    %v5081 = vpop.f32.mrb[0].mxu0
    %v5082 = vadd.f32 %v4969, %v5081
    %v5083 = vpop.f32.mrb[0].mxu0
    %v5084 = vadd.f32 %v4971, %v5083
    %v5085 = vpop.f32.mrb[0].mxu0
    %v5086 = vadd.f32 %v4973, %v5085
    %5087 = vmatprep.mubr.bf16.mxu0 %v1543
    %5088 = vmatmul.mubr.bf16.gmra.mrb[0].mxu0 %v1542
    %v5089 = vpop.f32.mrb[0].mxu0
    %v5090 = vadd.f32 %v4977, %v5089
    %v5091 = vpop.f32.mrb[0].mxu0
    %v5092 = vadd.f32 %v4979, %v5091
    %v5093 = vpop.f32.mrb[0].mxu0
    %v5094 = vadd.f32 %v4981, %v5093
    %v5095 = vpop.f32.mrb[0].mxu0
    %v5096 = vadd.f32 %v4983, %v5095
    %5097 = vmatprep.mubr.bf16.mxu0 %v1551
    %5098 = vmatmul.mubr.bf16.gmra.mrb[0].mxu0 %v1550
    %v5099 = vpop.f32.mrb[0].mxu0
    %v5100 = vadd.f32 %v4987, %v5099
    %v5101 = vpop.f32.mrb[0].mxu0
    %v5102 = vadd.f32 %v4989, %v5101
    %v5103 = vpop.f32.mrb[0].mxu0
    %v5104 = vadd.f32 %v4991, %v5103
    %v5105 = vpop.f32.mrb[0].mxu0
    %v5106 = vadd.f32 %v4993, %v5105
    %5107 = vmatprep.mubr.bf16.mxu0 %v1559
    %5108 = vmatmul.mubr.bf16.gmra.mrb[0].mxu0 %v1558
    %v5109 = vpop.f32.mrb[0].mxu0
    %v5110 = vadd.f32 %v4997, %v5109
    %v5111 = vpop.f32.mrb[0].mxu0
    %v5112 = vadd.f32 %v4999, %v5111
    %v5113 = vpop.f32.mrb[0].mxu0
    %v5114 = vadd.f32 %v5001, %v5113
    %v5115 = vpop.f32.mrb[0].mxu0
    %v5116 = vadd.f32 %v5003, %v5115
    %5117 = vmatprep.mubr.bf16.mxu0 %v1567
    %5118 = vmatmul.mubr.bf16.gmra.mrb[0].mxu0 %v1566
    %v5119 = vpop.f32.mrb[0].mxu0
    %v5120 = vadd.f32 %v5007, %v5119
    %v5121 = vpop.f32.mrb[0].mxu0
    %v5122 = vadd.f32 %v5009, %v5121
    %v5123 = vpop.f32.mrb[0].mxu0
    %v5124 = vadd.f32 %v5011, %v5123
    %v5125 = vpop.f32.mrb[0].mxu0
    %v5126 = vadd.f32 %v5013, %v5125
    %5127 = vmatprep.mubr.bf16.mxu0 %v1575
    %5128 = vmatmul.mubr.bf16.gmra.mrb[0].mxu0 %v1574
    %v5129 = vpop.f32.mrb[0].mxu0
    %v5130 = vadd.f32 %v5017, %v5129
    %v5131 = vpop.f32.mrb[0].mxu0
    %v5132 = vadd.f32 %v5019, %v5131
    %v5133 = vpop.f32.mrb[0].mxu0
    %v5134 = vadd.f32 %v5021, %v5133
    %v5135 = vpop.f32.mrb[0].mxu0
    %v5136 = vadd.f32 %v5023, %v5135
    %5137 = vmatprep.mubr.bf16.mxu0 %v1583
    %5138 = vmatmul.mubr.bf16.gmra.mrb[0].mxu0 %v1582
    %v5139 = vpop.f32.mrb[0].mxu0
    %v5140 = vadd.f32 %v5027, %v5139
    %v5141 = vpop.f32.mrb[0].mxu0
    %v5142 = vadd.f32 %v5029, %v5141
    %v5143 = vpop.f32.mrb[0].mxu0
    %v5144 = vadd.f32 %v5031, %v5143
    %v5145 = vpop.f32.mrb[0].mxu0
    %v5146 = vadd.f32 %v5033, %v5145
    %5147 = vmatprep.mubr.bf16.mxu0 %v1591
    %5148 = vmatmul.mubr.bf16.gmra.mrb[0].mxu0 %v1590
    %v5149 = vpop.f32.mrb[0].mxu0
    %v5150 = vadd.f32 %v5037, %v5149
    %v5151 = vpop.f32.mrb[0].mxu0
    %v5152 = vadd.f32 %v5039, %v5151
    %v5153 = vpop.f32.mrb[0].mxu0
    %v5154 = vadd.f32 %v5041, %v5153
    %v5155 = vpop.f32.mrb[0].mxu0
    %v5156 = vadd.f32 %v5043, %v5155
    %5157 = vdwg.mxu0
    %5158 = vmatprep.subr.bf16.mxu0 %v3685
    %5159 = vmatpush1.bf16.msra.mxu0 %v3684
    %5160 = vmatprep.subr.bf16.mxu0 %v3693
    %5161 = vmatpush1.bf16.msra.mxu0 %v3692
    %5162 = vmatprep.subr.bf16.mxu0 %v3701
    %5163 = vmatpush1.bf16.msra.mxu0 %v3700
    %5164 = vmatprep.subr.bf16.mxu0 %v3709
    %5165 = vmatpush1.bf16.msra.mxu0 %v3708
    %5166 = vmatprep.subr.bf16.mxu0 %v3717
    %5167 = vmatpush1.bf16.msra.mxu0 %v3716
    %5168 = vmatprep.subr.bf16.mxu0 %v3725
    %5169 = vmatpush1.bf16.msra.mxu0 %v3724
    %5170 = vmatprep.subr.bf16.mxu0 %v3733
    %5171 = vmatpush1.bf16.msra.mxu0 %v3732
    %5172 = vmatprep.subr.bf16.mxu0 %v3741
    %5173 = vmatpush1.bf16.msra.mxu0 %v3740
    %5174 = vmatprep.subr.bf16.mxu0 %v3749
    %5175 = vmatpush1.bf16.msra.mxu0 %v3748
    %5176 = vmatprep.subr.bf16.mxu0 %v3757
    %5177 = vmatpush1.bf16.msra.mxu0 %v3756
    %5178 = vmatprep.subr.bf16.mxu0 %v3765
    %5179 = vmatpush1.bf16.msra.mxu0 %v3764
    %5180 = vmatprep.subr.bf16.mxu0 %v3773
    %5181 = vmatpush1.bf16.msra.mxu0 %v3772
    %5182 = vmatprep.subr.bf16.mxu0 %v3781
    %5183 = vmatpush1.bf16.msra.mxu0 %v3780
    %5184 = vmatprep.subr.bf16.mxu0 %v3789
    %5185 = vmatpush1.bf16.msra.mxu0 %v3788
    %5186 = vmatprep.subr.bf16.mxu0 %v3797
    %5187 = vmatpush1.bf16.msra.mxu0 %v3796
    %5188 = vmatprep.subr.bf16.mxu0 %v3805
    %5189 = vmatpush1.bf16.msra.mxu0 %v3804
    %5190 = vmatprep.mubr.bf16.mxu0 %v1529
    %5191 = vmatmul.mubr.bf16.gmra.mrb[0].mxu0 %v1528
    %v5192 = vpop.f32.mrb[0].mxu0
    %v5193 = vadd.f32 %v2117, %v5192
    %v5194 = vpop.f32.mrb[0].mxu0
    %v5195 = vadd.f32 %v2121, %v5194
    %v5196 = vpop.f32.mrb[0].mxu0
    %v5197 = vadd.f32 %v2117, %v5196
    %v5198 = vpop.f32.mrb[0].mxu0
    %v5199 = vadd.f32 %v2121, %v5198
    %5200 = vmatprep.mubr.bf16.mxu0 %v1537
    %5201 = vmatmul.mubr.bf16.gmra.mrb[0].mxu0 %v1536
    %v5202 = vpop.f32.mrb[0].mxu0
    %v5203 = vadd.f32 %v2117, %v5202
    %v5204 = vpop.f32.mrb[0].mxu0
    %v5205 = vadd.f32 %v2121, %v5204
    %v5206 = vpop.f32.mrb[0].mxu0
    %v5207 = vadd.f32 %v2117, %v5206
    %v5208 = vpop.f32.mrb[0].mxu0
    %v5209 = vadd.f32 %v2121, %v5208
    %5210 = vmatprep.mubr.bf16.mxu0 %v1545
    %5211 = vmatmul.mubr.bf16.gmra.mrb[0].mxu0 %v1544
    %v5212 = vpop.f32.mrb[0].mxu0
    %v5213 = vadd.f32 %v2117, %v5212
    %v5214 = vpop.f32.mrb[0].mxu0
    %v5215 = vadd.f32 %v2121, %v5214
    %v5216 = vpop.f32.mrb[0].mxu0
    %v5217 = vadd.f32 %v2117, %v5216
    %v5218 = vpop.f32.mrb[0].mxu0
    %v5219 = vadd.f32 %v2121, %v5218
    %5220 = vmatprep.mubr.bf16.mxu0 %v1553
    %5221 = vmatmul.mubr.bf16.gmra.mrb[0].mxu0 %v1552
    %v5222 = vpop.f32.mrb[0].mxu0
    %v5223 = vadd.f32 %v2117, %v5222
    %v5224 = vpop.f32.mrb[0].mxu0
    %v5225 = vadd.f32 %v2121, %v5224
    %v5226 = vpop.f32.mrb[0].mxu0
    %v5227 = vadd.f32 %v2117, %v5226
    %v5228 = vpop.f32.mrb[0].mxu0
    %v5229 = vadd.f32 %v2121, %v5228
    %5230 = vmatprep.mubr.bf16.mxu0 %v1561
    %5231 = vmatmul.mubr.bf16.gmra.mrb[0].mxu0 %v1560
    %v5232 = vpop.f32.mrb[0].mxu0
    %v5233 = vadd.f32 %v2117, %v5232
    %v5234 = vpop.f32.mrb[0].mxu0
    %v5235 = vadd.f32 %v2121, %v5234
    %v5236 = vpop.f32.mrb[0].mxu0
    %v5237 = vadd.f32 %v2117, %v5236
    %v5238 = vpop.f32.mrb[0].mxu0
    %v5239 = vadd.f32 %v2121, %v5238
    %5240 = vmatprep.mubr.bf16.mxu0 %v1569
    %5241 = vmatmul.mubr.bf16.gmra.mrb[0].mxu0 %v1568
    %v5242 = vpop.f32.mrb[0].mxu0
    %v5243 = vadd.f32 %v2117, %v5242
    %v5244 = vpop.f32.mrb[0].mxu0
    %v5245 = vadd.f32 %v2121, %v5244
    %v5246 = vpop.f32.mrb[0].mxu0
    %v5247 = vadd.f32 %v2117, %v5246
    %v5248 = vpop.f32.mrb[0].mxu0
    %v5249 = vadd.f32 %v2121, %v5248
    %5250 = vmatprep.mubr.bf16.mxu0 %v1577
    %5251 = vmatmul.mubr.bf16.gmra.mrb[0].mxu0 %v1576
    %v5252 = vpop.f32.mrb[0].mxu0
    %v5253 = vadd.f32 %v2117, %v5252
    %v5254 = vpop.f32.mrb[0].mxu0
    %v5255 = vadd.f32 %v2121, %v5254
    %v5256 = vpop.f32.mrb[0].mxu0
    %v5257 = vadd.f32 %v2117, %v5256
    %v5258 = vpop.f32.mrb[0].mxu0
    %v5259 = vadd.f32 %v2121, %v5258
    %5260 = vmatprep.mubr.bf16.mxu0 %v1585
    %5261 = vmatmul.mubr.bf16.gmra.mrb[0].mxu0 %v1584
    %v5262 = vpop.f32.mrb[0].mxu0
    %v5263 = vadd.f32 %v2117, %v5262
    %v5264 = vpop.f32.mrb[0].mxu0
    %v5265 = vadd.f32 %v2121, %v5264
    %v5266 = vpop.f32.mrb[0].mxu0
    %v5267 = vadd.f32 %v2117, %v5266
    %v5268 = vpop.f32.mrb[0].mxu0
    %v5269 = vadd.f32 %v2121, %v5268
    %5270 = vdwg.mxu0
    %5271 = vmatprep.subr.bf16.mxu0 %v3813
    %5272 = vmatpush1.bf16.msra.mxu0 %v3812
    %5273 = vmatprep.subr.bf16.mxu0 %v3821
    %5274 = vmatpush1.bf16.msra.mxu0 %v3820
    %5275 = vmatprep.subr.bf16.mxu0 %v3829
    %5276 = vmatpush1.bf16.msra.mxu0 %v3828
    %5277 = vmatprep.subr.bf16.mxu0 %v3837
    %5278 = vmatpush1.bf16.msra.mxu0 %v3836
    %5279 = vmatprep.subr.bf16.mxu0 %v3845
    %5280 = vmatpush1.bf16.msra.mxu0 %v3844
    %5281 = vmatprep.subr.bf16.mxu0 %v3853
    %5282 = vmatpush1.bf16.msra.mxu0 %v3852
    %5283 = vmatprep.subr.bf16.mxu0 %v3861
    %5284 = vmatpush1.bf16.msra.mxu0 %v3860
    %5285 = vmatprep.subr.bf16.mxu0 %v3869
    %5286 = vmatpush1.bf16.msra.mxu0 %v3868
    %5287 = vmatprep.subr.bf16.mxu0 %v3877
    %5288 = vmatpush1.bf16.msra.mxu0 %v3876
    %5289 = vmatprep.subr.bf16.mxu0 %v3885
    %5290 = vmatpush1.bf16.msra.mxu0 %v3884
    %5291 = vmatprep.subr.bf16.mxu0 %v3893
    %5292 = vmatpush1.bf16.msra.mxu0 %v3892
    %5293 = vmatprep.subr.bf16.mxu0 %v3901
    %5294 = vmatpush1.bf16.msra.mxu0 %v3900
    %5295 = vmatprep.subr.bf16.mxu0 %v3909
    %5296 = vmatpush1.bf16.msra.mxu0 %v3908
    %5297 = vmatprep.subr.bf16.mxu0 %v3917
    %5298 = vmatpush1.bf16.msra.mxu0 %v3916
    %5299 = vmatprep.subr.bf16.mxu0 %v3925
    %5300 = vmatpush1.bf16.msra.mxu0 %v3924
    %5301 = vmatprep.subr.bf16.mxu0 %v3933
    %5302 = vmatpush1.bf16.msra.mxu0 %v3932
    %5303 = vmatprep.mubr.bf16.mxu0 %v1531
    %5304 = vmatmul.mubr.bf16.gmra.mrb[0].mxu0 %v1530
    %v5305 = vpop.f32.mrb[0].mxu0
    %v5306 = vadd.f32 %v5193, %v5305
    %v5307 = vpop.f32.mrb[0].mxu0
    %v5308 = vadd.f32 %v5195, %v5307
    %v5309 = vpop.f32.mrb[0].mxu0
    %v5310 = vadd.f32 %v5197, %v5309
    %v5311 = vpop.f32.mrb[0].mxu0
    %v5312 = vadd.f32 %v5199, %v5311
    %5313 = vmatprep.mubr.bf16.mxu0 %v1539
    %5314 = vmatmul.mubr.bf16.gmra.mrb[0].mxu0 %v1538
    %v5315 = vpop.f32.mrb[0].mxu0
    %v5316 = vadd.f32 %v5203, %v5315
    %v5317 = vpop.f32.mrb[0].mxu0
    %v5318 = vadd.f32 %v5205, %v5317
    %v5319 = vpop.f32.mrb[0].mxu0
    %v5320 = vadd.f32 %v5207, %v5319
    %v5321 = vpop.f32.mrb[0].mxu0
    %v5322 = vadd.f32 %v5209, %v5321
    %5323 = vmatprep.mubr.bf16.mxu0 %v1547
    %5324 = vmatmul.mubr.bf16.gmra.mrb[0].mxu0 %v1546
    %v5325 = vpop.f32.mrb[0].mxu0
    %v5326 = vadd.f32 %v5213, %v5325
    %v5327 = vpop.f32.mrb[0].mxu0
    %v5328 = vadd.f32 %v5215, %v5327
    %v5329 = vpop.f32.mrb[0].mxu0
    %v5330 = vadd.f32 %v5217, %v5329
    %v5331 = vpop.f32.mrb[0].mxu0
    %v5332 = vadd.f32 %v5219, %v5331
    %5333 = vmatprep.mubr.bf16.mxu0 %v1555
    %5334 = vmatmul.mubr.bf16.gmra.mrb[0].mxu0 %v1554
    %v5335 = vpop.f32.mrb[0].mxu0
    %v5336 = vadd.f32 %v5223, %v5335
    %v5337 = vpop.f32.mrb[0].mxu0
    %v5338 = vadd.f32 %v5225, %v5337
    %v5339 = vpop.f32.mrb[0].mxu0
    %v5340 = vadd.f32 %v5227, %v5339
    %v5341 = vpop.f32.mrb[0].mxu0
    %v5342 = vadd.f32 %v5229, %v5341
    %5343 = vmatprep.mubr.bf16.mxu0 %v1563
    %5344 = vmatmul.mubr.bf16.gmra.mrb[0].mxu0 %v1562
    %v5345 = vpop.f32.mrb[0].mxu0
    %v5346 = vadd.f32 %v5233, %v5345
    %v5347 = vpop.f32.mrb[0].mxu0
    %v5348 = vadd.f32 %v5235, %v5347
    %v5349 = vpop.f32.mrb[0].mxu0
    %v5350 = vadd.f32 %v5237, %v5349
    %v5351 = vpop.f32.mrb[0].mxu0
    %v5352 = vadd.f32 %v5239, %v5351
    %5353 = vmatprep.mubr.bf16.mxu0 %v1571
    %5354 = vmatmul.mubr.bf16.gmra.mrb[0].mxu0 %v1570
    %v5355 = vpop.f32.mrb[0].mxu0
    %v5356 = vadd.f32 %v5243, %v5355
    %v5357 = vpop.f32.mrb[0].mxu0
    %v5358 = vadd.f32 %v5245, %v5357
    %v5359 = vpop.f32.mrb[0].mxu0
    %v5360 = vadd.f32 %v5247, %v5359
    %v5361 = vpop.f32.mrb[0].mxu0
    %v5362 = vadd.f32 %v5249, %v5361
    %5363 = vmatprep.mubr.bf16.mxu0 %v1579
    %5364 = vmatmul.mubr.bf16.gmra.mrb[0].mxu0 %v1578
    %v5365 = vpop.f32.mrb[0].mxu0
    %v5366 = vadd.f32 %v5253, %v5365
    %v5367 = vpop.f32.mrb[0].mxu0
    %v5368 = vadd.f32 %v5255, %v5367
    %v5369 = vpop.f32.mrb[0].mxu0
    %v5370 = vadd.f32 %v5257, %v5369
    %v5371 = vpop.f32.mrb[0].mxu0
    %v5372 = vadd.f32 %v5259, %v5371
    %5373 = vmatprep.mubr.bf16.mxu0 %v1587
    %5374 = vmatmul.mubr.bf16.gmra.mrb[0].mxu0 %v1586
    %v5375 = vpop.f32.mrb[0].mxu0
    %v5376 = vadd.f32 %v5263, %v5375
    %v5377 = vpop.f32.mrb[0].mxu0
    %v5378 = vadd.f32 %v5265, %v5377
    %v5379 = vpop.f32.mrb[0].mxu0
    %v5380 = vadd.f32 %v5267, %v5379
    %v5381 = vpop.f32.mrb[0].mxu0
    %v5382 = vadd.f32 %v5269, %v5381
    %5383 = vdwg.mxu0
    %5384 = vmatprep.subr.bf16.mxu0 %v3941
    %5385 = vmatpush1.bf16.msra.mxu0 %v3940
    %5386 = vmatprep.subr.bf16.mxu0 %v3949
    %5387 = vmatpush1.bf16.msra.mxu0 %v3948
    %5388 = vmatprep.subr.bf16.mxu0 %v3957
    %5389 = vmatpush1.bf16.msra.mxu0 %v3956
    %5390 = vmatprep.subr.bf16.mxu0 %v3965
    %5391 = vmatpush1.bf16.msra.mxu0 %v3964
    %5392 = vmatprep.subr.bf16.mxu0 %v3973
    %5393 = vmatpush1.bf16.msra.mxu0 %v3972
    %5394 = vmatprep.subr.bf16.mxu0 %v3981
    %5395 = vmatpush1.bf16.msra.mxu0 %v3980
    %5396 = vmatprep.subr.bf16.mxu0 %v3989
    %5397 = vmatpush1.bf16.msra.mxu0 %v3988
    %5398 = vmatprep.subr.bf16.mxu0 %v3997
    %5399 = vmatpush1.bf16.msra.mxu0 %v3996
    %5400 = vmatprep.subr.bf16.mxu0 %v4005
    %5401 = vmatpush1.bf16.msra.mxu0 %v4004
    %5402 = vmatprep.subr.bf16.mxu0 %v4013
    %5403 = vmatpush1.bf16.msra.mxu0 %v4012
    %5404 = vmatprep.subr.bf16.mxu0 %v4021
    %5405 = vmatpush1.bf16.msra.mxu0 %v4020
    %5406 = vmatprep.subr.bf16.mxu0 %v4029
    %5407 = vmatpush1.bf16.msra.mxu0 %v4028
    %5408 = vmatprep.subr.bf16.mxu0 %v4037
    %5409 = vmatpush1.bf16.msra.mxu0 %v4036
    %5410 = vmatprep.subr.bf16.mxu0 %v4045
    %5411 = vmatpush1.bf16.msra.mxu0 %v4044
    %5412 = vmatprep.subr.bf16.mxu0 %v4053
    %5413 = vmatpush1.bf16.msra.mxu0 %v4052
    %5414 = vmatprep.subr.bf16.mxu0 %v4061
    %5415 = vmatpush1.bf16.msra.mxu0 %v4060
    %5416 = vmatprep.mubr.bf16.mxu0 %v1533
    %5417 = vmatmul.mubr.bf16.gmra.mrb[0].mxu0 %v1532
    %v5418 = vpop.f32.mrb[0].mxu0
    %v5419 = vadd.f32 %v5306, %v5418
    %v5420 = vpop.f32.mrb[0].mxu0
    %v5421 = vadd.f32 %v5308, %v5420
    %v5422 = vpop.f32.mrb[0].mxu0
    %v5423 = vadd.f32 %v5310, %v5422
    %v5424 = vpop.f32.mrb[0].mxu0
    %v5425 = vadd.f32 %v5312, %v5424
    %5426 = vmatprep.mubr.bf16.mxu0 %v1541
    %5427 = vmatmul.mubr.bf16.gmra.mrb[0].mxu0 %v1540
    %v5428 = vpop.f32.mrb[0].mxu0
    %v5429 = vadd.f32 %v5316, %v5428
    %v5430 = vpop.f32.mrb[0].mxu0
    %v5431 = vadd.f32 %v5318, %v5430
    %v5432 = vpop.f32.mrb[0].mxu0
    %v5433 = vadd.f32 %v5320, %v5432
    %v5434 = vpop.f32.mrb[0].mxu0
    %v5435 = vadd.f32 %v5322, %v5434
    %5436 = vmatprep.mubr.bf16.mxu0 %v1549
    %5437 = vmatmul.mubr.bf16.gmra.mrb[0].mxu0 %v1548
    %v5438 = vpop.f32.mrb[0].mxu0
    %v5439 = vadd.f32 %v5326, %v5438
    %v5440 = vpop.f32.mrb[0].mxu0
    %v5441 = vadd.f32 %v5328, %v5440
    %v5442 = vpop.f32.mrb[0].mxu0
    %v5443 = vadd.f32 %v5330, %v5442
    %v5444 = vpop.f32.mrb[0].mxu0
    %v5445 = vadd.f32 %v5332, %v5444
    %5446 = vmatprep.mubr.bf16.mxu0 %v1557
    %5447 = vmatmul.mubr.bf16.gmra.mrb[0].mxu0 %v1556
    %v5448 = vpop.f32.mrb[0].mxu0
    %v5449 = vadd.f32 %v5336, %v5448
    %v5450 = vpop.f32.mrb[0].mxu0
    %v5451 = vadd.f32 %v5338, %v5450
    %v5452 = vpop.f32.mrb[0].mxu0
    %v5453 = vadd.f32 %v5340, %v5452
    %v5454 = vpop.f32.mrb[0].mxu0
    %v5455 = vadd.f32 %v5342, %v5454
    %5456 = vmatprep.mubr.bf16.mxu0 %v1565
    %5457 = vmatmul.mubr.bf16.gmra.mrb[0].mxu0 %v1564
    %v5458 = vpop.f32.mrb[0].mxu0
    %v5459 = vadd.f32 %v5346, %v5458
    %v5460 = vpop.f32.mrb[0].mxu0
    %v5461 = vadd.f32 %v5348, %v5460
    %v5462 = vpop.f32.mrb[0].mxu0
    %v5463 = vadd.f32 %v5350, %v5462
    %v5464 = vpop.f32.mrb[0].mxu0
    %v5465 = vadd.f32 %v5352, %v5464
    %5466 = vmatprep.mubr.bf16.mxu0 %v1573
    %5467 = vmatmul.mubr.bf16.gmra.mrb[0].mxu0 %v1572
    %v5468 = vpop.f32.mrb[0].mxu0
    %v5469 = vadd.f32 %v5356, %v5468
    %v5470 = vpop.f32.mrb[0].mxu0
    %v5471 = vadd.f32 %v5358, %v5470
    %v5472 = vpop.f32.mrb[0].mxu0
    %v5473 = vadd.f32 %v5360, %v5472
    %v5474 = vpop.f32.mrb[0].mxu0
    %v5475 = vadd.f32 %v5362, %v5474
    %5476 = vmatprep.mubr.bf16.mxu0 %v1581
    %5477 = vmatmul.mubr.bf16.gmra.mrb[0].mxu0 %v1580
    %v5478 = vpop.f32.mrb[0].mxu0
    %v5479 = vadd.f32 %v5366, %v5478
    %v5480 = vpop.f32.mrb[0].mxu0
    %v5481 = vadd.f32 %v5368, %v5480
    %v5482 = vpop.f32.mrb[0].mxu0
    %v5483 = vadd.f32 %v5370, %v5482
    %v5484 = vpop.f32.mrb[0].mxu0
    %v5485 = vadd.f32 %v5372, %v5484
    %5486 = vmatprep.mubr.bf16.mxu0 %v1589
    %5487 = vmatmul.mubr.bf16.gmra.mrb[0].mxu0 %v1588
    %v5488 = vpop.f32.mrb[0].mxu0
    %v5489 = vadd.f32 %v5376, %v5488
    %v5490 = vpop.f32.mrb[0].mxu0
    %v5491 = vadd.f32 %v5378, %v5490
    %v5492 = vpop.f32.mrb[0].mxu0
    %v5493 = vadd.f32 %v5380, %v5492
    %v5494 = vpop.f32.mrb[0].mxu0
    %v5495 = vadd.f32 %v5382, %v5494
    %5496 = vdwg.mxu0
    %5497 = vmatprep.subr.bf16.mxu0 %v4069
    %5498 = vmatpush1.bf16.msra.mxu0 %v4068
    %5499 = vmatprep.subr.bf16.mxu0 %v4077
    %5500 = vmatpush1.bf16.msra.mxu0 %v4076
    %5501 = vmatprep.subr.bf16.mxu0 %v4085
    %5502 = vmatpush1.bf16.msra.mxu0 %v4084
    %5503 = vmatprep.subr.bf16.mxu0 %v4093
    %5504 = vmatpush1.bf16.msra.mxu0 %v4092
    %5505 = vmatprep.subr.bf16.mxu0 %v4101
    %5506 = vmatpush1.bf16.msra.mxu0 %v4100
    %5507 = vmatprep.subr.bf16.mxu0 %v4109
    %5508 = vmatpush1.bf16.msra.mxu0 %v4108
    %5509 = vmatprep.subr.bf16.mxu0 %v4117
    %5510 = vmatpush1.bf16.msra.mxu0 %v4116
    %5511 = vmatprep.subr.bf16.mxu0 %v4125
    %5512 = vmatpush1.bf16.msra.mxu0 %v4124
    %5513 = vmatprep.subr.bf16.mxu0 %v4133
    %5514 = vmatpush1.bf16.msra.mxu0 %v4132
    %5515 = vmatprep.subr.bf16.mxu0 %v4141
    %5516 = vmatpush1.bf16.msra.mxu0 %v4140
    %5517 = vmatprep.subr.bf16.mxu0 %v4149
    %5518 = vmatpush1.bf16.msra.mxu0 %v4148
    %5519 = vmatprep.subr.bf16.mxu0 %v4157
    %5520 = vmatpush1.bf16.msra.mxu0 %v4156
    %5521 = vmatprep.subr.bf16.mxu0 %v4165
    %5522 = vmatpush1.bf16.msra.mxu0 %v4164
    %5523 = vmatprep.subr.bf16.mxu0 %v4173
    %5524 = vmatpush1.bf16.msra.mxu0 %v4172
    %5525 = vmatprep.subr.bf16.mxu0 %v4181
    %5526 = vmatpush1.bf16.msra.mxu0 %v4180
    %5527 = vmatprep.subr.bf16.mxu0 %v4189
    %5528 = vmatpush1.bf16.msra.mxu0 %v4188
    %5529 = vmatprep.mubr.bf16.mxu0 %v1535
    %5530 = vmatmul.mubr.bf16.gmra.mrb[0].mxu0 %v1534
    %v5531 = vpop.f32.mrb[0].mxu0
    %v5532 = vadd.f32 %v5419, %v5531
    %v5533 = vpop.f32.mrb[0].mxu0
    %v5534 = vadd.f32 %v5421, %v5533
    %v5535 = vpop.f32.mrb[0].mxu0
    %v5536 = vadd.f32 %v5423, %v5535
    %v5537 = vpop.f32.mrb[0].mxu0
    %v5538 = vadd.f32 %v5425, %v5537
    %5539 = vmatprep.mubr.bf16.mxu0 %v1543
    %5540 = vmatmul.mubr.bf16.gmra.mrb[0].mxu0 %v1542
    %v5541 = vpop.f32.mrb[0].mxu0
    %v5542 = vadd.f32 %v5429, %v5541
    %v5543 = vpop.f32.mrb[0].mxu0
    %v5544 = vadd.f32 %v5431, %v5543
    %v5545 = vpop.f32.mrb[0].mxu0
    %v5546 = vadd.f32 %v5433, %v5545
    %v5547 = vpop.f32.mrb[0].mxu0
    %v5548 = vadd.f32 %v5435, %v5547
    %5549 = vmatprep.mubr.bf16.mxu0 %v1551
    %5550 = vmatmul.mubr.bf16.gmra.mrb[0].mxu0 %v1550
    %v5551 = vpop.f32.mrb[0].mxu0
    %v5552 = vadd.f32 %v5439, %v5551
    %v5553 = vpop.f32.mrb[0].mxu0
    %v5554 = vadd.f32 %v5441, %v5553
    %v5555 = vpop.f32.mrb[0].mxu0
    %v5556 = vadd.f32 %v5443, %v5555
    %v5557 = vpop.f32.mrb[0].mxu0
    %v5558 = vadd.f32 %v5445, %v5557
    %5559 = vmatprep.mubr.bf16.mxu0 %v1559
    %5560 = vmatmul.mubr.bf16.gmra.mrb[0].mxu0 %v1558
    %v5561 = vpop.f32.mrb[0].mxu0
    %v5562 = vadd.f32 %v5449, %v5561
    %v5563 = vpop.f32.mrb[0].mxu0
    %v5564 = vadd.f32 %v5451, %v5563
    %v5565 = vpop.f32.mrb[0].mxu0
    %v5566 = vadd.f32 %v5453, %v5565
    %v5567 = vpop.f32.mrb[0].mxu0
    %v5568 = vadd.f32 %v5455, %v5567
    %5569 = vmatprep.mubr.bf16.mxu0 %v1567
    %5570 = vmatmul.mubr.bf16.gmra.mrb[0].mxu0 %v1566
    %v5571 = vpop.f32.mrb[0].mxu0
    %v5572 = vadd.f32 %v5459, %v5571
    %v5573 = vpop.f32.mrb[0].mxu0
    %v5574 = vadd.f32 %v5461, %v5573
    %v5575 = vpop.f32.mrb[0].mxu0
    %v5576 = vadd.f32 %v5463, %v5575
    %v5577 = vpop.f32.mrb[0].mxu0
    %v5578 = vadd.f32 %v5465, %v5577
    %5579 = vmatprep.mubr.bf16.mxu0 %v1575
    %5580 = vmatmul.mubr.bf16.gmra.mrb[0].mxu0 %v1574
    %v5581 = vpop.f32.mrb[0].mxu0
    %v5582 = vadd.f32 %v5469, %v5581
    %v5583 = vpop.f32.mrb[0].mxu0
    %v5584 = vadd.f32 %v5471, %v5583
    %v5585 = vpop.f32.mrb[0].mxu0
    %v5586 = vadd.f32 %v5473, %v5585
    %v5587 = vpop.f32.mrb[0].mxu0
    %v5588 = vadd.f32 %v5475, %v5587
    %5589 = vmatprep.mubr.bf16.mxu0 %v1583
    %5590 = vmatmul.mubr.bf16.gmra.mrb[0].mxu0 %v1582
    %v5591 = vpop.f32.mrb[0].mxu0
    %v5592 = vadd.f32 %v5479, %v5591
    %v5593 = vpop.f32.mrb[0].mxu0
    %v5594 = vadd.f32 %v5481, %v5593
    %v5595 = vpop.f32.mrb[0].mxu0
    %v5596 = vadd.f32 %v5483, %v5595
    %v5597 = vpop.f32.mrb[0].mxu0
    %v5598 = vadd.f32 %v5485, %v5597
    %5599 = vmatprep.mubr.bf16.mxu0 %v1591
    %5600 = vmatmul.mubr.bf16.gmra.mrb[0].mxu0 %v1590
    %v5601 = vpop.f32.mrb[0].mxu0
    %v5602 = vadd.f32 %v5489, %v5601
    %v5603 = vpop.f32.mrb[0].mxu0
    %v5604 = vadd.f32 %v5491, %v5603
    %v5605 = vpop.f32.mrb[0].mxu0
    %v5606 = vadd.f32 %v5493, %v5605
    %v5607 = vpop.f32.mrb[0].mxu0
    %v5608 = vadd.f32 %v5495, %v5607
    %5609 = vdwg.mxu0
    %5610 = vmatprep.subr.bf16.mxu0 %v3687
    %5611 = vmatpush1.bf16.msra.mxu0 %v3686
    %5612 = vmatprep.subr.bf16.mxu0 %v3695
    %5613 = vmatpush1.bf16.msra.mxu0 %v3694
    %5614 = vmatprep.subr.bf16.mxu0 %v3703
    %5615 = vmatpush1.bf16.msra.mxu0 %v3702
    %5616 = vmatprep.subr.bf16.mxu0 %v3711
    %5617 = vmatpush1.bf16.msra.mxu0 %v3710
    %5618 = vmatprep.subr.bf16.mxu0 %v3719
    %5619 = vmatpush1.bf16.msra.mxu0 %v3718
    %5620 = vmatprep.subr.bf16.mxu0 %v3727
    %5621 = vmatpush1.bf16.msra.mxu0 %v3726
    %5622 = vmatprep.subr.bf16.mxu0 %v3735
    %5623 = vmatpush1.bf16.msra.mxu0 %v3734
    %5624 = vmatprep.subr.bf16.mxu0 %v3743
    %5625 = vmatpush1.bf16.msra.mxu0 %v3742
    %5626 = vmatprep.subr.bf16.mxu0 %v3751
    %5627 = vmatpush1.bf16.msra.mxu0 %v3750
    %5628 = vmatprep.subr.bf16.mxu0 %v3759
    %5629 = vmatpush1.bf16.msra.mxu0 %v3758
    %5630 = vmatprep.subr.bf16.mxu0 %v3767
    %5631 = vmatpush1.bf16.msra.mxu0 %v3766
    %5632 = vmatprep.subr.bf16.mxu0 %v3775
    %5633 = vmatpush1.bf16.msra.mxu0 %v3774
    %5634 = vmatprep.subr.bf16.mxu0 %v3783
    %5635 = vmatpush1.bf16.msra.mxu0 %v3782
    %5636 = vmatprep.subr.bf16.mxu0 %v3791
    %5637 = vmatpush1.bf16.msra.mxu0 %v3790
    %5638 = vmatprep.subr.bf16.mxu0 %v3799
    %5639 = vmatpush1.bf16.msra.mxu0 %v3798
    %5640 = vmatprep.subr.bf16.mxu0 %v3807
    %5641 = vmatpush1.bf16.msra.mxu0 %v3806
    %5642 = vmatprep.mubr.bf16.mxu0 %v1529
    %5643 = vmatmul.mubr.bf16.gmra.mrb[0].mxu0 %v1528
    %v5644 = vpop.f32.mrb[0].mxu0
    %v5645 = vadd.f32 %v2125, %v5644
    %v5646 = vpop.f32.mrb[0].mxu0
    %v5647 = vadd.f32 %v2129, %v5646
    %v5648 = vpop.f32.mrb[0].mxu0
    %v5649 = vadd.f32 %v2125, %v5648
    %v5650 = vpop.f32.mrb[0].mxu0
    %v5651 = vadd.f32 %v2129, %v5650
    %5652 = vmatprep.mubr.bf16.mxu0 %v1537
    %5653 = vmatmul.mubr.bf16.gmra.mrb[0].mxu0 %v1536
    %v5654 = vpop.f32.mrb[0].mxu0
    %v5655 = vadd.f32 %v2125, %v5654
    %v5656 = vpop.f32.mrb[0].mxu0
    %v5657 = vadd.f32 %v2129, %v5656
    %v5658 = vpop.f32.mrb[0].mxu0
    %v5659 = vadd.f32 %v2125, %v5658
    %v5660 = vpop.f32.mrb[0].mxu0
    %v5661 = vadd.f32 %v2129, %v5660
    %5662 = vmatprep.mubr.bf16.mxu0 %v1545
    %5663 = vmatmul.mubr.bf16.gmra.mrb[0].mxu0 %v1544
    %v5664 = vpop.f32.mrb[0].mxu0
    %v5665 = vadd.f32 %v2125, %v5664
    %v5666 = vpop.f32.mrb[0].mxu0
    %v5667 = vadd.f32 %v2129, %v5666
    %v5668 = vpop.f32.mrb[0].mxu0
    %v5669 = vadd.f32 %v2125, %v5668
    %v5670 = vpop.f32.mrb[0].mxu0
    %v5671 = vadd.f32 %v2129, %v5670
    %5672 = vmatprep.mubr.bf16.mxu0 %v1553
    %5673 = vmatmul.mubr.bf16.gmra.mrb[0].mxu0 %v1552
    %v5674 = vpop.f32.mrb[0].mxu0
    %v5675 = vadd.f32 %v2125, %v5674
    %v5676 = vpop.f32.mrb[0].mxu0
    %v5677 = vadd.f32 %v2129, %v5676
    %v5678 = vpop.f32.mrb[0].mxu0
    %v5679 = vadd.f32 %v2125, %v5678
    %v5680 = vpop.f32.mrb[0].mxu0
    %v5681 = vadd.f32 %v2129, %v5680
    %5682 = vmatprep.mubr.bf16.mxu0 %v1561
    %5683 = vmatmul.mubr.bf16.gmra.mrb[0].mxu0 %v1560
    %v5684 = vpop.f32.mrb[0].mxu0
    %v5685 = vadd.f32 %v2125, %v5684
    %v5686 = vpop.f32.mrb[0].mxu0
    %v5687 = vadd.f32 %v2129, %v5686
    %v5688 = vpop.f32.mrb[0].mxu0
    %v5689 = vadd.f32 %v2125, %v5688
    %v5690 = vpop.f32.mrb[0].mxu0
    %v5691 = vadd.f32 %v2129, %v5690
    %5692 = vmatprep.mubr.bf16.mxu0 %v1569
    %5693 = vmatmul.mubr.bf16.gmra.mrb[0].mxu0 %v1568
    %v5694 = vpop.f32.mrb[0].mxu0
    %v5695 = vadd.f32 %v2125, %v5694
    %v5696 = vpop.f32.mrb[0].mxu0
    %v5697 = vadd.f32 %v2129, %v5696
    %v5698 = vpop.f32.mrb[0].mxu0
    %v5699 = vadd.f32 %v2125, %v5698
    %v5700 = vpop.f32.mrb[0].mxu0
    %v5701 = vadd.f32 %v2129, %v5700
    %5702 = vmatprep.mubr.bf16.mxu0 %v1577
    %5703 = vmatmul.mubr.bf16.gmra.mrb[0].mxu0 %v1576
    %v5704 = vpop.f32.mrb[0].mxu0
    %v5705 = vadd.f32 %v2125, %v5704
    %v5706 = vpop.f32.mrb[0].mxu0
    %v5707 = vadd.f32 %v2129, %v5706
    %v5708 = vpop.f32.mrb[0].mxu0
    %v5709 = vadd.f32 %v2125, %v5708
    %v5710 = vpop.f32.mrb[0].mxu0
    %v5711 = vadd.f32 %v2129, %v5710
    %5712 = vmatprep.mubr.bf16.mxu0 %v1585
    %5713 = vmatmul.mubr.bf16.gmra.mrb[0].mxu0 %v1584
    %v5714 = vpop.f32.mrb[0].mxu0
    %v5715 = vadd.f32 %v2125, %v5714
    %v5716 = vpop.f32.mrb[0].mxu0
    %v5717 = vadd.f32 %v2129, %v5716
    %v5718 = vpop.f32.mrb[0].mxu0
    %v5719 = vadd.f32 %v2125, %v5718
    %v5720 = vpop.f32.mrb[0].mxu0
    %v5721 = vadd.f32 %v2129, %v5720
    %5722 = vdwg.mxu0
    %5723 = vmatprep.subr.bf16.mxu0 %v3815
    %5724 = vmatpush1.bf16.msra.mxu0 %v3814
    %5725 = vmatprep.subr.bf16.mxu0 %v3823
    %5726 = vmatpush1.bf16.msra.mxu0 %v3822
    %5727 = vmatprep.subr.bf16.mxu0 %v3831
    %5728 = vmatpush1.bf16.msra.mxu0 %v3830
    %5729 = vmatprep.subr.bf16.mxu0 %v3839
    %5730 = vmatpush1.bf16.msra.mxu0 %v3838
    %5731 = vmatprep.subr.bf16.mxu0 %v3847
    %5732 = vmatpush1.bf16.msra.mxu0 %v3846
    %5733 = vmatprep.subr.bf16.mxu0 %v3855
    %5734 = vmatpush1.bf16.msra.mxu0 %v3854
    %5735 = vmatprep.subr.bf16.mxu0 %v3863
    %5736 = vmatpush1.bf16.msra.mxu0 %v3862
    %5737 = vmatprep.subr.bf16.mxu0 %v3871
    %5738 = vmatpush1.bf16.msra.mxu0 %v3870
    %5739 = vmatprep.subr.bf16.mxu0 %v3879
    %5740 = vmatpush1.bf16.msra.mxu0 %v3878
    %5741 = vmatprep.subr.bf16.mxu0 %v3887
    %5742 = vmatpush1.bf16.msra.mxu0 %v3886
    %5743 = vmatprep.subr.bf16.mxu0 %v3895
    %5744 = vmatpush1.bf16.msra.mxu0 %v3894
    %5745 = vmatprep.subr.bf16.mxu0 %v3903
    %5746 = vmatpush1.bf16.msra.mxu0 %v3902
    %5747 = vmatprep.subr.bf16.mxu0 %v3911
    %5748 = vmatpush1.bf16.msra.mxu0 %v3910
    %5749 = vmatprep.subr.bf16.mxu0 %v3919
    %5750 = vmatpush1.bf16.msra.mxu0 %v3918
    %5751 = vmatprep.subr.bf16.mxu0 %v3927
    %5752 = vmatpush1.bf16.msra.mxu0 %v3926
    %5753 = vmatprep.subr.bf16.mxu0 %v3935
    %5754 = vmatpush1.bf16.msra.mxu0 %v3934
    %5755 = vmatprep.mubr.bf16.mxu0 %v1531
    %5756 = vmatmul.mubr.bf16.gmra.mrb[0].mxu0 %v1530
    %v5757 = vpop.f32.mrb[0].mxu0
    %v5758 = vadd.f32 %v5645, %v5757
    %v5759 = vpop.f32.mrb[0].mxu0
    %v5760 = vadd.f32 %v5647, %v5759
    %v5761 = vpop.f32.mrb[0].mxu0
    %v5762 = vadd.f32 %v5649, %v5761
    %v5763 = vpop.f32.mrb[0].mxu0
    %v5764 = vadd.f32 %v5651, %v5763
    %5765 = vmatprep.mubr.bf16.mxu0 %v1539
    %5766 = vmatmul.mubr.bf16.gmra.mrb[0].mxu0 %v1538
    %v5767 = vpop.f32.mrb[0].mxu0
    %v5768 = vadd.f32 %v5655, %v5767
    %v5769 = vpop.f32.mrb[0].mxu0
    %v5770 = vadd.f32 %v5657, %v5769
    %v5771 = vpop.f32.mrb[0].mxu0
    %v5772 = vadd.f32 %v5659, %v5771
    %v5773 = vpop.f32.mrb[0].mxu0
    %v5774 = vadd.f32 %v5661, %v5773
    %5775 = vmatprep.mubr.bf16.mxu0 %v1547
    %5776 = vmatmul.mubr.bf16.gmra.mrb[0].mxu0 %v1546
    %v5777 = vpop.f32.mrb[0].mxu0
    %v5778 = vadd.f32 %v5665, %v5777
    %v5779 = vpop.f32.mrb[0].mxu0
    %v5780 = vadd.f32 %v5667, %v5779
    %v5781 = vpop.f32.mrb[0].mxu0
    %v5782 = vadd.f32 %v5669, %v5781
    %v5783 = vpop.f32.mrb[0].mxu0
    %v5784 = vadd.f32 %v5671, %v5783
    %5785 = vmatprep.mubr.bf16.mxu0 %v1555
    %5786 = vmatmul.mubr.bf16.gmra.mrb[0].mxu0 %v1554
    %v5787 = vpop.f32.mrb[0].mxu0
    %v5788 = vadd.f32 %v5675, %v5787
    %v5789 = vpop.f32.mrb[0].mxu0
    %v5790 = vadd.f32 %v5677, %v5789
    %v5791 = vpop.f32.mrb[0].mxu0
    %v5792 = vadd.f32 %v5679, %v5791
    %v5793 = vpop.f32.mrb[0].mxu0
    %v5794 = vadd.f32 %v5681, %v5793
    %5795 = vmatprep.mubr.bf16.mxu0 %v1563
    %5796 = vmatmul.mubr.bf16.gmra.mrb[0].mxu0 %v1562
    %v5797 = vpop.f32.mrb[0].mxu0
    %v5798 = vadd.f32 %v5685, %v5797
    %v5799 = vpop.f32.mrb[0].mxu0
    %v5800 = vadd.f32 %v5687, %v5799
    %v5801 = vpop.f32.mrb[0].mxu0
    %v5802 = vadd.f32 %v5689, %v5801
    %v5803 = vpop.f32.mrb[0].mxu0
    %v5804 = vadd.f32 %v5691, %v5803
    %5805 = vmatprep.mubr.bf16.mxu0 %v1571
    %5806 = vmatmul.mubr.bf16.gmra.mrb[0].mxu0 %v1570
    %v5807 = vpop.f32.mrb[0].mxu0
    %v5808 = vadd.f32 %v5695, %v5807
    %v5809 = vpop.f32.mrb[0].mxu0
    %v5810 = vadd.f32 %v5697, %v5809
    %v5811 = vpop.f32.mrb[0].mxu0
    %v5812 = vadd.f32 %v5699, %v5811
    %v5813 = vpop.f32.mrb[0].mxu0
    %v5814 = vadd.f32 %v5701, %v5813
    %5815 = vmatprep.mubr.bf16.mxu0 %v1579
    %5816 = vmatmul.mubr.bf16.gmra.mrb[0].mxu0 %v1578
    %v5817 = vpop.f32.mrb[0].mxu0
    %v5818 = vadd.f32 %v5705, %v5817
    %v5819 = vpop.f32.mrb[0].mxu0
    %v5820 = vadd.f32 %v5707, %v5819
    %v5821 = vpop.f32.mrb[0].mxu0
    %v5822 = vadd.f32 %v5709, %v5821
    %v5823 = vpop.f32.mrb[0].mxu0
    %v5824 = vadd.f32 %v5711, %v5823
    %5825 = vmatprep.mubr.bf16.mxu0 %v1587
    %5826 = vmatmul.mubr.bf16.gmra.mrb[0].mxu0 %v1586
    %v5827 = vpop.f32.mrb[0].mxu0
    %v5828 = vadd.f32 %v5715, %v5827
    %v5829 = vpop.f32.mrb[0].mxu0
    %v5830 = vadd.f32 %v5717, %v5829
    %v5831 = vpop.f32.mrb[0].mxu0
    %v5832 = vadd.f32 %v5719, %v5831
    %v5833 = vpop.f32.mrb[0].mxu0
    %v5834 = vadd.f32 %v5721, %v5833
    %5835 = vdwg.mxu0
    %5836 = vmatprep.subr.bf16.mxu0 %v3943
    %5837 = vmatpush1.bf16.msra.mxu0 %v3942
    %5838 = vmatprep.subr.bf16.mxu0 %v3951
    %5839 = vmatpush1.bf16.msra.mxu0 %v3950
    %5840 = vmatprep.subr.bf16.mxu0 %v3959
    %5841 = vmatpush1.bf16.msra.mxu0 %v3958
    %5842 = vmatprep.subr.bf16.mxu0 %v3967
    %5843 = vmatpush1.bf16.msra.mxu0 %v3966
    %5844 = vmatprep.subr.bf16.mxu0 %v3975
    %5845 = vmatpush1.bf16.msra.mxu0 %v3974
    %5846 = vmatprep.subr.bf16.mxu0 %v3983
    %5847 = vmatpush1.bf16.msra.mxu0 %v3982
    %5848 = vmatprep.subr.bf16.mxu0 %v3991
    %5849 = vmatpush1.bf16.msra.mxu0 %v3990
    %5850 = vmatprep.subr.bf16.mxu0 %v3999
    %5851 = vmatpush1.bf16.msra.mxu0 %v3998
    %5852 = vmatprep.subr.bf16.mxu0 %v4007
    %5853 = vmatpush1.bf16.msra.mxu0 %v4006
    %5854 = vmatprep.subr.bf16.mxu0 %v4015
    %5855 = vmatpush1.bf16.msra.mxu0 %v4014
    %5856 = vmatprep.subr.bf16.mxu0 %v4023
    %5857 = vmatpush1.bf16.msra.mxu0 %v4022
    %5858 = vmatprep.subr.bf16.mxu0 %v4031
    %5859 = vmatpush1.bf16.msra.mxu0 %v4030
    %5860 = vmatprep.subr.bf16.mxu0 %v4039
    %5861 = vmatpush1.bf16.msra.mxu0 %v4038
    %5862 = vmatprep.subr.bf16.mxu0 %v4047
    %5863 = vmatpush1.bf16.msra.mxu0 %v4046
    %5864 = vmatprep.subr.bf16.mxu0 %v4055
    %5865 = vmatpush1.bf16.msra.mxu0 %v4054
    %5866 = vmatprep.subr.bf16.mxu0 %v4063
    %5867 = vmatpush1.bf16.msra.mxu0 %v4062
    %5868 = vmatprep.mubr.bf16.mxu0 %v1533
    %5869 = vmatmul.mubr.bf16.gmra.mrb[0].mxu0 %v1532
    %v5870 = vpop.f32.mrb[0].mxu0
    %v5871 = vadd.f32 %v5758, %v5870
    %v5872 = vpop.f32.mrb[0].mxu0
    %v5873 = vadd.f32 %v5760, %v5872
    %v5874 = vpop.f32.mrb[0].mxu0
    %v5875 = vadd.f32 %v5762, %v5874
    %v5876 = vpop.f32.mrb[0].mxu0
    %v5877 = vadd.f32 %v5764, %v5876
    %5878 = vmatprep.mubr.bf16.mxu0 %v1541
    %5879 = vmatmul.mubr.bf16.gmra.mrb[0].mxu0 %v1540
    %v5880 = vpop.f32.mrb[0].mxu0
    %v5881 = vadd.f32 %v5768, %v5880
    %v5882 = vpop.f32.mrb[0].mxu0
    %v5883 = vadd.f32 %v5770, %v5882
    %v5884 = vpop.f32.mrb[0].mxu0
    %v5885 = vadd.f32 %v5772, %v5884
    %v5886 = vpop.f32.mrb[0].mxu0
    %v5887 = vadd.f32 %v5774, %v5886
    %5888 = vmatprep.mubr.bf16.mxu0 %v1549
    %5889 = vmatmul.mubr.bf16.gmra.mrb[0].mxu0 %v1548
    %v5890 = vpop.f32.mrb[0].mxu0
    %v5891 = vadd.f32 %v5778, %v5890
    %v5892 = vpop.f32.mrb[0].mxu0
    %v5893 = vadd.f32 %v5780, %v5892
    %v5894 = vpop.f32.mrb[0].mxu0
    %v5895 = vadd.f32 %v5782, %v5894
    %v5896 = vpop.f32.mrb[0].mxu0
    %v5897 = vadd.f32 %v5784, %v5896
    %5898 = vmatprep.mubr.bf16.mxu0 %v1557
    %5899 = vmatmul.mubr.bf16.gmra.mrb[0].mxu0 %v1556
    %v5900 = vpop.f32.mrb[0].mxu0
    %v5901 = vadd.f32 %v5788, %v5900
    %v5902 = vpop.f32.mrb[0].mxu0
    %v5903 = vadd.f32 %v5790, %v5902
    %v5904 = vpop.f32.mrb[0].mxu0
    %v5905 = vadd.f32 %v5792, %v5904
    %v5906 = vpop.f32.mrb[0].mxu0
    %v5907 = vadd.f32 %v5794, %v5906
    %5908 = vmatprep.mubr.bf16.mxu0 %v1565
    %5909 = vmatmul.mubr.bf16.gmra.mrb[0].mxu0 %v1564
    %v5910 = vpop.f32.mrb[0].mxu0
    %v5911 = vadd.f32 %v5798, %v5910
    %v5912 = vpop.f32.mrb[0].mxu0
    %v5913 = vadd.f32 %v5800, %v5912
    %v5914 = vpop.f32.mrb[0].mxu0
    %v5915 = vadd.f32 %v5802, %v5914
    %v5916 = vpop.f32.mrb[0].mxu0
    %v5917 = vadd.f32 %v5804, %v5916
    %5918 = vmatprep.mubr.bf16.mxu0 %v1573
    %5919 = vmatmul.mubr.bf16.gmra.mrb[0].mxu0 %v1572
    %v5920 = vpop.f32.mrb[0].mxu0
    %v5921 = vadd.f32 %v5808, %v5920
    %v5922 = vpop.f32.mrb[0].mxu0
    %v5923 = vadd.f32 %v5810, %v5922
    %v5924 = vpop.f32.mrb[0].mxu0
    %v5925 = vadd.f32 %v5812, %v5924
    %v5926 = vpop.f32.mrb[0].mxu0
    %v5927 = vadd.f32 %v5814, %v5926
    %5928 = vmatprep.mubr.bf16.mxu0 %v1581
    %5929 = vmatmul.mubr.bf16.gmra.mrb[0].mxu0 %v1580
    %v5930 = vpop.f32.mrb[0].mxu0
    %v5931 = vadd.f32 %v5818, %v5930
    %v5932 = vpop.f32.mrb[0].mxu0
    %v5933 = vadd.f32 %v5820, %v5932
    %v5934 = vpop.f32.mrb[0].mxu0
    %v5935 = vadd.f32 %v5822, %v5934
    %v5936 = vpop.f32.mrb[0].mxu0
    %v5937 = vadd.f32 %v5824, %v5936
    %5938 = vmatprep.mubr.bf16.mxu0 %v1589
    %5939 = vmatmul.mubr.bf16.gmra.mrb[0].mxu0 %v1588
    %v5940 = vpop.f32.mrb[0].mxu0
    %v5941 = vadd.f32 %v5828, %v5940
    %v5942 = vpop.f32.mrb[0].mxu0
    %v5943 = vadd.f32 %v5830, %v5942
    %v5944 = vpop.f32.mrb[0].mxu0
    %v5945 = vadd.f32 %v5832, %v5944
    %v5946 = vpop.f32.mrb[0].mxu0
    %v5947 = vadd.f32 %v5834, %v5946
    %5948 = vdwg.mxu0
    %5949 = vmatprep.subr.bf16.mxu0 %v4071
    %5950 = vmatpush1.bf16.msra.mxu0 %v4070
    %5951 = vmatprep.subr.bf16.mxu0 %v4079
    %5952 = vmatpush1.bf16.msra.mxu0 %v4078
    %5953 = vmatprep.subr.bf16.mxu0 %v4087
    %5954 = vmatpush1.bf16.msra.mxu0 %v4086
    %5955 = vmatprep.subr.bf16.mxu0 %v4095
    %5956 = vmatpush1.bf16.msra.mxu0 %v4094
    %5957 = vmatprep.subr.bf16.mxu0 %v4103
    %5958 = vmatpush1.bf16.msra.mxu0 %v4102
    %5959 = vmatprep.subr.bf16.mxu0 %v4111
    %5960 = vmatpush1.bf16.msra.mxu0 %v4110
    %5961 = vmatprep.subr.bf16.mxu0 %v4119
    %5962 = vmatpush1.bf16.msra.mxu0 %v4118
    %5963 = vmatprep.subr.bf16.mxu0 %v4127
    %5964 = vmatpush1.bf16.msra.mxu0 %v4126
    %5965 = vmatprep.subr.bf16.mxu0 %v4135
    %5966 = vmatpush1.bf16.msra.mxu0 %v4134
    %5967 = vmatprep.subr.bf16.mxu0 %v4143
    %5968 = vmatpush1.bf16.msra.mxu0 %v4142
    %5969 = vmatprep.subr.bf16.mxu0 %v4151
    %5970 = vmatpush1.bf16.msra.mxu0 %v4150
    %5971 = vmatprep.subr.bf16.mxu0 %v4159
    %5972 = vmatpush1.bf16.msra.mxu0 %v4158
    %5973 = vmatprep.subr.bf16.mxu0 %v4167
    %5974 = vmatpush1.bf16.msra.mxu0 %v4166
    %5975 = vmatprep.subr.bf16.mxu0 %v4175
    %5976 = vmatpush1.bf16.msra.mxu0 %v4174
    %5977 = vmatprep.subr.bf16.mxu0 %v4183
    %5978 = vmatpush1.bf16.msra.mxu0 %v4182
    %5979 = vmatprep.subr.bf16.mxu0 %v4191
    %5980 = vmatpush1.bf16.msra.mxu0 %v4190
    %5981 = vmatprep.mubr.bf16.mxu0 %v1535
    %5982 = vmatmul.mubr.bf16.gmra.mrb[0].mxu0 %v1534
    %v5983 = vpop.f32.mrb[0].mxu0
    %v5984 = vadd.f32 %v5871, %v5983
    %v5985 = vpop.f32.mrb[0].mxu0
    %v5986 = vadd.f32 %v5873, %v5985
    %v5987 = vpop.f32.mrb[0].mxu0
    %v5988 = vadd.f32 %v5875, %v5987
    %v5989 = vpop.f32.mrb[0].mxu0
    %v5990 = vadd.f32 %v5877, %v5989
    %5991 = vmatprep.mubr.bf16.mxu0 %v1543
    %5992 = vmatmul.mubr.bf16.gmra.mrb[0].mxu0 %v1542
    %v5993 = vpop.f32.mrb[0].mxu0
    %v5994 = vadd.f32 %v5881, %v5993
    %v5995 = vpop.f32.mrb[0].mxu0
    %v5996 = vadd.f32 %v5883, %v5995
    %v5997 = vpop.f32.mrb[0].mxu0
    %v5998 = vadd.f32 %v5885, %v5997
    %v5999 = vpop.f32.mrb[0].mxu0
    %v6000 = vadd.f32 %v5887, %v5999
    %6001 = vmatprep.mubr.bf16.mxu0 %v1551
    %6002 = vmatmul.mubr.bf16.gmra.mrb[0].mxu0 %v1550
    %v6003 = vpop.f32.mrb[0].mxu0
    %v6004 = vadd.f32 %v5891, %v6003
    %v6005 = vpop.f32.mrb[0].mxu0
    %v6006 = vadd.f32 %v5893, %v6005
    %v6007 = vpop.f32.mrb[0].mxu0
    %v6008 = vadd.f32 %v5895, %v6007
    %v6009 = vpop.f32.mrb[0].mxu0
    %v6010 = vadd.f32 %v5897, %v6009
    %6011 = vmatprep.mubr.bf16.mxu0 %v1559
    %6012 = vmatmul.mubr.bf16.gmra.mrb[0].mxu0 %v1558
    %v6013 = vpop.f32.mrb[0].mxu0
    %v6014 = vadd.f32 %v5901, %v6013
    %v6015 = vpop.f32.mrb[0].mxu0
    %v6016 = vadd.f32 %v5903, %v6015
    %v6017 = vpop.f32.mrb[0].mxu0
    %v6018 = vadd.f32 %v5905, %v6017
    %v6019 = vpop.f32.mrb[0].mxu0
    %v6020 = vadd.f32 %v5907, %v6019
    %6021 = vmatprep.mubr.bf16.mxu0 %v1567
    %6022 = vmatmul.mubr.bf16.gmra.mrb[0].mxu0 %v1566
    %v6023 = vpop.f32.mrb[0].mxu0
    %v6024 = vadd.f32 %v5911, %v6023
    %v6025 = vpop.f32.mrb[0].mxu0
    %v6026 = vadd.f32 %v5913, %v6025
    %v6027 = vpop.f32.mrb[0].mxu0
    %v6028 = vadd.f32 %v5915, %v6027
    %v6029 = vpop.f32.mrb[0].mxu0
    %v6030 = vadd.f32 %v5917, %v6029
    %6031 = vmatprep.mubr.bf16.mxu0 %v1575
    %6032 = vmatmul.mubr.bf16.gmra.mrb[0].mxu0 %v1574
    %v6033 = vpop.f32.mrb[0].mxu0
    %v6034 = vadd.f32 %v5921, %v6033
    %v6035 = vpop.f32.mrb[0].mxu0
    %v6036 = vadd.f32 %v5923, %v6035
    %v6037 = vpop.f32.mrb[0].mxu0
    %v6038 = vadd.f32 %v5925, %v6037
    %v6039 = vpop.f32.mrb[0].mxu0
    %v6040 = vadd.f32 %v5927, %v6039
    %6041 = vmatprep.mubr.bf16.mxu0 %v1583
    %6042 = vmatmul.mubr.bf16.gmra.mrb[0].mxu0 %v1582
    %v6043 = vpop.f32.mrb[0].mxu0
    %v6044 = vadd.f32 %v5931, %v6043
    %v6045 = vpop.f32.mrb[0].mxu0
    %v6046 = vadd.f32 %v5933, %v6045
    %v6047 = vpop.f32.mrb[0].mxu0
    %v6048 = vadd.f32 %v5935, %v6047
    %v6049 = vpop.f32.mrb[0].mxu0
    %v6050 = vadd.f32 %v5937, %v6049
    %6051 = vmatprep.mubr.bf16.mxu0 %v1591
    %6052 = vmatmul.mubr.bf16.gmra.mrb[0].mxu0 %v1590
    %v6053 = vpop.f32.mrb[0].mxu0
    %v6054 = vadd.f32 %v5941, %v6053
    %v6055 = vpop.f32.mrb[0].mxu0
    %v6056 = vadd.f32 %v5943, %v6055
    %v6057 = vpop.f32.mrb[0].mxu0
    %v6058 = vadd.f32 %v5945, %v6057
    %v6059 = vpop.f32.mrb[0].mxu0
    %v6060 = vadd.f32 %v5947, %v6059
    %6061 = vdwg.mxu0
    %6062 = vmatprep.subr.bf16.mxu0 %v3689
    %6063 = vmatpush1.bf16.msra.mxu0 %v3688
    %6064 = vmatprep.subr.bf16.mxu0 %v3697
    %6065 = vmatpush1.bf16.msra.mxu0 %v3696
    %6066 = vmatprep.subr.bf16.mxu0 %v3705
    %6067 = vmatpush1.bf16.msra.mxu0 %v3704
    %6068 = vmatprep.subr.bf16.mxu0 %v3713
    %6069 = vmatpush1.bf16.msra.mxu0 %v3712
    %6070 = vmatprep.subr.bf16.mxu0 %v3721
    %6071 = vmatpush1.bf16.msra.mxu0 %v3720
    %6072 = vmatprep.subr.bf16.mxu0 %v3729
    %6073 = vmatpush1.bf16.msra.mxu0 %v3728
    %6074 = vmatprep.subr.bf16.mxu0 %v3737
    %6075 = vmatpush1.bf16.msra.mxu0 %v3736
    %6076 = vmatprep.subr.bf16.mxu0 %v3745
    %6077 = vmatpush1.bf16.msra.mxu0 %v3744
    %6078 = vmatprep.subr.bf16.mxu0 %v3753
    %6079 = vmatpush1.bf16.msra.mxu0 %v3752
    %6080 = vmatprep.subr.bf16.mxu0 %v3761
    %6081 = vmatpush1.bf16.msra.mxu0 %v3760
    %6082 = vmatprep.subr.bf16.mxu0 %v3769
    %6083 = vmatpush1.bf16.msra.mxu0 %v3768
    %6084 = vmatprep.subr.bf16.mxu0 %v3777
    %6085 = vmatpush1.bf16.msra.mxu0 %v3776
    %6086 = vmatprep.subr.bf16.mxu0 %v3785
    %6087 = vmatpush1.bf16.msra.mxu0 %v3784
    %6088 = vmatprep.subr.bf16.mxu0 %v3793
    %6089 = vmatpush1.bf16.msra.mxu0 %v3792
    %6090 = vmatprep.subr.bf16.mxu0 %v3801
    %6091 = vmatpush1.bf16.msra.mxu0 %v3800
    %6092 = vmatprep.subr.bf16.mxu0 %v3809
    %6093 = vmatpush1.bf16.msra.mxu0 %v3808
    %6094 = vmatprep.mubr.bf16.mxu0 %v1529
    %6095 = vmatmul.mubr.bf16.gmra.mrb[0].mxu0 %v1528
    %v6096 = vpop.f32.mrb[0].mxu0
    %v6097 = vadd.f32 %v2133, %v6096
    %v6098 = vpop.f32.mrb[0].mxu0
    %v6099 = vadd.f32 %v2137, %v6098
    %v6100 = vpop.f32.mrb[0].mxu0
    %v6101 = vadd.f32 %v2133, %v6100
    %v6102 = vpop.f32.mrb[0].mxu0
    %v6103 = vadd.f32 %v2137, %v6102
    %6104 = vmatprep.mubr.bf16.mxu0 %v1537
    %6105 = vmatmul.mubr.bf16.gmra.mrb[0].mxu0 %v1536
    %v6106 = vpop.f32.mrb[0].mxu0
    %v6107 = vadd.f32 %v2133, %v6106
    %v6108 = vpop.f32.mrb[0].mxu0
    %v6109 = vadd.f32 %v2137, %v6108
    %v6110 = vpop.f32.mrb[0].mxu0
    %v6111 = vadd.f32 %v2133, %v6110
    %v6112 = vpop.f32.mrb[0].mxu0
    %v6113 = vadd.f32 %v2137, %v6112
    %6114 = vmatprep.mubr.bf16.mxu0 %v1545
    %6115 = vmatmul.mubr.bf16.gmra.mrb[0].mxu0 %v1544
    %v6116 = vpop.f32.mrb[0].mxu0
    %v6117 = vadd.f32 %v2133, %v6116
    %v6118 = vpop.f32.mrb[0].mxu0
    %v6119 = vadd.f32 %v2137, %v6118
    %v6120 = vpop.f32.mrb[0].mxu0
    %v6121 = vadd.f32 %v2133, %v6120
    %v6122 = vpop.f32.mrb[0].mxu0
    %v6123 = vadd.f32 %v2137, %v6122
    %6124 = vmatprep.mubr.bf16.mxu0 %v1553
    %6125 = vmatmul.mubr.bf16.gmra.mrb[0].mxu0 %v1552
    %v6126 = vpop.f32.mrb[0].mxu0
    %v6127 = vadd.f32 %v2133, %v6126
    %v6128 = vpop.f32.mrb[0].mxu0
    %v6129 = vadd.f32 %v2137, %v6128
    %v6130 = vpop.f32.mrb[0].mxu0
    %v6131 = vadd.f32 %v2133, %v6130
    %v6132 = vpop.f32.mrb[0].mxu0
    %v6133 = vadd.f32 %v2137, %v6132
    %6134 = vmatprep.mubr.bf16.mxu0 %v1561
    %6135 = vmatmul.mubr.bf16.gmra.mrb[0].mxu0 %v1560
    %v6136 = vpop.f32.mrb[0].mxu0
    %v6137 = vadd.f32 %v2133, %v6136
    %v6138 = vpop.f32.mrb[0].mxu0
    %v6139 = vadd.f32 %v2137, %v6138
    %v6140 = vpop.f32.mrb[0].mxu0
    %v6141 = vadd.f32 %v2133, %v6140
    %v6142 = vpop.f32.mrb[0].mxu0
    %v6143 = vadd.f32 %v2137, %v6142
    %6144 = vmatprep.mubr.bf16.mxu0 %v1569
    %6145 = vmatmul.mubr.bf16.gmra.mrb[0].mxu0 %v1568
    %v6146 = vpop.f32.mrb[0].mxu0
    %v6147 = vadd.f32 %v2133, %v6146
    %v6148 = vpop.f32.mrb[0].mxu0
    %v6149 = vadd.f32 %v2137, %v6148
    %v6150 = vpop.f32.mrb[0].mxu0
    %v6151 = vadd.f32 %v2133, %v6150
    %v6152 = vpop.f32.mrb[0].mxu0
    %v6153 = vadd.f32 %v2137, %v6152
    %6154 = vmatprep.mubr.bf16.mxu0 %v1577
    %6155 = vmatmul.mubr.bf16.gmra.mrb[0].mxu0 %v1576
    %v6156 = vpop.f32.mrb[0].mxu0
    %v6157 = vadd.f32 %v2133, %v6156
    %v6158 = vpop.f32.mrb[0].mxu0
    %v6159 = vadd.f32 %v2137, %v6158
    %v6160 = vpop.f32.mrb[0].mxu0
    %v6161 = vadd.f32 %v2133, %v6160
    %v6162 = vpop.f32.mrb[0].mxu0
    %v6163 = vadd.f32 %v2137, %v6162
    %6164 = vmatprep.mubr.bf16.mxu0 %v1585
    %6165 = vmatmul.mubr.bf16.gmra.mrb[0].mxu0 %v1584
    %v6166 = vpop.f32.mrb[0].mxu0
    %v6167 = vadd.f32 %v2133, %v6166
    %v6168 = vpop.f32.mrb[0].mxu0
    %v6169 = vadd.f32 %v2137, %v6168
    %v6170 = vpop.f32.mrb[0].mxu0
    %v6171 = vadd.f32 %v2133, %v6170
    %v6172 = vpop.f32.mrb[0].mxu0
    %v6173 = vadd.f32 %v2137, %v6172
    %6174 = vdwg.mxu0
    %6175 = vmatprep.subr.bf16.mxu0 %v3817
    %6176 = vmatpush1.bf16.msra.mxu0 %v3816
    %6177 = vmatprep.subr.bf16.mxu0 %v3825
    %6178 = vmatpush1.bf16.msra.mxu0 %v3824
    %6179 = vmatprep.subr.bf16.mxu0 %v3833
    %6180 = vmatpush1.bf16.msra.mxu0 %v3832
    %6181 = vmatprep.subr.bf16.mxu0 %v3841
    %6182 = vmatpush1.bf16.msra.mxu0 %v3840
    %6183 = vmatprep.subr.bf16.mxu0 %v3849
    %6184 = vmatpush1.bf16.msra.mxu0 %v3848
    %6185 = vmatprep.subr.bf16.mxu0 %v3857
    %6186 = vmatpush1.bf16.msra.mxu0 %v3856
    %6187 = vmatprep.subr.bf16.mxu0 %v3865
    %6188 = vmatpush1.bf16.msra.mxu0 %v3864
    %6189 = vmatprep.subr.bf16.mxu0 %v3873
    %6190 = vmatpush1.bf16.msra.mxu0 %v3872
    %6191 = vmatprep.subr.bf16.mxu0 %v3881
    %6192 = vmatpush1.bf16.msra.mxu0 %v3880
    %6193 = vmatprep.subr.bf16.mxu0 %v3889
    %6194 = vmatpush1.bf16.msra.mxu0 %v3888
    %6195 = vmatprep.subr.bf16.mxu0 %v3897
    %6196 = vmatpush1.bf16.msra.mxu0 %v3896
    %6197 = vmatprep.subr.bf16.mxu0 %v3905
    %6198 = vmatpush1.bf16.msra.mxu0 %v3904
    %6199 = vmatprep.subr.bf16.mxu0 %v3913
    %6200 = vmatpush1.bf16.msra.mxu0 %v3912
    %6201 = vmatprep.subr.bf16.mxu0 %v3921
    %6202 = vmatpush1.bf16.msra.mxu0 %v3920
    %6203 = vmatprep.subr.bf16.mxu0 %v3929
    %6204 = vmatpush1.bf16.msra.mxu0 %v3928
    %6205 = vmatprep.subr.bf16.mxu0 %v3937
    %6206 = vmatpush1.bf16.msra.mxu0 %v3936
    %6207 = vmatprep.mubr.bf16.mxu0 %v1531
    %6208 = vmatmul.mubr.bf16.gmra.mrb[0].mxu0 %v1530
    %v6209 = vpop.f32.mrb[0].mxu0
    %v6210 = vadd.f32 %v6097, %v6209
    %v6211 = vpop.f32.mrb[0].mxu0
    %v6212 = vadd.f32 %v6099, %v6211
    %v6213 = vpop.f32.mrb[0].mxu0
    %v6214 = vadd.f32 %v6101, %v6213
    %v6215 = vpop.f32.mrb[0].mxu0
    %v6216 = vadd.f32 %v6103, %v6215
    %6217 = vmatprep.mubr.bf16.mxu0 %v1539
    %6218 = vmatmul.mubr.bf16.gmra.mrb[0].mxu0 %v1538
    %v6219 = vpop.f32.mrb[0].mxu0
    %v6220 = vadd.f32 %v6107, %v6219
    %v6221 = vpop.f32.mrb[0].mxu0
    %v6222 = vadd.f32 %v6109, %v6221
    %v6223 = vpop.f32.mrb[0].mxu0
    %v6224 = vadd.f32 %v6111, %v6223
    %v6225 = vpop.f32.mrb[0].mxu0
    %v6226 = vadd.f32 %v6113, %v6225
    %6227 = vmatprep.mubr.bf16.mxu0 %v1547
    %6228 = vmatmul.mubr.bf16.gmra.mrb[0].mxu0 %v1546
    %v6229 = vpop.f32.mrb[0].mxu0
    %v6230 = vadd.f32 %v6117, %v6229
    %v6231 = vpop.f32.mrb[0].mxu0
    %v6232 = vadd.f32 %v6119, %v6231
    %v6233 = vpop.f32.mrb[0].mxu0
    %v6234 = vadd.f32 %v6121, %v6233
    %v6235 = vpop.f32.mrb[0].mxu0
    %v6236 = vadd.f32 %v6123, %v6235
    %6237 = vmatprep.mubr.bf16.mxu0 %v1555
    %6238 = vmatmul.mubr.bf16.gmra.mrb[0].mxu0 %v1554
    %v6239 = vpop.f32.mrb[0].mxu0
    %v6240 = vadd.f32 %v6127, %v6239
    %v6241 = vpop.f32.mrb[0].mxu0
    %v6242 = vadd.f32 %v6129, %v6241
    %v6243 = vpop.f32.mrb[0].mxu0
    %v6244 = vadd.f32 %v6131, %v6243
    %v6245 = vpop.f32.mrb[0].mxu0
    %v6246 = vadd.f32 %v6133, %v6245
    %6247 = vmatprep.mubr.bf16.mxu0 %v1563
    %6248 = vmatmul.mubr.bf16.gmra.mrb[0].mxu0 %v1562
    %v6249 = vpop.f32.mrb[0].mxu0
    %v6250 = vadd.f32 %v6137, %v6249
    %v6251 = vpop.f32.mrb[0].mxu0
    %v6252 = vadd.f32 %v6139, %v6251
    %v6253 = vpop.f32.mrb[0].mxu0
    %v6254 = vadd.f32 %v6141, %v6253
    %v6255 = vpop.f32.mrb[0].mxu0
    %v6256 = vadd.f32 %v6143, %v6255
    %6257 = vmatprep.mubr.bf16.mxu0 %v1571
    %6258 = vmatmul.mubr.bf16.gmra.mrb[0].mxu0 %v1570
    %v6259 = vpop.f32.mrb[0].mxu0
    %v6260 = vadd.f32 %v6147, %v6259
    %v6261 = vpop.f32.mrb[0].mxu0
    %v6262 = vadd.f32 %v6149, %v6261
    %v6263 = vpop.f32.mrb[0].mxu0
    %v6264 = vadd.f32 %v6151, %v6263
    %v6265 = vpop.f32.mrb[0].mxu0
    %v6266 = vadd.f32 %v6153, %v6265
    %6267 = vmatprep.mubr.bf16.mxu0 %v1579
    %6268 = vmatmul.mubr.bf16.gmra.mrb[0].mxu0 %v1578
    %v6269 = vpop.f32.mrb[0].mxu0
    %v6270 = vadd.f32 %v6157, %v6269
    %v6271 = vpop.f32.mrb[0].mxu0
    %v6272 = vadd.f32 %v6159, %v6271
    %v6273 = vpop.f32.mrb[0].mxu0
    %v6274 = vadd.f32 %v6161, %v6273
    %v6275 = vpop.f32.mrb[0].mxu0
    %v6276 = vadd.f32 %v6163, %v6275
    %6277 = vmatprep.mubr.bf16.mxu0 %v1587
    %6278 = vmatmul.mubr.bf16.gmra.mrb[0].mxu0 %v1586
    %v6279 = vpop.f32.mrb[0].mxu0
    %v6280 = vadd.f32 %v6167, %v6279
    %v6281 = vpop.f32.mrb[0].mxu0
    %v6282 = vadd.f32 %v6169, %v6281
    %v6283 = vpop.f32.mrb[0].mxu0
    %v6284 = vadd.f32 %v6171, %v6283
    %v6285 = vpop.f32.mrb[0].mxu0
    %v6286 = vadd.f32 %v6173, %v6285
    %6287 = vdwg.mxu0
    %6288 = vmatprep.subr.bf16.mxu0 %v3945
    %6289 = vmatpush1.bf16.msra.mxu0 %v3944
    %6290 = vmatprep.subr.bf16.mxu0 %v3953
    %6291 = vmatpush1.bf16.msra.mxu0 %v3952
    %6292 = vmatprep.subr.bf16.mxu0 %v3961
    %6293 = vmatpush1.bf16.msra.mxu0 %v3960
    %6294 = vmatprep.subr.bf16.mxu0 %v3969
    %6295 = vmatpush1.bf16.msra.mxu0 %v3968
    %6296 = vmatprep.subr.bf16.mxu0 %v3977
    %6297 = vmatpush1.bf16.msra.mxu0 %v3976
    %6298 = vmatprep.subr.bf16.mxu0 %v3985
    %6299 = vmatpush1.bf16.msra.mxu0 %v3984
    %6300 = vmatprep.subr.bf16.mxu0 %v3993
    %6301 = vmatpush1.bf16.msra.mxu0 %v3992
    %6302 = vmatprep.subr.bf16.mxu0 %v4001
    %6303 = vmatpush1.bf16.msra.mxu0 %v4000
    %6304 = vmatprep.subr.bf16.mxu0 %v4009
    %6305 = vmatpush1.bf16.msra.mxu0 %v4008
    %6306 = vmatprep.subr.bf16.mxu0 %v4017
    %6307 = vmatpush1.bf16.msra.mxu0 %v4016
    %6308 = vmatprep.subr.bf16.mxu0 %v4025
    %6309 = vmatpush1.bf16.msra.mxu0 %v4024
    %6310 = vmatprep.subr.bf16.mxu0 %v4033
    %6311 = vmatpush1.bf16.msra.mxu0 %v4032
    %6312 = vmatprep.subr.bf16.mxu0 %v4041
    %6313 = vmatpush1.bf16.msra.mxu0 %v4040
    %6314 = vmatprep.subr.bf16.mxu0 %v4049
    %6315 = vmatpush1.bf16.msra.mxu0 %v4048
    %6316 = vmatprep.subr.bf16.mxu0 %v4057
    %6317 = vmatpush1.bf16.msra.mxu0 %v4056
    %6318 = vmatprep.subr.bf16.mxu0 %v4065
    %6319 = vmatpush1.bf16.msra.mxu0 %v4064
    %6320 = vmatprep.mubr.bf16.mxu0 %v1533
    %6321 = vmatmul.mubr.bf16.gmra.mrb[0].mxu0 %v1532
    %v6322 = vpop.f32.mrb[0].mxu0
    %v6323 = vadd.f32 %v6210, %v6322
    %v6324 = vpop.f32.mrb[0].mxu0
    %v6325 = vadd.f32 %v6212, %v6324
    %v6326 = vpop.f32.mrb[0].mxu0
    %v6327 = vadd.f32 %v6214, %v6326
    %v6328 = vpop.f32.mrb[0].mxu0
    %v6329 = vadd.f32 %v6216, %v6328
    %6330 = vmatprep.mubr.bf16.mxu0 %v1541
    %6331 = vmatmul.mubr.bf16.gmra.mrb[0].mxu0 %v1540
    %v6332 = vpop.f32.mrb[0].mxu0
    %v6333 = vadd.f32 %v6220, %v6332
    %v6334 = vpop.f32.mrb[0].mxu0
    %v6335 = vadd.f32 %v6222, %v6334
    %v6336 = vpop.f32.mrb[0].mxu0
    %v6337 = vadd.f32 %v6224, %v6336
    %v6338 = vpop.f32.mrb[0].mxu0
    %v6339 = vadd.f32 %v6226, %v6338
    %6340 = vmatprep.mubr.bf16.mxu0 %v1549
    %6341 = vmatmul.mubr.bf16.gmra.mrb[0].mxu0 %v1548
    %v6342 = vpop.f32.mrb[0].mxu0
    %v6343 = vadd.f32 %v6230, %v6342
    %v6344 = vpop.f32.mrb[0].mxu0
    %v6345 = vadd.f32 %v6232, %v6344
    %v6346 = vpop.f32.mrb[0].mxu0
    %v6347 = vadd.f32 %v6234, %v6346
    %v6348 = vpop.f32.mrb[0].mxu0
    %v6349 = vadd.f32 %v6236, %v6348
    %6350 = vmatprep.mubr.bf16.mxu0 %v1557
    %6351 = vmatmul.mubr.bf16.gmra.mrb[0].mxu0 %v1556
    %v6352 = vpop.f32.mrb[0].mxu0
    %v6353 = vadd.f32 %v6240, %v6352
    %v6354 = vpop.f32.mrb[0].mxu0
    %v6355 = vadd.f32 %v6242, %v6354
    %v6356 = vpop.f32.mrb[0].mxu0
    %v6357 = vadd.f32 %v6244, %v6356
    %v6358 = vpop.f32.mrb[0].mxu0
    %v6359 = vadd.f32 %v6246, %v6358
    %6360 = vmatprep.mubr.bf16.mxu0 %v1565
    %6361 = vmatmul.mubr.bf16.gmra.mrb[0].mxu0 %v1564
    %v6362 = vpop.f32.mrb[0].mxu0
    %v6363 = vadd.f32 %v6250, %v6362
    %v6364 = vpop.f32.mrb[0].mxu0
    %v6365 = vadd.f32 %v6252, %v6364
    %v6366 = vpop.f32.mrb[0].mxu0
    %v6367 = vadd.f32 %v6254, %v6366
    %v6368 = vpop.f32.mrb[0].mxu0
    %v6369 = vadd.f32 %v6256, %v6368
    %6370 = vmatprep.mubr.bf16.mxu0 %v1573
    %6371 = vmatmul.mubr.bf16.gmra.mrb[0].mxu0 %v1572
    %v6372 = vpop.f32.mrb[0].mxu0
    %v6373 = vadd.f32 %v6260, %v6372
    %v6374 = vpop.f32.mrb[0].mxu0
    %v6375 = vadd.f32 %v6262, %v6374
    %v6376 = vpop.f32.mrb[0].mxu0
    %v6377 = vadd.f32 %v6264, %v6376
    %v6378 = vpop.f32.mrb[0].mxu0
    %v6379 = vadd.f32 %v6266, %v6378
    %6380 = vmatprep.mubr.bf16.mxu0 %v1581
    %6381 = vmatmul.mubr.bf16.gmra.mrb[0].mxu0 %v1580
    %v6382 = vpop.f32.mrb[0].mxu0
    %v6383 = vadd.f32 %v6270, %v6382
    %v6384 = vpop.f32.mrb[0].mxu0
    %v6385 = vadd.f32 %v6272, %v6384
    %v6386 = vpop.f32.mrb[0].mxu0
    %v6387 = vadd.f32 %v6274, %v6386
    %v6388 = vpop.f32.mrb[0].mxu0
    %v6389 = vadd.f32 %v6276, %v6388
    %6390 = vmatprep.mubr.bf16.mxu0 %v1589
    %6391 = vmatmul.mubr.bf16.gmra.mrb[0].mxu0 %v1588
    %v6392 = vpop.f32.mrb[0].mxu0
    %v6393 = vadd.f32 %v6280, %v6392
    %v6394 = vpop.f32.mrb[0].mxu0
    %v6395 = vadd.f32 %v6282, %v6394
    %v6396 = vpop.f32.mrb[0].mxu0
    %v6397 = vadd.f32 %v6284, %v6396
    %v6398 = vpop.f32.mrb[0].mxu0
    %v6399 = vadd.f32 %v6286, %v6398
    %6400 = vdwg.mxu0
    %6401 = vmatprep.subr.bf16.mxu0 %v4073
    %6402 = vmatpush1.bf16.msra.mxu0 %v4072
    %6403 = vmatprep.subr.bf16.mxu0 %v4081
    %6404 = vmatpush1.bf16.msra.mxu0 %v4080
    %6405 = vmatprep.subr.bf16.mxu0 %v4089
    %6406 = vmatpush1.bf16.msra.mxu0 %v4088
    %6407 = vmatprep.subr.bf16.mxu0 %v4097
    %6408 = vmatpush1.bf16.msra.mxu0 %v4096
    %6409 = vmatprep.subr.bf16.mxu0 %v4105
    %6410 = vmatpush1.bf16.msra.mxu0 %v4104
    %6411 = vmatprep.subr.bf16.mxu0 %v4113
    %6412 = vmatpush1.bf16.msra.mxu0 %v4112
    %6413 = vmatprep.subr.bf16.mxu0 %v4121
    %6414 = vmatpush1.bf16.msra.mxu0 %v4120
    %6415 = vmatprep.subr.bf16.mxu0 %v4129
    %6416 = vmatpush1.bf16.msra.mxu0 %v4128
    %6417 = vmatprep.subr.bf16.mxu0 %v4137
    %6418 = vmatpush1.bf16.msra.mxu0 %v4136
    %6419 = vmatprep.subr.bf16.mxu0 %v4145
    %6420 = vmatpush1.bf16.msra.mxu0 %v4144
    %6421 = vmatprep.subr.bf16.mxu0 %v4153
    %6422 = vmatpush1.bf16.msra.mxu0 %v4152
    %6423 = vmatprep.subr.bf16.mxu0 %v4161
    %6424 = vmatpush1.bf16.msra.mxu0 %v4160
    %6425 = vmatprep.subr.bf16.mxu0 %v4169
    %6426 = vmatpush1.bf16.msra.mxu0 %v4168
    %6427 = vmatprep.subr.bf16.mxu0 %v4177
    %6428 = vmatpush1.bf16.msra.mxu0 %v4176
    %6429 = vmatprep.subr.bf16.mxu0 %v4185
    %6430 = vmatpush1.bf16.msra.mxu0 %v4184
    %6431 = vmatprep.subr.bf16.mxu0 %v4193
    %6432 = vmatpush1.bf16.msra.mxu0 %v4192
    %6433 = vmatprep.mubr.bf16.mxu0 %v1535
    %6434 = vmatmul.mubr.bf16.gmra.mrb[0].mxu0 %v1534
    %v6435 = vpop.f32.mrb[0].mxu0
    %v6436 = vadd.f32 %v6323, %v6435
    %v6437 = vpop.f32.mrb[0].mxu0
    %v6438 = vadd.f32 %v6325, %v6437
    %v6439 = vpop.f32.mrb[0].mxu0
    %v6440 = vadd.f32 %v6327, %v6439
    %v6441 = vpop.f32.mrb[0].mxu0
    %v6442 = vadd.f32 %v6329, %v6441
    %6443 = vmatprep.mubr.bf16.mxu0 %v1543
    %6444 = vmatmul.mubr.bf16.gmra.mrb[0].mxu0 %v1542
    %v6445 = vpop.f32.mrb[0].mxu0
    %v6446 = vadd.f32 %v6333, %v6445
    %v6447 = vpop.f32.mrb[0].mxu0
    %v6448 = vadd.f32 %v6335, %v6447
    %v6449 = vpop.f32.mrb[0].mxu0
    %v6450 = vadd.f32 %v6337, %v6449
    %v6451 = vpop.f32.mrb[0].mxu0
    %v6452 = vadd.f32 %v6339, %v6451
    %6453 = vmatprep.mubr.bf16.mxu0 %v1551
    %6454 = vmatmul.mubr.bf16.gmra.mrb[0].mxu0 %v1550
    %v6455 = vpop.f32.mrb[0].mxu0
    %v6456 = vadd.f32 %v6343, %v6455
    %v6457 = vpop.f32.mrb[0].mxu0
    %v6458 = vadd.f32 %v6345, %v6457
    %v6459 = vpop.f32.mrb[0].mxu0
    %v6460 = vadd.f32 %v6347, %v6459
    %v6461 = vpop.f32.mrb[0].mxu0
    %v6462 = vadd.f32 %v6349, %v6461
    %6463 = vmatprep.mubr.bf16.mxu0 %v1559
    %6464 = vmatmul.mubr.bf16.gmra.mrb[0].mxu0 %v1558
    %v6465 = vpop.f32.mrb[0].mxu0
    %v6466 = vadd.f32 %v6353, %v6465
    %v6467 = vpop.f32.mrb[0].mxu0
    %v6468 = vadd.f32 %v6355, %v6467
    %v6469 = vpop.f32.mrb[0].mxu0
    %v6470 = vadd.f32 %v6357, %v6469
    %v6471 = vpop.f32.mrb[0].mxu0
    %v6472 = vadd.f32 %v6359, %v6471
    %6473 = vmatprep.mubr.bf16.mxu0 %v1567
    %6474 = vmatmul.mubr.bf16.gmra.mrb[0].mxu0 %v1566
    %v6475 = vpop.f32.mrb[0].mxu0
    %v6476 = vadd.f32 %v6363, %v6475
    %v6477 = vpop.f32.mrb[0].mxu0
    %v6478 = vadd.f32 %v6365, %v6477
    %v6479 = vpop.f32.mrb[0].mxu0
    %v6480 = vadd.f32 %v6367, %v6479
    %v6481 = vpop.f32.mrb[0].mxu0
    %v6482 = vadd.f32 %v6369, %v6481
    %6483 = vmatprep.mubr.bf16.mxu0 %v1575
    %6484 = vmatmul.mubr.bf16.gmra.mrb[0].mxu0 %v1574
    %v6485 = vpop.f32.mrb[0].mxu0
    %v6486 = vadd.f32 %v6373, %v6485
    %v6487 = vpop.f32.mrb[0].mxu0
    %v6488 = vadd.f32 %v6375, %v6487
    %v6489 = vpop.f32.mrb[0].mxu0
    %v6490 = vadd.f32 %v6377, %v6489
    %v6491 = vpop.f32.mrb[0].mxu0
    %v6492 = vadd.f32 %v6379, %v6491
    %6493 = vmatprep.mubr.bf16.mxu0 %v1583
    %6494 = vmatmul.mubr.bf16.gmra.mrb[0].mxu0 %v1582
    %v6495 = vpop.f32.mrb[0].mxu0
    %v6496 = vadd.f32 %v6383, %v6495
    %v6497 = vpop.f32.mrb[0].mxu0
    %v6498 = vadd.f32 %v6385, %v6497
    %v6499 = vpop.f32.mrb[0].mxu0
    %v6500 = vadd.f32 %v6387, %v6499
    %v6501 = vpop.f32.mrb[0].mxu0
    %v6502 = vadd.f32 %v6389, %v6501
    %6503 = vmatprep.mubr.bf16.mxu0 %v1591
    %6504 = vmatmul.mubr.bf16.gmra.mrb[0].mxu0 %v1590
    %v6505 = vpop.f32.mrb[0].mxu0
    %v6506 = vadd.f32 %v6393, %v6505
    %v6507 = vpop.f32.mrb[0].mxu0
    %v6508 = vadd.f32 %v6395, %v6507
    %v6509 = vpop.f32.mrb[0].mxu0
    %v6510 = vadd.f32 %v6397, %v6509
    %v6511 = vpop.f32.mrb[0].mxu0
    %v6512 = vadd.f32 %v6399, %v6511
    %6513 = vdwg.mxu0
    %v6514 = vmax.f32 %v5080, 0.0
    %v6515 = vmax.f32 %v5082, 0.0
    %v6516 = vmax.f32 %v5532, 0.0
    %v6517 = vmax.f32 %v5534, 0.0
    %v6518 = vmax.f32 %v5984, 0.0
    %v6519 = vmax.f32 %v5986, 0.0
    %v6520 = vmax.f32 %v6436, 0.0
    %v6521 = vmax.f32 %v6438, 0.0
    %v6522 = vmax.f32 %v5084, 0.0
    %v6523 = vmax.f32 %v5086, 0.0
    %v6524 = vmax.f32 %v5536, 0.0
    %v6525 = vmax.f32 %v5538, 0.0
    %v6526 = vmax.f32 %v5988, 0.0
    %v6527 = vmax.f32 %v5990, 0.0
    %v6528 = vmax.f32 %v6440, 0.0
    %v6529 = vmax.f32 %v6442, 0.0
    %v6530 = vmax.f32 %v5090, 0.0
    %v6531 = vmax.f32 %v5092, 0.0
    %v6532 = vmax.f32 %v5542, 0.0
    %v6533 = vmax.f32 %v5544, 0.0
    %v6534 = vmax.f32 %v5994, 0.0
    %v6535 = vmax.f32 %v5996, 0.0
    %v6536 = vmax.f32 %v6446, 0.0
    %v6537 = vmax.f32 %v6448, 0.0
    %v6538 = vmax.f32 %v5094, 0.0
    %v6539 = vmax.f32 %v5096, 0.0
    %v6540 = vmax.f32 %v5546, 0.0
    %v6541 = vmax.f32 %v5548, 0.0
    %v6542 = vmax.f32 %v5998, 0.0
    %v6543 = vmax.f32 %v6000, 0.0
    %v6544 = vmax.f32 %v6450, 0.0
    %v6545 = vmax.f32 %v6452, 0.0
    %v6546 = vmax.f32 %v5100, 0.0
    %v6547 = vmax.f32 %v5102, 0.0
    %v6548 = vmax.f32 %v5552, 0.0
    %v6549 = vmax.f32 %v5554, 0.0
    %v6550 = vmax.f32 %v6004, 0.0
    %v6551 = vmax.f32 %v6006, 0.0
    %v6552 = vmax.f32 %v6456, 0.0
    %v6553 = vmax.f32 %v6458, 0.0
    %v6554 = vmax.f32 %v5104, 0.0
    %v6555 = vmax.f32 %v5106, 0.0
    %v6556 = vmax.f32 %v5556, 0.0
    %v6557 = vmax.f32 %v5558, 0.0
    %v6558 = vmax.f32 %v6008, 0.0
    %v6559 = vmax.f32 %v6010, 0.0
    %v6560 = vmax.f32 %v6460, 0.0
    %v6561 = vmax.f32 %v6462, 0.0
    %v6562 = vmax.f32 %v5110, 0.0
    %v6563 = vmax.f32 %v5112, 0.0
    %v6564 = vmax.f32 %v5562, 0.0
    %v6565 = vmax.f32 %v5564, 0.0
    %v6566 = vmax.f32 %v6014, 0.0
    %v6567 = vmax.f32 %v6016, 0.0
    %v6568 = vmax.f32 %v6466, 0.0
    %v6569 = vmax.f32 %v6468, 0.0
    %v6570 = vmax.f32 %v5114, 0.0
    %v6571 = vmax.f32 %v5116, 0.0
    %v6572 = vmax.f32 %v5566, 0.0
    %v6573 = vmax.f32 %v5568, 0.0
    %v6574 = vmax.f32 %v6018, 0.0
    %v6575 = vmax.f32 %v6020, 0.0
    %v6576 = vmax.f32 %v6470, 0.0
    %v6577 = vmax.f32 %v6472, 0.0
    %v6578 = vmax.f32 %v5120, 0.0
    %v6579 = vmax.f32 %v5122, 0.0
    %v6580 = vmax.f32 %v5572, 0.0
    %v6581 = vmax.f32 %v5574, 0.0
    %v6582 = vmax.f32 %v6024, 0.0
    %v6583 = vmax.f32 %v6026, 0.0
    %v6584 = vmax.f32 %v6476, 0.0
    %v6585 = vmax.f32 %v6478, 0.0
    %v6586 = vmax.f32 %v5124, 0.0
    %v6587 = vmax.f32 %v5126, 0.0
    %v6588 = vmax.f32 %v5576, 0.0
    %v6589 = vmax.f32 %v5578, 0.0
    %v6590 = vmax.f32 %v6028, 0.0
    %v6591 = vmax.f32 %v6030, 0.0
    %v6592 = vmax.f32 %v6480, 0.0
    %v6593 = vmax.f32 %v6482, 0.0
    %v6594 = vmax.f32 %v5130, 0.0
    %v6595 = vmax.f32 %v5132, 0.0
    %v6596 = vmax.f32 %v5582, 0.0
    %v6597 = vmax.f32 %v5584, 0.0
    %v6598 = vmax.f32 %v6034, 0.0
    %v6599 = vmax.f32 %v6036, 0.0
    %v6600 = vmax.f32 %v6486, 0.0
    %v6601 = vmax.f32 %v6488, 0.0
    %v6602 = vmax.f32 %v5134, 0.0
    %v6603 = vmax.f32 %v5136, 0.0
    %v6604 = vmax.f32 %v5586, 0.0
    %v6605 = vmax.f32 %v5588, 0.0
    %v6606 = vmax.f32 %v6038, 0.0
    %v6607 = vmax.f32 %v6040, 0.0
    %v6608 = vmax.f32 %v6490, 0.0
    %v6609 = vmax.f32 %v6492, 0.0
    %v6610 = vmax.f32 %v5140, 0.0
    %v6611 = vmax.f32 %v5142, 0.0
    %v6612 = vmax.f32 %v5592, 0.0
    %v6613 = vmax.f32 %v5594, 0.0
    %v6614 = vmax.f32 %v6044, 0.0
    %v6615 = vmax.f32 %v6046, 0.0
    %v6616 = vmax.f32 %v6496, 0.0
    %v6617 = vmax.f32 %v6498, 0.0
    %v6618 = vmax.f32 %v5144, 0.0
    %v6619 = vmax.f32 %v5146, 0.0
    %v6620 = vmax.f32 %v5596, 0.0
    %v6621 = vmax.f32 %v5598, 0.0
    %v6622 = vmax.f32 %v6048, 0.0
    %v6623 = vmax.f32 %v6050, 0.0
    %v6624 = vmax.f32 %v6500, 0.0
    %v6625 = vmax.f32 %v6502, 0.0
    %v6626 = vmax.f32 %v5150, 0.0
    %v6627 = vmax.f32 %v5152, 0.0
    %v6628 = vmax.f32 %v5602, 0.0
    %v6629 = vmax.f32 %v5604, 0.0
    %v6630 = vmax.f32 %v6054, 0.0
    %v6631 = vmax.f32 %v6056, 0.0
    %v6632 = vmax.f32 %v6506, 0.0
    %v6633 = vmax.f32 %v6508, 0.0
    %v6634 = vmax.f32 %v5154, 0.0
    %v6635 = vmax.f32 %v5156, 0.0
    %v6636 = vmax.f32 %v5606, 0.0
    %v6637 = vmax.f32 %v5608, 0.0
    %v6638 = vmax.f32 %v6058, 0.0
    %v6639 = vmax.f32 %v6060, 0.0
    %v6640 = vmax.f32 %v6510, 0.0
    %v6641 = vmax.f32 %v6512, 0.0
    %v6642 = vld [vmem:[#allocation10] sm:$0xff]
    %v6643 = vunpack.c.l.bf16 %v6642
    %v6644 = vunpack.c.h.bf16 %v6642
    %v6647 = vlaneseq
    %v6648 = vshrl.u32 %v6647, 7
    %v6649 = vsub.s32 0, %v6648
    %v6650 = vrot.slane %v6643, %v6649
    %v6651 = vlaneseq
    %v6652 = vshrl.u32 %v6651, 7
    %v6653 = vsub.s32 2, %v6652
    %v6654 = vrot.slane %v6643, %v6653
    %v6655 = vlaneseq
    %v6656 = vshrl.u32 %v6655, 7
    %v6657 = vsub.s32 4, %v6656
    %v6658 = vrot.slane %v6643, %v6657
    %v6659 = vlaneseq
    %v6660 = vshrl.u32 %v6659, 7
    %v6661 = vsub.s32 6, %v6660
    %v6662 = vrot.slane %v6643, %v6661
    %v6663 = vlaneseq
    %v6664 = vshrl.u32 %v6663, 7
    %v6665 = vsub.s32 0, %v6664
    %v6666 = vrot.slane %v6644, %v6665
    %v6667 = vlaneseq
    %v6668 = vshrl.u32 %v6667, 7
    %v6669 = vsub.s32 2, %v6668
    %v6670 = vrot.slane %v6644, %v6669
    %v6671 = vlaneseq
    %v6672 = vshrl.u32 %v6671, 7
    %v6673 = vsub.s32 4, %v6672
    %v6674 = vrot.slane %v6644, %v6673
    %v6675 = vlaneseq
    %v6676 = vshrl.u32 %v6675, 7
    %v6677 = vsub.s32 6, %v6676
    %v6678 = vrot.slane %v6644, %v6677
    %v6687 = vlaneseq
    %v6688 = vshrl.u32 %v6687, 7
    %v6689 = vsub.s32 0, %v6688
    %v6690 = vrot.slane %v6650, %v6689
    %v6691 = vlaneseq
    %v6692 = vshrl.u32 %v6691, 7
    %v6693 = vsub.s32 0, %v6692
    %v6694 = vrot.slane %v6654, %v6693
    %v6695 = vlaneseq
    %v6696 = vshrl.u32 %v6695, 7
    %v6697 = vsub.s32 0, %v6696
    %v6698 = vrot.slane %v6658, %v6697
    %v6699 = vlaneseq
    %v6700 = vshrl.u32 %v6699, 7
    %v6701 = vsub.s32 0, %v6700
    %v6702 = vrot.slane %v6662, %v6701
    %v6703 = vlaneseq
    %v6704 = vshrl.u32 %v6703, 7
    %v6705 = vsub.s32 0, %v6704
    %v6706 = vrot.slane %v6666, %v6705
    %v6707 = vlaneseq
    %v6708 = vshrl.u32 %v6707, 7
    %v6709 = vsub.s32 0, %v6708
    %v6710 = vrot.slane %v6670, %v6709
    %v6711 = vlaneseq
    %v6712 = vshrl.u32 %v6711, 7
    %v6713 = vsub.s32 0, %v6712
    %v6714 = vrot.slane %v6674, %v6713
    %v6715 = vlaneseq
    %v6716 = vshrl.u32 %v6715, 7
    %v6717 = vsub.s32 0, %v6716
    %v6718 = vrot.slane %v6678, %v6717
    %v6719 = vmul.f32 %v6514, %v6690
    %v6720 = vmul.f32 %v6515, %v6694
    %v6721 = vmul.f32 %v6516, %v6698
    %v6722 = vmul.f32 %v6517, %v6702
    %v6723 = vmul.f32 %v6518, %v6706
    %v6724 = vmul.f32 %v6519, %v6710
    %v6725 = vmul.f32 %v6520, %v6714
    %v6726 = vmul.f32 %v6521, %v6718
    %v6727 = vmul.f32 %v6522, %v6690
    %v6728 = vmul.f32 %v6523, %v6694
    %v6729 = vmul.f32 %v6524, %v6698
    %v6730 = vmul.f32 %v6525, %v6702
    %v6731 = vmul.f32 %v6526, %v6706
    %v6732 = vmul.f32 %v6527, %v6710
    %v6733 = vmul.f32 %v6528, %v6714
    %v6734 = vmul.f32 %v6529, %v6718
    %v6735 = vmul.f32 %v6530, %v6690
    %v6736 = vmul.f32 %v6531, %v6694
    %v6737 = vmul.f32 %v6532, %v6698
    %v6738 = vmul.f32 %v6533, %v6702
    %v6739 = vmul.f32 %v6534, %v6706
    %v6740 = vmul.f32 %v6535, %v6710
    %v6741 = vmul.f32 %v6536, %v6714
    %v6742 = vmul.f32 %v6537, %v6718
    %v6743 = vmul.f32 %v6538, %v6690
    %v6744 = vmul.f32 %v6539, %v6694
    %v6745 = vmul.f32 %v6540, %v6698
    %v6746 = vmul.f32 %v6541, %v6702
    %v6747 = vmul.f32 %v6542, %v6706
    %v6748 = vmul.f32 %v6543, %v6710
    %v6749 = vmul.f32 %v6544, %v6714
    %v6750 = vmul.f32 %v6545, %v6718
    %v6751 = vmul.f32 %v6546, %v6690
    %v6752 = vmul.f32 %v6547, %v6694
    %v6753 = vmul.f32 %v6548, %v6698
    %v6754 = vmul.f32 %v6549, %v6702
    %v6755 = vmul.f32 %v6550, %v6706
    %v6756 = vmul.f32 %v6551, %v6710
    %v6757 = vmul.f32 %v6552, %v6714
    %v6758 = vmul.f32 %v6553, %v6718
    %v6759 = vmul.f32 %v6554, %v6690
    %v6760 = vmul.f32 %v6555, %v6694
    %v6761 = vmul.f32 %v6556, %v6698
    %v6762 = vmul.f32 %v6557, %v6702
    %v6763 = vmul.f32 %v6558, %v6706
    %v6764 = vmul.f32 %v6559, %v6710
    %v6765 = vmul.f32 %v6560, %v6714
    %v6766 = vmul.f32 %v6561, %v6718
    %v6767 = vmul.f32 %v6562, %v6690
    %v6768 = vmul.f32 %v6563, %v6694
    %v6769 = vmul.f32 %v6564, %v6698
    %v6770 = vmul.f32 %v6565, %v6702
    %v6771 = vmul.f32 %v6566, %v6706
    %v6772 = vmul.f32 %v6567, %v6710
    %v6773 = vmul.f32 %v6568, %v6714
    %v6774 = vmul.f32 %v6569, %v6718
    %v6775 = vmul.f32 %v6570, %v6690
    %v6776 = vmul.f32 %v6571, %v6694
    %v6777 = vmul.f32 %v6572, %v6698
    %v6778 = vmul.f32 %v6573, %v6702
    %v6779 = vmul.f32 %v6574, %v6706
    %v6780 = vmul.f32 %v6575, %v6710
    %v6781 = vmul.f32 %v6576, %v6714
    %v6782 = vmul.f32 %v6577, %v6718
    %v6783 = vmul.f32 %v6578, %v6690
    %v6784 = vmul.f32 %v6579, %v6694
    %v6785 = vmul.f32 %v6580, %v6698
    %v6786 = vmul.f32 %v6581, %v6702
    %v6787 = vmul.f32 %v6582, %v6706
    %v6788 = vmul.f32 %v6583, %v6710
    %v6789 = vmul.f32 %v6584, %v6714
    %v6790 = vmul.f32 %v6585, %v6718
    %v6791 = vmul.f32 %v6586, %v6690
    %v6792 = vmul.f32 %v6587, %v6694
    %v6793 = vmul.f32 %v6588, %v6698
    %v6794 = vmul.f32 %v6589, %v6702
    %v6795 = vmul.f32 %v6590, %v6706
    %v6796 = vmul.f32 %v6591, %v6710
    %v6797 = vmul.f32 %v6592, %v6714
    %v6798 = vmul.f32 %v6593, %v6718
    %v6799 = vmul.f32 %v6594, %v6690
    %v6800 = vmul.f32 %v6595, %v6694
    %v6801 = vmul.f32 %v6596, %v6698
    %v6802 = vmul.f32 %v6597, %v6702
    %v6803 = vmul.f32 %v6598, %v6706
    %v6804 = vmul.f32 %v6599, %v6710
    %v6805 = vmul.f32 %v6600, %v6714
    %v6806 = vmul.f32 %v6601, %v6718
    %v6807 = vmul.f32 %v6602, %v6690
    %v6808 = vmul.f32 %v6603, %v6694
    %v6809 = vmul.f32 %v6604, %v6698
    %v6810 = vmul.f32 %v6605, %v6702
    %v6811 = vmul.f32 %v6606, %v6706
    %v6812 = vmul.f32 %v6607, %v6710
    %v6813 = vmul.f32 %v6608, %v6714
    %v6814 = vmul.f32 %v6609, %v6718
    %v6815 = vmul.f32 %v6610, %v6690
    %v6816 = vmul.f32 %v6611, %v6694
    %v6817 = vmul.f32 %v6612, %v6698
    %v6818 = vmul.f32 %v6613, %v6702
    %v6819 = vmul.f32 %v6614, %v6706
    %v6820 = vmul.f32 %v6615, %v6710
    %v6821 = vmul.f32 %v6616, %v6714
    %v6822 = vmul.f32 %v6617, %v6718
    %v6823 = vmul.f32 %v6618, %v6690
    %v6824 = vmul.f32 %v6619, %v6694
    %v6825 = vmul.f32 %v6620, %v6698
    %v6826 = vmul.f32 %v6621, %v6702
    %v6827 = vmul.f32 %v6622, %v6706
    %v6828 = vmul.f32 %v6623, %v6710
    %v6829 = vmul.f32 %v6624, %v6714
    %v6830 = vmul.f32 %v6625, %v6718
    %v6831 = vmul.f32 %v6626, %v6690
    %v6832 = vmul.f32 %v6627, %v6694
    %v6833 = vmul.f32 %v6628, %v6698
    %v6834 = vmul.f32 %v6629, %v6702
    %v6835 = vmul.f32 %v6630, %v6706
    %v6836 = vmul.f32 %v6631, %v6710
    %v6837 = vmul.f32 %v6632, %v6714
    %v6838 = vmul.f32 %v6633, %v6718
    %v6839 = vmul.f32 %v6634, %v6690
    %v6840 = vmul.f32 %v6635, %v6694
    %v6841 = vmul.f32 %v6636, %v6698
    %v6842 = vmul.f32 %v6637, %v6702
    %v6843 = vmul.f32 %v6638, %v6706
    %v6844 = vmul.f32 %v6639, %v6710
    %v6845 = vmul.f32 %v6640, %v6714
    %v6846 = vmul.f32 %v6641, %v6718
    %v6847 = vadd.f32 %v6719, %v6720
    %v6848 = vadd.f32 %v6847, %v6721
    %v6849 = vadd.f32 %v6848, %v6722
    %v6850 = vadd.f32 %v6849, %v6723
    %v6851 = vadd.f32 %v6850, %v6724
    %v6852 = vadd.f32 %v6851, %v6725
    %v6853 = vadd.f32 %v6852, %v6726
    %6854 = vadd.xlane.f32.xlu0 %v6853
    %v6855 = vpop.xlane.xlu0 %6854
    %v6856 = vadd.f32 %v6727, %v6728
    %v6857 = vadd.f32 %v6856, %v6729
    %v6858 = vadd.f32 %v6857, %v6730
    %v6859 = vadd.f32 %v6858, %v6731
    %v6860 = vadd.f32 %v6859, %v6732
    %v6861 = vadd.f32 %v6860, %v6733
    %v6862 = vadd.f32 %v6861, %v6734
    %6863 = vadd.xlane.f32.xlu0 %v6862
    %v6864 = vpop.xlane.xlu0 %6863
    %v6865 = vadd.f32 %v6735, %v6736
    %v6866 = vadd.f32 %v6865, %v6737
    %v6867 = vadd.f32 %v6866, %v6738
    %v6868 = vadd.f32 %v6867, %v6739
    %v6869 = vadd.f32 %v6868, %v6740
    %v6870 = vadd.f32 %v6869, %v6741
    %v6871 = vadd.f32 %v6870, %v6742
    %6872 = vadd.xlane.f32.xlu0 %v6871
    %v6873 = vpop.xlane.xlu0 %6872
    %v6874 = vadd.f32 %v6743, %v6744
    %v6875 = vadd.f32 %v6874, %v6745
    %v6876 = vadd.f32 %v6875, %v6746
    %v6877 = vadd.f32 %v6876, %v6747
    %v6878 = vadd.f32 %v6877, %v6748
    %v6879 = vadd.f32 %v6878, %v6749
    %v6880 = vadd.f32 %v6879, %v6750
    %6881 = vadd.xlane.f32.xlu0 %v6880
    %v6882 = vpop.xlane.xlu0 %6881
    %v6883 = vadd.f32 %v6751, %v6752
    %v6884 = vadd.f32 %v6883, %v6753
    %v6885 = vadd.f32 %v6884, %v6754
    %v6886 = vadd.f32 %v6885, %v6755
    %v6887 = vadd.f32 %v6886, %v6756
    %v6888 = vadd.f32 %v6887, %v6757
    %v6889 = vadd.f32 %v6888, %v6758
    %6890 = vadd.xlane.f32.xlu0 %v6889
    %v6891 = vpop.xlane.xlu0 %6890
    %v6892 = vadd.f32 %v6759, %v6760
    %v6893 = vadd.f32 %v6892, %v6761
    %v6894 = vadd.f32 %v6893, %v6762
    %v6895 = vadd.f32 %v6894, %v6763
    %v6896 = vadd.f32 %v6895, %v6764
    %v6897 = vadd.f32 %v6896, %v6765
    %v6898 = vadd.f32 %v6897, %v6766
    %6899 = vadd.xlane.f32.xlu0 %v6898
    %v6900 = vpop.xlane.xlu0 %6899
    %v6901 = vadd.f32 %v6767, %v6768
    %v6902 = vadd.f32 %v6901, %v6769
    %v6903 = vadd.f32 %v6902, %v6770
    %v6904 = vadd.f32 %v6903, %v6771
    %v6905 = vadd.f32 %v6904, %v6772
    %v6906 = vadd.f32 %v6905, %v6773
    %v6907 = vadd.f32 %v6906, %v6774
    %6908 = vadd.xlane.f32.xlu0 %v6907
    %v6909 = vpop.xlane.xlu0 %6908
    %v6910 = vadd.f32 %v6775, %v6776
    %v6911 = vadd.f32 %v6910, %v6777
    %v6912 = vadd.f32 %v6911, %v6778
    %v6913 = vadd.f32 %v6912, %v6779
    %v6914 = vadd.f32 %v6913, %v6780
    %v6915 = vadd.f32 %v6914, %v6781
    %v6916 = vadd.f32 %v6915, %v6782
    %6917 = vadd.xlane.f32.xlu0 %v6916
    %v6918 = vpop.xlane.xlu0 %6917
    %v6919 = vadd.f32 %v6783, %v6784
    %v6920 = vadd.f32 %v6919, %v6785
    %v6921 = vadd.f32 %v6920, %v6786
    %v6922 = vadd.f32 %v6921, %v6787
    %v6923 = vadd.f32 %v6922, %v6788
    %v6924 = vadd.f32 %v6923, %v6789
    %v6925 = vadd.f32 %v6924, %v6790
    %6926 = vadd.xlane.f32.xlu0 %v6925
    %v6927 = vpop.xlane.xlu0 %6926
    %v6928 = vadd.f32 %v6791, %v6792
    %v6929 = vadd.f32 %v6928, %v6793
    %v6930 = vadd.f32 %v6929, %v6794
    %v6931 = vadd.f32 %v6930, %v6795
    %v6932 = vadd.f32 %v6931, %v6796
    %v6933 = vadd.f32 %v6932, %v6797
    %v6934 = vadd.f32 %v6933, %v6798
    %6935 = vadd.xlane.f32.xlu0 %v6934
    %v6936 = vpop.xlane.xlu0 %6935
    %v6937 = vadd.f32 %v6799, %v6800
    %v6938 = vadd.f32 %v6937, %v6801
    %v6939 = vadd.f32 %v6938, %v6802
    %v6940 = vadd.f32 %v6939, %v6803
    %v6941 = vadd.f32 %v6940, %v6804
    %v6942 = vadd.f32 %v6941, %v6805
    %v6943 = vadd.f32 %v6942, %v6806
    %6944 = vadd.xlane.f32.xlu0 %v6943
    %v6945 = vpop.xlane.xlu0 %6944
    %v6946 = vadd.f32 %v6807, %v6808
    %v6947 = vadd.f32 %v6946, %v6809
    %v6948 = vadd.f32 %v6947, %v6810
    %v6949 = vadd.f32 %v6948, %v6811
    %v6950 = vadd.f32 %v6949, %v6812
    %v6951 = vadd.f32 %v6950, %v6813
    %v6952 = vadd.f32 %v6951, %v6814
    %6953 = vadd.xlane.f32.xlu0 %v6952
    %v6954 = vpop.xlane.xlu0 %6953
    %v6955 = vadd.f32 %v6815, %v6816
    %v6956 = vadd.f32 %v6955, %v6817
    %v6957 = vadd.f32 %v6956, %v6818
    %v6958 = vadd.f32 %v6957, %v6819
    %v6959 = vadd.f32 %v6958, %v6820
    %v6960 = vadd.f32 %v6959, %v6821
    %v6961 = vadd.f32 %v6960, %v6822
    %6962 = vadd.xlane.f32.xlu0 %v6961
    %v6963 = vpop.xlane.xlu0 %6962
    %v6964 = vadd.f32 %v6823, %v6824
    %v6965 = vadd.f32 %v6964, %v6825
    %v6966 = vadd.f32 %v6965, %v6826
    %v6967 = vadd.f32 %v6966, %v6827
    %v6968 = vadd.f32 %v6967, %v6828
    %v6969 = vadd.f32 %v6968, %v6829
    %v6970 = vadd.f32 %v6969, %v6830
    %6971 = vadd.xlane.f32.xlu0 %v6970
    %v6972 = vpop.xlane.xlu0 %6971
    %v6973 = vadd.f32 %v6831, %v6832
    %v6974 = vadd.f32 %v6973, %v6833
    %v6975 = vadd.f32 %v6974, %v6834
    %v6976 = vadd.f32 %v6975, %v6835
    %v6977 = vadd.f32 %v6976, %v6836
    %v6978 = vadd.f32 %v6977, %v6837
    %v6979 = vadd.f32 %v6978, %v6838
    %6980 = vadd.xlane.f32.xlu0 %v6979
    %v6981 = vpop.xlane.xlu0 %6980
    %v6982 = vadd.f32 %v6839, %v6840
    %v6983 = vadd.f32 %v6982, %v6841
    %v6984 = vadd.f32 %v6983, %v6842
    %v6985 = vadd.f32 %v6984, %v6843
    %v6986 = vadd.f32 %v6985, %v6844
    %v6987 = vadd.f32 %v6986, %v6845
    %v6988 = vadd.f32 %v6987, %v6846
    %6989 = vadd.xlane.f32.xlu0 %v6988
    %v6990 = vpop.xlane.xlu0 %6989
    %v6991 = vld [vmem:[#allocation2] sm:$0x1]
    %v6993 = vlaneseq
    %v6994 = vshrl.u32 %v6993, 7
    %v6995 = vsub.s32 0, %v6994
    %v6996 = vrot.slane %v6991, %v6995
    %v6998 = vadd.f32 %v6855, %v6996
    %v6999 = vadd.f32 %v6864, %v6996
    %v7000 = vadd.f32 %v6873, %v6996
    %v7001 = vadd.f32 %v6882, %v6996
    %v7002 = vadd.f32 %v6891, %v6996
    %v7003 = vadd.f32 %v6900, %v6996
    %v7004 = vadd.f32 %v6909, %v6996
    %v7005 = vadd.f32 %v6918, %v6996
    %v7006 = vadd.f32 %v6927, %v6996
    %v7007 = vadd.f32 %v6936, %v6996
    %v7008 = vadd.f32 %v6945, %v6996
    %v7009 = vadd.f32 %v6954, %v6996
    %v7010 = vadd.f32 %v6963, %v6996
    %v7011 = vadd.f32 %v6972, %v6996
    %v7012 = vadd.f32 %v6981, %v6996
    %v7013 = vadd.f32 %v6990, %v6996
    %7014 = vxpose.xlu0.b32.start [1/16] %v6998, 128
    %7015 = vxpose.xlu0.b32.cont [2/16] %v6999, 128
    %7016 = vxpose.xlu0.b32.cont [3/16] %v7000, 128
    %7017 = vxpose.xlu0.b32.cont [4/16] %v7001, 128
    %7018 = vxpose.xlu0.b32.cont [5/16] %v7002, 128
    %7019 = vxpose.xlu0.b32.cont [6/16] %v7003, 128
    %7020 = vxpose.xlu0.b32.cont [7/16] %v7004, 128
    %7021 = vxpose.xlu0.b32.cont [8/16] %v7005, 128
    %7022 = vxpose.xlu0.b32.cont [9/16] %v7006, 128
    %7023 = vxpose.xlu0.b32.cont [10/16] %v7007, 128
    %7024 = vxpose.xlu0.b32.cont [11/16] %v7008, 128
    %7025 = vxpose.xlu0.b32.cont [12/16] %v7009, 128
    %7026 = vxpose.xlu0.b32.cont [13/16] %v7010, 128
    %7027 = vxpose.xlu0.b32.cont [14/16] %v7011, 128
    %7028 = vxpose.xlu0.b32.cont [15/16] %v7012, 128
    %7029 = vxpose.xlu0.b32.end [16/16] %v7013, 128
    %v7030 = vpop.trf.xlu0
    %v7031 = vpop.trf.xlu0
    %v7032 = vpop.trf.xlu0
    %v7033 = vpop.trf.xlu0
    %v7034 = vpop.trf.xlu0
    %v7035 = vpop.trf.xlu0
    %v7036 = vpop.trf.xlu0
    %v7037 = vpop.trf.xlu0
    %v7038 = vpop.trf.xlu0
    %v7039 = vpop.trf.xlu0
    %v7040 = vpop.trf.xlu0
    %v7041 = vpop.trf.xlu0
    %v7042 = vpop.trf.xlu0
    %v7043 = vpop.trf.xlu0
    %v7044 = vpop.trf.xlu0
    %v7045 = vpop.trf.xlu0
    %v7046 = vxor.u32 %v7030, 2147483648
    %v7047 = vmul.f32 %v7046, 1.442695
    %v7048 = vpow.pop %v7047
    %v7049 = vadd.f32 %v7048, 1.0
    %v7050 = vrcp.pop %v7049
    %v7051 = vmul.f32 1.0, %v7050
    %7052 = vst [vmem:[%s7] sm:$0x1] %v7051
    // Predicated region
    $region50: #{adversarial_network_forward.1} parent=1 // pred_check
      _
    $region51: #{adversarial_network_forward.1} parent=1 // pred_check_branch
      %7054 = sbr.rel (0) target = $region53
    $region52: #{adversarial_network_forward.1} parent=1 // pred_region
      _
    $region53: #{adversarial_network_forward.1} parent=1 // pred_fallthru
      _
    // Predicated region
    $region54: #{adversarial_network_forward.1} parent=1 // pred_check
      _
    $region55: #{adversarial_network_forward.1} parent=1 // pred_check_branch
      %7056 = sbr.rel (0) target = $region57
    $region56: #{adversarial_network_forward.1} parent=1 // pred_region
      _
    $region57: #{adversarial_network_forward.1} parent=1 // pred_fallthru
      _
    %7057 = vsyncpa [#allocation4], 1
    %7058 = vsyncpa [#allocation6], 1
    %7059 = vsyncpa [#allocation9], 1

</llo_original>
